<compile_context>
chip_gen: v7x
topology: tpu7x:2x2x1
jax: 0.10.0
libtpu: 0.0.40
codegen_flags: <defaults>
</compile_context>

<pallas_src>
import math

import jax
import jax.numpy as jnp
from jax.experimental import pallas as pl
from jax.experimental.pallas import tpu as pltpu

# ----------------------------- configuration ------------------------------
B = 2            # batch size (number of graphs)
N = 8            # nodes per graph (dense)
F_NODE = 16      # raw node feature dim
F_EDGE = 8       # raw edge feature dim
DIM = 32         # model hidden dim
EDGE_DIM = 32    # edge embedding dim (defaults to dim)
DEPTH = 2        # transformer layers
HEADS = 2
DIM_HEAD = 16
INNER = HEADS * DIM_HEAD        # 32
FF_HIDDEN = 4 * DIM             # 128 (lane-dense feedforward hidden)
MASK_RATIO = 0.15
LN_EPS = 1e-5
SCALE = DIM_HEAD ** -0.5


# ------------------------------ fused kernel -------------------------------
def _mae_fused_kernel(
        # --- per-batch inputs (selected by grid axis 0) ---
        nodes_ref,      # (N, F_NODE)   f32  original node features (loss target)
        mask_ref,       # (N, 1)        f32  1 = masked node
        efeat_ref,      # (N*N, F_EDGE) f32  dense edge features
        adj_ref,        # (N*N, 1)      f32  dense adjacency (0/1)
        # --- broadcast constants ---
        cos_ref,        # (N, DIM_HEAD) f32  rotary cos table
        sin_ref,        # (N, DIM_HEAD) f32  sign-folded rotary sin table
        nenc_w_ref, nenc_b_ref,          # node feature encoder  (f32)
        eenc_w_ref, eenc_b_ref,          # edge feature encoder  (f32)
        adjemb_ref,                      # (2, EDGE_DIM) adjacency embedding
        dec1_w_ref, dec1_b_ref,          # decoder layer 1 (bf16 W, f32 b)
        dec2_w_ref, dec2_b_ref,          # decoder layer 2 (bf16 W, f32 b)
        # --- per-layer stacked weights (selected by grid axis 1) ---
        wqkv_ref, bqkv_ref,              # fused Q/K/V projection   (DIM, 3*INNER)
        wekv_ref, bekv_ref,              # edge -> per-head K/V add (EDGE_DIM, INNER)
        wout_ref, bout_ref,              # attention output projection
        wff1_ref, bff1_ref,              # feedforward up   (DIM, 4*DIM)
        wff2_ref, bff2_ref,              # feedforward down (4*DIM, DIM)
        ln_ref,                          # (4, DIM): ln1_g, ln1_b, ln2_g, ln2_b
        gr_ref,                          # (2, 3*DIM): gated-residual weights
        # --- output ---
        sqerr_ref,                       # (1, 1) per-graph masked sq-error sum
        # --- VMEM scratch carried across the depth axis ---
        x_scr,                           # (N, DIM)       node hidden state
        e_scr):                          # (N*N, EDGE_DIM) dense edge embeddings
    l = pl.program_id(1)

    def mm(a, w_bf16):
        # MXU matmul: bf16 operands, f32 accumulation.
        return jnp.dot(a.astype(jnp.bfloat16), w_bf16,
                       preferred_element_type=jnp.float32)

    # ------------- l == 0: encoders + dense edge construction -------------
    @pl.when(l == 0)
    def _():
        nodes = nodes_ref[...]
        keep = 1.0 - mask_ref[...]
        x0 = nodes * keep                                    # zero masked nodes
        x_scr[...] = (jnp.dot(x0, nenc_w_ref[...],
                              preferred_element_type=jnp.float32)
                      + nenc_b_ref[...])
        z_e = (jnp.dot(efeat_ref[...], eenc_w_ref[...],
                       preferred_element_type=jnp.float32)
               + eenc_b_ref[...])                            # (N*N, EDGE_DIM)
        a = adj_ref[...]                                     # (N*N, 1) in {0,1}
        emb = adjemb_ref[...]                                # (2, EDGE_DIM)
        # to_dense_adj zeroes non-edges; adjacency embedding is emb[1] on
        # edges, emb[0] elsewhere (arithmetic select since a is 0/1).
        e_scr[...] = z_e * a + a * emb[1:2, :] + (1.0 - a) * emb[0:1, :]

    # ----------------------- transformer layer l --------------------------
    x = x_scr[...]                                           # (N, DIM)
    lnp = ln_ref[...]
    grw = gr_ref[...]
    cos = cos_ref[...]
    sin = sin_ref[...]

    def layer_norm(v, g, b):
        mu = jnp.mean(v, axis=-1, keepdims=True)
        c = v - mu
        var = jnp.mean(c * c, axis=-1, keepdims=True)
        return c * jax.lax.rsqrt(var + LN_EPS) * g + b

    def gated_residual(v, res, w):                           # w: (1, 3*DIM)
        g = jnp.sum(v * w[:, 0:DIM] + res * w[:, DIM:2 * DIM]
                    + (v - res) * w[:, 2 * DIM:3 * DIM],
                    axis=-1, keepdims=True)
        gate = jax.nn.sigmoid(g)
        return v * gate + res * (1.0 - gate)

    def rope(v):
        # Half-rotation rotary: x*cos + roll(x, d/2)*[-sin | +sin]
        # (sign folded into the sin table; roll uses the otherwise-idle XLU).
        return v * cos + pltpu.roll(v, DIM_HEAD // 2, 1) * sin

    # PreNorm + fused Q/K/V projection (single 96-wide MXU matmul).
    xn = layer_norm(x, lnp[0:1, :], lnp[1:2, :])
    qkv = mm(xn, wqkv_ref[...]) + bqkv_ref[...]              # (N, 3*INNER)
    # Per-layer edge K/V projection of the VMEM-resident edge embeddings.
    e_kv = mm(e_scr[...], wekv_ref[...]) + bekv_ref[...]     # (N*N, INNER)

    head_outs = []
    for h in range(HEADS):                                   # unrolled (HEADS=2)
        c0 = h * DIM_HEAD
        q_h = rope(qkv[:, c0:c0 + DIM_HEAD])                 # (N, d)
        k_h = rope(qkv[:, INNER + c0:INNER + c0 + DIM_HEAD])
        v_h = qkv[:, 2 * INNER + c0:2 * INNER + c0 + DIM_HEAD]
        e_h = e_kv[:, c0:c0 + DIM_HEAD].reshape(N, N, DIM_HEAD)
        # sim = scale * (q @ k^T + sum_d q*e): dense part on the MXU,
        # edge-augmentation term on VPU/XLU.
        sim = jax.lax.dot_general(
            q_h, k_h, dimension_numbers=(((1,), (1,)), ((), ())),
            preferred_element_type=jnp.float32)              # (N, N)
        sim = (sim + jnp.sum(q_h[:, None, :] * e_h, axis=-1)) * SCALE
        sim = sim - jnp.max(sim, axis=-1, keepdims=True)
        p = jnp.exp(sim)
        p = p * pl.reciprocal(jnp.sum(p, axis=-1, keepdims=True), approx=True)
        # out = p @ v + sum_j p*e: dense part on the MXU, edge term on VPU/XLU.
        out = jnp.dot(p, v_h, preferred_element_type=jnp.float32)
        out = out + jnp.sum(p[:, :, None] * e_h, axis=1)
        head_outs.append(out)
    att = jnp.concatenate(head_outs, axis=1)                 # (N, INNER)

    att = mm(att, wout_ref[...]) + bout_ref[...]
    x = gated_residual(att, x, grw[0:1, :])

    # PreNorm + feedforward (SiLU); hidden width 128 is exactly lane-dense.
    xn2 = layer_norm(x, lnp[2:3, :], lnp[3:4, :])
    h1 = mm(xn2, wff1_ref[...]) + bff1_ref[...]              # (N, 128)
    h1 = h1 * jax.nn.sigmoid(h1)                             # SiLU in f32
    ff = mm(h1, wff2_ref[...]) + bff2_ref[...]
    x = gated_residual(ff, x, grw[1:2, :])
    x_scr[...] = x

    # --------------- l == last: decoder + masked squared error ------------
    @pl.when(l == pl.num_programs(1) - 1)
    def _():
        d1 = jnp.maximum(mm(x, dec1_w_ref[...]) + dec1_b_ref[...], 0.0)
        pred = mm(d1, dec2_w_ref[...]) + dec2_b_ref[...]     # (N, F_NODE)
        sq = (pred - nodes_ref[...]) ** 2 * mask_ref[...]
        sqerr_ref[...] = jnp.sum(sq, keepdims=True)          # (1, 1)


# --------------------------------- glue ------------------------------------
def _rotary_tables(n, d):
    """NeoX-style rotary tables with the sign folded into sin so that in-kernel
    rope(x) = x*cos + roll(x, d/2, lanes)*sin."""
    inv_freq = 1.0 / (10000.0 ** (jnp.arange(0, d, 2, dtype=jnp.float32) / d))
    t = jnp.arange(n, dtype=jnp.float32)
    f = t[:, None] * inv_freq[None, :]                       # (n, d/2)
    cos = jnp.concatenate([jnp.cos(f), jnp.cos(f)], axis=-1)
    sin = jnp.concatenate([-jnp.sin(f), jnp.sin(f)], axis=-1)
    return cos, sin


def _batch_spec(shape):
    nd = len(shape)
    return pl.BlockSpec((None,) + tuple(shape[1:]),
                        lambda b, l: (b,) + (0,) * (nd - 1))


def _const_spec(shape):
    nd = len(shape)
    return pl.BlockSpec(tuple(shape), lambda b, l: (0,) * nd)


def _layer_spec(shape):
    nd = len(shape)
    return pl.BlockSpec((None,) + tuple(shape[1:]),
                        lambda b, l: (l,) + (0,) * (nd - 1))


# ------------------------------ model forward ------------------------------
def init_params(key):
    keys = iter(jax.random.split(key, 16))

    def w(shape, fan_in, dtype=jnp.bfloat16):
        v = jax.random.normal(next(keys), shape, jnp.float32) / math.sqrt(fan_in)
        return v.astype(dtype)

    p = {}
    # feature encoders kept in f32 (run once at l==0; tiny contraction dims)
    p["node_enc_w"] = w((F_NODE, DIM), F_NODE, jnp.float32)
    p["node_enc_b"] = jnp.zeros((1, DIM), jnp.float32)
    p["edge_enc_w"] = w((F_EDGE, EDGE_DIM), F_EDGE, jnp.float32)
    p["edge_enc_b"] = jnp.zeros((1, EDGE_DIM), jnp.float32)
    p["adj_emb"] = 0.02 * jax.random.normal(next(keys), (2, EDGE_DIM),
                                            jnp.float32)
    # decoder (bf16 weights for the MXU, f32 biases)
    p["dec1_w"] = w((DIM, DIM), DIM)
    p["dec1_b"] = jnp.zeros((1, DIM), jnp.float32)
    p["dec2_w"] = w((DIM, F_NODE), DIM)
    p["dec2_b"] = jnp.zeros((1, F_NODE), jnp.float32)
    # transformer layers: weights stacked along a leading DEPTH axis so the
    # fused kernel's depth grid axis can stream layer l+1 while computing l.
    p["wqkv"] = w((DEPTH, DIM, 3 * INNER), DIM)
    p["bqkv"] = jnp.zeros((DEPTH, 1, 3 * INNER), jnp.float32)
    p["wekv"] = w((DEPTH, EDGE_DIM, INNER), EDGE_DIM)
    p["bekv"] = jnp.zeros((DEPTH, 1, INNER), jnp.float32)
    p["wout"] = w((DEPTH, INNER, DIM), INNER)
    p["bout"] = jnp.zeros((DEPTH, 1, DIM), jnp.float32)
    p["wff1"] = w((DEPTH, DIM, FF_HIDDEN), DIM)
    p["bff1"] = jnp.zeros((DEPTH, 1, FF_HIDDEN), jnp.float32)
    p["wff2"] = w((DEPTH, FF_HIDDEN, DIM), FF_HIDDEN)
    p["bff2"] = jnp.zeros((DEPTH, 1, DIM), jnp.float32)
    ln_one = jnp.stack([jnp.ones((DIM,)), jnp.zeros((DIM,)),
                        jnp.ones((DIM,)), jnp.zeros((DIM,))], axis=0)
    p["ln"] = jnp.broadcast_to(ln_one, (DEPTH, 4, DIM)).astype(jnp.float32)
    p["gr"] = (jax.random.normal(next(keys), (DEPTH, 2, 3 * DIM), jnp.float32)
               / math.sqrt(3 * DIM))
    return p


def forward(params, nodes_orig, edge_feat_dense, adj, noise):
    """Returns the masked-node MSE reconstruction loss (scalar)."""
    # --- node-level masking (mask_ratio path of mask_nodes_or_features) ---
    # TODO(synk): argsort-based random mask selection has no clean Pallas
    # equivalent; it stays in plain JAX (tiny setup op).
    len_keep = int(N * (1.0 - MASK_RATIO))
    ids_shuffle = jnp.argsort(noise, axis=1)
    ids_restore = jnp.argsort(ids_shuffle, axis=1)
    mask = jnp.ones((B, N), jnp.float32).at[:, :len_keep].set(0.0)
    mask = jnp.take_along_axis(mask, ids_restore, axis=1)    # [B, N], 1 = masked

    cos, sin = _rotary_tables(N, DIM_HEAD)

    batch_inputs = [
        nodes_orig,                                          # (B, N, F_NODE)
        mask[..., None],                                     # (B, N, 1)
        edge_feat_dense.reshape(B, N * N, F_EDGE),           # (B, N*N, F_EDGE)
        adj.astype(jnp.float32).reshape(B, N * N, 1),        # (B, N*N, 1)
    ]
    const_inputs = [
        cos, sin,
        params["node_enc_w"], params["node_enc_b"],
        params["edge_enc_w"], params["edge_enc_b"],
        params["adj_emb"],
        params["dec1_w"], params["dec1_b"],
        params["dec2_w"], params["dec2_b"],
    ]
    layer_inputs = [
        params["wqkv"], params["bqkv"], params["wekv"], params["bekv"],
        params["wout"], params["bout"], params["wff1"], params["bff1"],
        params["wff2"], params["bff2"], params["ln"], params["gr"],
    ]

    sqerr = pl.pallas_call(
        _mae_fused_kernel,
        out_shape=jax.ShapeDtypeStruct((B, 1, 1), jnp.float32),
        grid=(B, DEPTH),
        in_specs=([_batch_spec(a.shape) for a in batch_inputs]
                  + [_const_spec(a.shape) for a in const_inputs]
                  + [_layer_spec(a.shape) for a in layer_inputs]),
        out_specs=pl.BlockSpec((None, 1, 1), lambda b, l: (b, 0, 0)),
        scratch_shapes=[pltpu.VMEM((N, DIM), jnp.float32),
                        pltpu.VMEM((N * N, EDGE_DIM), jnp.float32)],
        compiler_params=pltpu.CompilerParams(
            dimension_semantics=("parallel", "arbitrary")),
    )(*batch_inputs, *const_inputs, *layer_inputs)

    # masked MSE == mean over masked elements
    loss = jnp.sum(sqerr) / (jnp.sum(mask) * F_NODE)
    return loss


# ---------------------------------- main ------------------------------------
if __name__ == "__main__":
    key = jax.random.PRNGKey(0)
    k_nodes, k_edges, k_adj, k_noise, k_params = jax.random.split(key, 5)

    nodes = jax.random.normal(k_nodes, (B, N, F_NODE), jnp.float32)
    edge_feat_dense = jax.random.normal(k_edges, (B, N, N, F_EDGE), jnp.float32)
    adj = (jax.random.uniform(k_adj, (B, N, N)) > 0.5).astype(jnp.int32)
    adj = adj * (1 - jnp.eye(N, dtype=jnp.int32))            # no self loops
    noise = jax.random.uniform(k_noise, (B, N), jnp.float32)

    params = init_params(k_params)

    loss = jax.jit(forward)(params, nodes, edge_feat_dense, adj, noise)
    loss = jax.block_until_ready(loss)
    assert loss.shape == () and bool(jnp.isfinite(loss))
    print("KERNEL_OK")
</pallas_src>

<mosaic_0001>
module attributes {stable_mosaic.version = 11 : i64} {
  func.func @_mae_fused_kernel(%arg0: i32, %arg1: i32, %arg2: memref<1x8x16xf32, #tpu.memory_space<vmem>>, %arg3: memref<1x8x1xf32, #tpu.memory_space<vmem>>, %arg4: memref<1x64x8xf32, #tpu.memory_space<vmem>>, %arg5: memref<1x64x1xf32, #tpu.memory_space<vmem>>, %arg6: memref<8x16xf32, #tpu.memory_space<vmem>>, %arg7: memref<8x16xf32, #tpu.memory_space<vmem>>, %arg8: memref<16x32xf32, #tpu.memory_space<vmem>>, %arg9: memref<1x32xf32, #tpu.memory_space<vmem>>, %arg10: memref<8x32xf32, #tpu.memory_space<vmem>>, %arg11: memref<1x32xf32, #tpu.memory_space<vmem>>, %arg12: memref<2x32xf32, #tpu.memory_space<vmem>>, %arg13: memref<32x32xbf16, #tpu.memory_space<vmem>>, %arg14: memref<1x32xf32, #tpu.memory_space<vmem>>, %arg15: memref<32x16xbf16, #tpu.memory_space<vmem>>, %arg16: memref<1x16xf32, #tpu.memory_space<vmem>>, %arg17: memref<1x32x96xbf16, #tpu.memory_space<vmem>>, %arg18: memref<1x1x96xf32, #tpu.memory_space<vmem>>, %arg19: memref<1x32x32xbf16, #tpu.memory_space<vmem>>, %arg20: memref<1x1x32xf32, #tpu.memory_space<vmem>>, %arg21: memref<1x32x32xbf16, #tpu.memory_space<vmem>>, %arg22: memref<1x1x32xf32, #tpu.memory_space<vmem>>, %arg23: memref<1x32x128xbf16, #tpu.memory_space<vmem>>, %arg24: memref<1x1x128xf32, #tpu.memory_space<vmem>>, %arg25: memref<1x128x32xbf16, #tpu.memory_space<vmem>>, %arg26: memref<1x1x32xf32, #tpu.memory_space<vmem>>, %arg27: memref<1x4x32xf32, #tpu.memory_space<vmem>>, %arg28: memref<1x2x96xf32, #tpu.memory_space<vmem>>, %arg29: memref<1x1x1xf32, #tpu.memory_space<vmem>>, %arg30: memref<8x32xf32, #tpu.memory_space<vmem>>, %arg31: memref<64x32xf32, #tpu.memory_space<vmem>>) attributes {dimension_semantics = [#tpu.dimension_semantics<parallel>, #tpu.dimension_semantics<arbitrary>], iteration_bounds = array<i64: 2, 2>, scalar_prefetch = 0 : i64, scratch_operands = 2 : i64, tpu.core_type = #tpu.core_type<tc>, window_params = [{transform_indices = @transform_0, window_bounds = array<i64: 1, 8, 16>}, {transform_indices = @transform_1, window_bounds = array<i64: 1, 8, 1>}, {transform_indices = @transform_2, window_bounds = array<i64: 1, 64, 8>}, {transform_indices = @transform_3, window_bounds = array<i64: 1, 64, 1>}, {pipeline_mode = #tpu.pipeline_mode<synchronous>, transform_indices = @transform_4, window_bounds = array<i64: 8, 16>}, {pipeline_mode = #tpu.pipeline_mode<synchronous>, transform_indices = @transform_5, window_bounds = array<i64: 8, 16>}, {pipeline_mode = #tpu.pipeline_mode<synchronous>, transform_indices = @transform_6, window_bounds = array<i64: 16, 32>}, {pipeline_mode = #tpu.pipeline_mode<synchronous>, transform_indices = @transform_7, window_bounds = array<i64: 1, 32>}, {pipeline_mode = #tpu.pipeline_mode<synchronous>, transform_indices = @transform_8, window_bounds = array<i64: 8, 32>}, {pipeline_mode = #tpu.pipeline_mode<synchronous>, transform_indices = @transform_9, window_bounds = array<i64: 1, 32>}, {pipeline_mode = #tpu.pipeline_mode<synchronous>, transform_indices = @transform_10, window_bounds = array<i64: 2, 32>}, {pipeline_mode = #tpu.pipeline_mode<synchronous>, transform_indices = @transform_11, window_bounds = array<i64: 32, 32>}, {pipeline_mode = #tpu.pipeline_mode<synchronous>, transform_indices = @transform_12, window_bounds = array<i64: 1, 32>}, {pipeline_mode = #tpu.pipeline_mode<synchronous>, transform_indices = @transform_13, window_bounds = array<i64: 32, 16>}, {pipeline_mode = #tpu.pipeline_mode<synchronous>, transform_indices = @transform_14, window_bounds = array<i64: 1, 16>}, {transform_indices = @transform_15, window_bounds = array<i64: 1, 32, 96>}, {transform_indices = @transform_16, window_bounds = array<i64: 1, 1, 96>}, {transform_indices = @transform_17, window_bounds = array<i64: 1, 32, 32>}, {transform_indices = @transform_18, window_bounds = array<i64: 1, 1, 32>}, {transform_indices = @transform_19, window_bounds = array<i64: 1, 32, 32>}, {transform_indices = @transform_20, window_bounds = array<i64: 1, 1, 32>}, {transform_indices = @transform_21, window_bounds = array<i64: 1, 32, 128>}, {transform_indices = @transform_22, window_bounds = array<i64: 1, 1, 128>}, {transform_indices = @transform_23, window_bounds = array<i64: 1, 128, 32>}, {transform_indices = @transform_24, window_bounds = array<i64: 1, 1, 32>}, {transform_indices = @transform_25, window_bounds = array<i64: 1, 4, 32>}, {transform_indices = @transform_26, window_bounds = array<i64: 1, 2, 96>}, {transform_indices = @transform_27, window_bounds = array<i64: 1, 1, 1>}]} {
    %c0_i32 = arith.constant 0 : i32
    %0 = arith.cmpi eq, %arg1, %c0_i32 : i32
    %1 = arith.extui %0 : i1 to i32
    %c0_i32_0 = arith.constant 0 : i32
    %2 = arith.cmpi ne, %1, %c0_i32_0 : i32
    scf.if %2 {
      %c0_85 = arith.constant 0 : index
      %c0_86 = arith.constant 0 : index
      %c0_87 = arith.constant 0 : index
      %234 = vector.load %arg2[%c0_85, %c0_86, %c0_87] : memref<1x8x16xf32, #tpu.memory_space<vmem>>, vector<1x8x16xf32>
      %235 = vector.shape_cast %234 : vector<1x8x16xf32> to vector<8x16xf32>
      %c0_88 = arith.constant 0 : index
      %c0_89 = arith.constant 0 : index
      %c0_90 = arith.constant 0 : index
      %236 = vector.load %arg3[%c0_88, %c0_89, %c0_90] : memref<1x8x1xf32, #tpu.memory_space<vmem>>, vector<1x8x1xf32>
      %237 = vector.shape_cast %236 : vector<1x8x1xf32> to vector<8x1xf32>
      %cst_91 = arith.constant 1.000000e+00 : f32
      %238 = vector.broadcast %cst_91 : f32 to vector<8x1xf32>
      %239 = arith.subf %238, %237 : vector<8x1xf32>
      %240 = vector.broadcast %239 : vector<8x1xf32> to vector<8x16xf32>
      %241 = arith.mulf %235, %240 : vector<8x16xf32>
      %c0_92 = arith.constant 0 : index
      %c0_93 = arith.constant 0 : index
      %242 = vector.load %arg8[%c0_92, %c0_93] : memref<16x32xf32, #tpu.memory_space<vmem>>, vector<16x32xf32>
      %cst_94 = arith.constant dense<0.000000e+00> : vector<8x32xf32>
      %243 = tpu.matmul %241, %242, %cst_94 {dimension_numbers = #tpu.dot_dimension_numbers<[1], [0], [0], [1], [0, 0, 1, 1], [], []>} : vector<8x16xf32>, vector<16x32xf32>, vector<8x32xf32> -> vector<8x32xf32>
      %c0_95 = arith.constant 0 : index
      %c0_96 = arith.constant 0 : index
      %244 = vector.load %arg9[%c0_95, %c0_96] : memref<1x32xf32, #tpu.memory_space<vmem>>, vector<1x32xf32>
      %245 = vector.broadcast %244 : vector<1x32xf32> to vector<8x32xf32>
      %246 = arith.addf %243, %245 : vector<8x32xf32>
      %c0_97 = arith.constant 0 : index
      %c0_98 = arith.constant 0 : index
      %247 = vector.load %arg30[%c0_97, %c0_98] : memref<8x32xf32, #tpu.memory_space<vmem>>, vector<8x32xf32>
      tpu.vector_store %arg30[%c0_97, %c0_98], %246 {strides = array<i32>} : memref<8x32xf32, #tpu.memory_space<vmem>>, vector<8x32xf32>,
      %c0_99 = arith.constant 0 : index
      %c0_100 = arith.constant 0 : index
      %c0_101 = arith.constant 0 : index
      %248 = vector.load %arg4[%c0_99, %c0_100, %c0_101] : memref<1x64x8xf32, #tpu.memory_space<vmem>>, vector<1x64x8xf32>
      %249 = vector.shape_cast %248 : vector<1x64x8xf32> to vector<64x8xf32>
      %c0_102 = arith.constant 0 : index
      %c0_103 = arith.constant 0 : index
      %250 = vector.load %arg10[%c0_102, %c0_103] : memref<8x32xf32, #tpu.memory_space<vmem>>, vector<8x32xf32>
      %cst_104 = arith.constant dense<0.000000e+00> : vector<64x32xf32>
      %251 = tpu.matmul %249, %250, %cst_104 {dimension_numbers = #tpu.dot_dimension_numbers<[1], [0], [0], [1], [0, 0, 1, 1], [], []>} : vector<64x8xf32>, vector<8x32xf32>, vector<64x32xf32> -> vector<64x32xf32>
      %c0_105 = arith.constant 0 : index
      %c0_106 = arith.constant 0 : index
      %252 = vector.load %arg11[%c0_105, %c0_106] : memref<1x32xf32, #tpu.memory_space<vmem>>, vector<1x32xf32>
      %253 = vector.broadcast %252 : vector<1x32xf32> to vector<64x32xf32>
      %254 = arith.addf %251, %253 : vector<64x32xf32>
      %c0_107 = arith.constant 0 : index
      %c0_108 = arith.constant 0 : index
      %c0_109 = arith.constant 0 : index
      %255 = vector.load %arg5[%c0_107, %c0_108, %c0_109] : memref<1x64x1xf32, #tpu.memory_space<vmem>>, vector<1x64x1xf32>
      %256 = vector.shape_cast %255 : vector<1x64x1xf32> to vector<64x1xf32>
      %c0_110 = arith.constant 0 : index
      %c0_111 = arith.constant 0 : index
      %257 = vector.load %arg12[%c0_110, %c0_111] : memref<2x32xf32, #tpu.memory_space<vmem>>, vector<2x32xf32>
      %258 = vector.broadcast %256 : vector<64x1xf32> to vector<64x32xf32>
      %259 = arith.mulf %254, %258 : vector<64x32xf32>
      %260 = vector.extract_strided_slice %257 {offsets = [1, 0], sizes = [1, 32], strides = [1, 1]} : vector<2x32xf32> to vector<1x32xf32>
      %261 = vector.broadcast %256 : vector<64x1xf32> to vector<64x32xf32>
      %262 = vector.broadcast %260 : vector<1x32xf32> to vector<64x32xf32>
      %263 = arith.mulf %261, %262 : vector<64x32xf32>
      %264 = arith.addf %259, %263 : vector<64x32xf32>
      %cst_112 = arith.constant 1.000000e+00 : f32
      %265 = vector.broadcast %cst_112 : f32 to vector<64x1xf32>
      %266 = arith.subf %265, %256 : vector<64x1xf32>
      %267 = vector.extract_strided_slice %257 {offsets = [0, 0], sizes = [1, 32], strides = [1, 1]} : vector<2x32xf32> to vector<1x32xf32>
      %268 = vector.broadcast %266 : vector<64x1xf32> to vector<64x32xf32>
      %269 = vector.broadcast %267 : vector<1x32xf32> to vector<64x32xf32>
      %270 = arith.mulf %268, %269 : vector<64x32xf32>
      %271 = arith.addf %264, %270 : vector<64x32xf32>
      %c0_113 = arith.constant 0 : index
      %c0_114 = arith.constant 0 : index
      %272 = vector.load %arg31[%c0_113, %c0_114] : memref<64x32xf32, #tpu.memory_space<vmem>>, vector<64x32xf32>
      tpu.vector_store %arg31[%c0_113, %c0_114], %271 {strides = array<i32>} : memref<64x32xf32, #tpu.memory_space<vmem>>, vector<64x32xf32>,
    } else {
    }
    %c0 = arith.constant 0 : index
    %c0_1 = arith.constant 0 : index
    %3 = vector.load %arg30[%c0, %c0_1] : memref<8x32xf32, #tpu.memory_space<vmem>>, vector<8x32xf32>
    %c0_2 = arith.constant 0 : index
    %c0_3 = arith.constant 0 : index
    %c0_4 = arith.constant 0 : index
    %4 = vector.load %arg27[%c0_2, %c0_3, %c0_4] : memref<1x4x32xf32, #tpu.memory_space<vmem>>, vector<1x4x32xf32>
    %5 = vector.shape_cast %4 : vector<1x4x32xf32> to vector<4x32xf32>
    %c0_5 = arith.constant 0 : index
    %c0_6 = arith.constant 0 : index
    %c0_7 = arith.constant 0 : index
    %6 = vector.load %arg28[%c0_5, %c0_6, %c0_7] : memref<1x2x96xf32, #tpu.memory_space<vmem>>, vector<1x2x96xf32>
    %7 = vector.shape_cast %6 : vector<1x2x96xf32> to vector<2x96xf32>
    %c0_8 = arith.constant 0 : index
    %c0_9 = arith.constant 0 : index
    %8 = vector.load %arg6[%c0_8, %c0_9] : memref<8x16xf32, #tpu.memory_space<vmem>>, vector<8x16xf32>
    %c0_10 = arith.constant 0 : index
    %c0_11 = arith.constant 0 : index
    %9 = vector.load %arg7[%c0_10, %c0_11] : memref<8x16xf32, #tpu.memory_space<vmem>>, vector<8x16xf32>
    %10 = vector.extract_strided_slice %5 {offsets = [0, 0], sizes = [1, 32], strides = [1, 1]} : vector<4x32xf32> to vector<1x32xf32>
    %11 = vector.extract_strided_slice %5 {offsets = [1, 0], sizes = [1, 32], strides = [1, 1]} : vector<4x32xf32> to vector<1x32xf32>
    %cst = arith.constant dense<0.000000e+00> : vector<8xf32>
    %12 = vector.multi_reduction <add>, %3, %cst [1] : vector<8x32xf32> to vector<8xf32>
    %13 = vector.shape_cast %12 : vector<8xf32> to vector<8x1xf32>
    %cst_12 = arith.constant 3.200000e+01 : f32
    %14 = vector.broadcast %cst_12 : f32 to vector<8x1xf32>
    %15 = arith.divf %13, %14 : vector<8x1xf32>
    %16 = vector.broadcast %15 : vector<8x1xf32> to vector<8x32xf32>
    %17 = arith.subf %3, %16 : vector<8x32xf32>
    %18 = arith.mulf %17, %17 : vector<8x32xf32>
    %cst_13 = arith.constant dense<0.000000e+00> : vector<8xf32>
    %19 = vector.multi_reduction <add>, %18, %cst_13 [1] : vector<8x32xf32> to vector<8xf32>
    %20 = vector.shape_cast %19 : vector<8xf32> to vector<8x1xf32>
    %cst_14 = arith.constant 3.200000e+01 : f32
    %21 = vector.broadcast %cst_14 : f32 to vector<8x1xf32>
    %22 = arith.divf %20, %21 : vector<8x1xf32>
    %cst_15 = arith.constant 9.99999974E-6 : f32
    %23 = vector.broadcast %cst_15 : f32 to vector<8x1xf32>
    %24 = arith.addf %22, %23 : vector<8x1xf32>
    %25 = math.rsqrt %24 : vector<8x1xf32>
    %26 = vector.broadcast %25 : vector<8x1xf32> to vector<8x32xf32>
    %27 = arith.mulf %17, %26 : vector<8x32xf32>
    %28 = vector.broadcast %10 : vector<1x32xf32> to vector<8x32xf32>
    %29 = arith.mulf %27, %28 : vector<8x32xf32>
    %30 = vector.broadcast %11 : vector<1x32xf32> to vector<8x32xf32>
    %31 = arith.addf %29, %30 : vector<8x32xf32>
    %c0_16 = arith.constant 0 : index
    %c0_17 = arith.constant 0 : index
    %c0_18 = arith.constant 0 : index
    %32 = vector.load %arg17[%c0_16, %c0_17, %c0_18] : memref<1x32x96xbf16, #tpu.memory_space<vmem>>, vector<1x32x96xbf16>
    %33 = vector.shape_cast %32 : vector<1x32x96xbf16> to vector<32x96xbf16>
    %34 = arith.truncf %31 : vector<8x32xf32> to vector<8x32xbf16>
    %cst_19 = arith.constant dense<0.000000e+00> : vector<8x96xf32>
    %35 = tpu.matmul %34, %33, %cst_19 {dimension_numbers = #tpu.dot_dimension_numbers<[1], [0], [0], [1], [0, 0, 1, 1], [], []>} : vector<8x32xbf16>, vector<32x96xbf16>, vector<8x96xf32> -> vector<8x96xf32>
    %c0_20 = arith.constant 0 : index
    %c0_21 = arith.constant 0 : index
    %c0_22 = arith.constant 0 : index
    %36 = vector.load %arg18[%c0_20, %c0_21, %c0_22] : memref<1x1x96xf32, #tpu.memory_space<vmem>>, vector<1x1x96xf32>
    %37 = vector.shape_cast %36 : vector<1x1x96xf32> to vector<1x96xf32>
    %38 = vector.broadcast %37 : vector<1x96xf32> to vector<8x96xf32>
    %39 = arith.addf %35, %38 : vector<8x96xf32>
    %c0_23 = arith.constant 0 : index
    %c0_24 = arith.constant 0 : index
    %40 = vector.load %arg31[%c0_23, %c0_24] : memref<64x32xf32, #tpu.memory_space<vmem>>, vector<64x32xf32>
    %c0_25 = arith.constant 0 : index
    %c0_26 = arith.constant 0 : index
    %c0_27 = arith.constant 0 : index
    %41 = vector.load %arg19[%c0_25, %c0_26, %c0_27] : memref<1x32x32xbf16, #tpu.memory_space<vmem>>, vector<1x32x32xbf16>
    %42 = vector.shape_cast %41 : vector<1x32x32xbf16> to vector<32x32xbf16>
    %43 = arith.truncf %40 : vector<64x32xf32> to vector<64x32xbf16>
    %cst_28 = arith.constant dense<0.000000e+00> : vector<64x32xf32>
    %44 = tpu.matmul %43, %42, %cst_28 {dimension_numbers = #tpu.dot_dimension_numbers<[1], [0], [0], [1], [0, 0, 1, 1], [], []>} : vector<64x32xbf16>, vector<32x32xbf16>, vector<64x32xf32> -> vector<64x32xf32>
    %c0_29 = arith.constant 0 : index
    %c0_30 = arith.constant 0 : index
    %c0_31 = arith.constant 0 : index
    %45 = vector.load %arg20[%c0_29, %c0_30, %c0_31] : memref<1x1x32xf32, #tpu.memory_space<vmem>>, vector<1x1x32xf32>
    %46 = vector.shape_cast %45 : vector<1x1x32xf32> to vector<1x32xf32>
    %47 = vector.broadcast %46 : vector<1x32xf32> to vector<64x32xf32>
    %48 = arith.addf %44, %47 : vector<64x32xf32>
    %49 = vector.extract_strided_slice %39 {offsets = [0, 0], sizes = [8, 16], strides = [1, 1]} : vector<8x96xf32> to vector<8x16xf32>
    %50 = arith.mulf %49, %8 : vector<8x16xf32>
    %c8_i32 = arith.constant 8 : i32
    %51 = tpu.dynamic_rotate %49 by %c8_i32 dim 1 : vector<8x16xf32>, i32 -> vector<8x16xf32>
    %52 = arith.mulf %51, %9 : vector<8x16xf32>
    %53 = arith.addf %50, %52 : vector<8x16xf32>
    %54 = vector.extract_strided_slice %39 {offsets = [0, 32], sizes = [8, 16], strides = [1, 1]} : vector<8x96xf32> to vector<8x16xf32>
    %55 = arith.mulf %54, %8 : vector<8x16xf32>
    %c8_i32_32 = arith.constant 8 : i32
    %56 = tpu.dynamic_rotate %54 by %c8_i32_32 dim 1 : vector<8x16xf32>, i32 -> vector<8x16xf32>
    %57 = arith.mulf %56, %9 : vector<8x16xf32>
    %58 = arith.addf %55, %57 : vector<8x16xf32>
    %59 = vector.extract_strided_slice %39 {offsets = [0, 64], sizes = [8, 16], strides = [1, 1]} : vector<8x96xf32> to vector<8x16xf32>
    %60 = vector.extract_strided_slice %48 {offsets = [0, 0], sizes = [64, 16], strides = [1, 1]} : vector<64x32xf32> to vector<64x16xf32>
    %61 = vector.shape_cast %60 : vector<64x16xf32> to vector<8x8x16xf32>
    %cst_33 = arith.constant dense<0.000000e+00> : vector<8x8xf32>
    %62 = tpu.matmul %53, %58, %cst_33 {dimension_numbers = #tpu.dot_dimension_numbers<[1], [1], [0], [0], [0, 0, 1, 0], [], []>} : vector<8x16xf32>, vector<8x16xf32>, vector<8x8xf32> -> vector<8x8xf32>
    %63 = vector.shape_cast %53 : vector<8x16xf32> to vector<8x1x16xf32>
    %64 = vector.broadcast %63 : vector<8x1x16xf32> to vector<8x8x16xf32>
    %65 = arith.mulf %64, %61 : vector<8x8x16xf32>
    %cst_34 = arith.constant dense<0.000000e+00> : vector<8x8xf32>
    %66 = vector.multi_reduction <add>, %65, %cst_34 [2] : vector<8x8x16xf32> to vector<8x8xf32>
    %67 = arith.addf %62, %66 : vector<8x8xf32>
    %cst_35 = arith.constant 2.500000e-01 : f32
    %68 = vector.broadcast %cst_35 : f32 to vector<8x8xf32>
    %69 = arith.mulf %67, %68 : vector<8x8xf32>
    %cst_36 = arith.constant dense<0xFF800000> : vector<8xf32>
    %70 = vector.multi_reduction <maximumf>, %69, %cst_36 [1] : vector<8x8xf32> to vector<8xf32>
    %71 = vector.shape_cast %70 : vector<8xf32> to vector<8x1xf32>
    %72 = vector.broadcast %71 : vector<8x1xf32> to vector<8x8xf32>
    %73 = arith.subf %69, %72 : vector<8x8xf32>
    %74 = math.exp %73 : vector<8x8xf32>
    %cst_37 = arith.constant dense<0.000000e+00> : vector<8xf32>
    %75 = vector.multi_reduction <add>, %74, %cst_37 [1] : vector<8x8xf32> to vector<8xf32>
    %76 = vector.shape_cast %75 : vector<8xf32> to vector<8x1xf32>
    %77 = tpu.reciprocal %76 {approx = true} : vector<8x1xf32> -> vector<8x1xf32>
    %78 = vector.broadcast %77 : vector<8x1xf32> to vector<8x8xf32>
    %79 = arith.mulf %74, %78 : vector<8x8xf32>
    %cst_38 = arith.constant dense<0.000000e+00> : vector<8x16xf32>
    %80 = tpu.matmul %79, %59, %cst_38 {dimension_numbers = #tpu.dot_dimension_numbers<[1], [0], [0], [1], [0, 0, 1, 1], [], []>} : vector<8x8xf32>, vector<8x16xf32>, vector<8x16xf32> -> vector<8x16xf32>
    %81 = vector.shape_cast %79 : vector<8x8xf32> to vector<8x8x1xf32>
    %82 = vector.broadcast %81 : vector<8x8x1xf32> to vector<8x8x16xf32>
    %83 = arith.mulf %82, %61 : vector<8x8x16xf32>
    %cst_39 = arith.constant dense<0.000000e+00> : vector<8x16xf32>
    %84 = vector.multi_reduction <add>, %83, %cst_39 [1] : vector<8x8x16xf32> to vector<8x16xf32>
    %85 = arith.addf %80, %84 : vector<8x16xf32>
    %86 = vector.extract_strided_slice %39 {offsets = [0, 16], sizes = [8, 16], strides = [1, 1]} : vector<8x96xf32> to vector<8x16xf32>
    %87 = arith.mulf %86, %8 : vector<8x16xf32>
    %c8_i32_40 = arith.constant 8 : i32
    %88 = tpu.dynamic_rotate %86 by %c8_i32_40 dim 1 : vector<8x16xf32>, i32 -> vector<8x16xf32>
    %89 = arith.mulf %88, %9 : vector<8x16xf32>
    %90 = arith.addf %87, %89 : vector<8x16xf32>
    %91 = vector.extract_strided_slice %39 {offsets = [0, 48], sizes = [8, 16], strides = [1, 1]} : vector<8x96xf32> to vector<8x16xf32>
    %92 = arith.mulf %91, %8 : vector<8x16xf32>
    %c8_i32_41 = arith.constant 8 : i32
    %93 = tpu.dynamic_rotate %91 by %c8_i32_41 dim 1 : vector<8x16xf32>, i32 -> vector<8x16xf32>
    %94 = arith.mulf %93, %9 : vector<8x16xf32>
    %95 = arith.addf %92, %94 : vector<8x16xf32>
    %96 = vector.extract_strided_slice %39 {offsets = [0, 80], sizes = [8, 16], strides = [1, 1]} : vector<8x96xf32> to vector<8x16xf32>
    %97 = vector.extract_strided_slice %48 {offsets = [0, 16], sizes = [64, 16], strides = [1, 1]} : vector<64x32xf32> to vector<64x16xf32>
    %98 = vector.shape_cast %97 : vector<64x16xf32> to vector<8x8x16xf32>
    %cst_42 = arith.constant dense<0.000000e+00> : vector<8x8xf32>
    %99 = tpu.matmul %90, %95, %cst_42 {dimension_numbers = #tpu.dot_dimension_numbers<[1], [1], [0], [0], [0, 0, 1, 0], [], []>} : vector<8x16xf32>, vector<8x16xf32>, vector<8x8xf32> -> vector<8x8xf32>
    %100 = vector.shape_cast %90 : vector<8x16xf32> to vector<8x1x16xf32>
    %101 = vector.broadcast %100 : vector<8x1x16xf32> to vector<8x8x16xf32>
    %102 = arith.mulf %101, %98 : vector<8x8x16xf32>
    %cst_43 = arith.constant dense<0.000000e+00> : vector<8x8xf32>
    %103 = vector.multi_reduction <add>, %102, %cst_43 [2] : vector<8x8x16xf32> to vector<8x8xf32>
    %104 = arith.addf %99, %103 : vector<8x8xf32>
    %cst_44 = arith.constant 2.500000e-01 : f32
    %105 = vector.broadcast %cst_44 : f32 to vector<8x8xf32>
    %106 = arith.mulf %104, %105 : vector<8x8xf32>
    %cst_45 = arith.constant dense<0xFF800000> : vector<8xf32>
    %107 = vector.multi_reduction <maximumf>, %106, %cst_45 [1] : vector<8x8xf32> to vector<8xf32>
    %108 = vector.shape_cast %107 : vector<8xf32> to vector<8x1xf32>
    %109 = vector.broadcast %108 : vector<8x1xf32> to vector<8x8xf32>
    %110 = arith.subf %106, %109 : vector<8x8xf32>
    %111 = math.exp %110 : vector<8x8xf32>
    %cst_46 = arith.constant dense<0.000000e+00> : vector<8xf32>
    %112 = vector.multi_reduction <add>, %111, %cst_46 [1] : vector<8x8xf32> to vector<8xf32>
    %113 = vector.shape_cast %112 : vector<8xf32> to vector<8x1xf32>
    %114 = tpu.reciprocal %113 {approx = true} : vector<8x1xf32> -> vector<8x1xf32>
    %115 = vector.broadcast %114 : vector<8x1xf32> to vector<8x8xf32>
    %116 = arith.mulf %111, %115 : vector<8x8xf32>
    %cst_47 = arith.constant dense<0.000000e+00> : vector<8x16xf32>
    %117 = tpu.matmul %116, %96, %cst_47 {dimension_numbers = #tpu.dot_dimension_numbers<[1], [0], [0], [1], [0, 0, 1, 1], [], []>} : vector<8x8xf32>, vector<8x16xf32>, vector<8x16xf32> -> vector<8x16xf32>
    %118 = vector.shape_cast %116 : vector<8x8xf32> to vector<8x8x1xf32>
    %119 = vector.broadcast %118 : vector<8x8x1xf32> to vector<8x8x16xf32>
    %120 = arith.mulf %119, %98 : vector<8x8x16xf32>
    %cst_48 = arith.constant dense<0.000000e+00> : vector<8x16xf32>
    %121 = vector.multi_reduction <add>, %120, %cst_48 [1] : vector<8x8x16xf32> to vector<8x16xf32>
    %122 = arith.addf %117, %121 : vector<8x16xf32>
    %123 = tpu.concatenate %85, %122 in 1 : vector<8x16xf32>, vector<8x16xf32> -> vector<8x32xf32>
    %c0_49 = arith.constant 0 : index
    %c0_50 = arith.constant 0 : index
    %c0_51 = arith.constant 0 : index
    %124 = vector.load %arg21[%c0_49, %c0_50, %c0_51] : memref<1x32x32xbf16, #tpu.memory_space<vmem>>, vector<1x32x32xbf16>
    %125 = vector.shape_cast %124 : vector<1x32x32xbf16> to vector<32x32xbf16>
    %126 = arith.truncf %123 : vector<8x32xf32> to vector<8x32xbf16>
    %cst_52 = arith.constant dense<0.000000e+00> : vector<8x32xf32>
    %127 = tpu.matmul %126, %125, %cst_52 {dimension_numbers = #tpu.dot_dimension_numbers<[1], [0], [0], [1], [0, 0, 1, 1], [], []>} : vector<8x32xbf16>, vector<32x32xbf16>, vector<8x32xf32> -> vector<8x32xf32>
    %c0_53 = arith.constant 0 : index
    %c0_54 = arith.constant 0 : index
    %c0_55 = arith.constant 0 : index
    %128 = vector.load %arg22[%c0_53, %c0_54, %c0_55] : memref<1x1x32xf32, #tpu.memory_space<vmem>>, vector<1x1x32xf32>
    %129 = vector.shape_cast %128 : vector<1x1x32xf32> to vector<1x32xf32>
    %130 = vector.broadcast %129 : vector<1x32xf32> to vector<8x32xf32>
    %131 = arith.addf %127, %130 : vector<8x32xf32>
    %132 = vector.extract_strided_slice %7 {offsets = [0, 0], sizes = [1, 96], strides = [1, 1]} : vector<2x96xf32> to vector<1x96xf32>
    %133 = vector.extract_strided_slice %132 {offsets = [0, 0], sizes = [1, 32], strides = [1, 1]} : vector<1x96xf32> to vector<1x32xf32>
    %134 = vector.broadcast %133 : vector<1x32xf32> to vector<8x32xf32>
    %135 = arith.mulf %131, %134 : vector<8x32xf32>
    %136 = vector.extract_strided_slice %132 {offsets = [0, 32], sizes = [1, 32], strides = [1, 1]} : vector<1x96xf32> to vector<1x32xf32>
    %137 = vector.broadcast %136 : vector<1x32xf32> to vector<8x32xf32>
    %138 = arith.mulf %3, %137 : vector<8x32xf32>
    %139 = arith.addf %135, %138 : vector<8x32xf32>
    %140 = arith.subf %131, %3 : vector<8x32xf32>
    %141 = vector.extract_strided_slice %132 {offsets = [0, 64], sizes = [1, 32], strides = [1, 1]} : vector<1x96xf32> to vector<1x32xf32>
    %142 = vector.broadcast %141 : vector<1x32xf32> to vector<8x32xf32>
    %143 = arith.mulf %140, %142 : vector<8x32xf32>
    %144 = arith.addf %139, %143 : vector<8x32xf32>
    %cst_56 = arith.constant dense<0.000000e+00> : vector<8xf32>
    %145 = vector.multi_reduction <add>, %144, %cst_56 [1] : vector<8x32xf32> to vector<8xf32>
    %146 = vector.shape_cast %145 : vector<8xf32> to vector<8x1xf32>
    %147 = arith.negf %146 : vector<8x1xf32>
    %148 = math.exp %147 : vector<8x1xf32>
    %cst_57 = arith.constant 1.000000e+00 : f32
    %149 = vector.broadcast %cst_57 : f32 to vector<8x1xf32>
    %150 = arith.addf %149, %148 : vector<8x1xf32>
    %151 = arith.divf %149, %150 : vector<8x1xf32>
    %152 = vector.broadcast %151 : vector<8x1xf32> to vector<8x32xf32>
    %153 = arith.mulf %131, %152 : vector<8x32xf32>
    %cst_58 = arith.constant 1.000000e+00 : f32
    %154 = vector.broadcast %cst_58 : f32 to vector<8x1xf32>
    %155 = arith.subf %154, %151 : vector<8x1xf32>
    %156 = vector.broadcast %155 : vector<8x1xf32> to vector<8x32xf32>
    %157 = arith.mulf %3, %156 : vector<8x32xf32>
    %158 = arith.addf %153, %157 : vector<8x32xf32>
    %159 = vector.extract_strided_slice %5 {offsets = [2, 0], sizes = [1, 32], strides = [1, 1]} : vector<4x32xf32> to vector<1x32xf32>
    %160 = vector.extract_strided_slice %5 {offsets = [3, 0], sizes = [1, 32], strides = [1, 1]} : vector<4x32xf32> to vector<1x32xf32>
    %cst_59 = arith.constant dense<0.000000e+00> : vector<8xf32>
    %161 = vector.multi_reduction <add>, %158, %cst_59 [1] : vector<8x32xf32> to vector<8xf32>
    %162 = vector.shape_cast %161 : vector<8xf32> to vector<8x1xf32>
    %cst_60 = arith.constant 3.200000e+01 : f32
    %163 = vector.broadcast %cst_60 : f32 to vector<8x1xf32>
    %164 = arith.divf %162, %163 : vector<8x1xf32>
    %165 = vector.broadcast %164 : vector<8x1xf32> to vector<8x32xf32>
    %166 = arith.subf %158, %165 : vector<8x32xf32>
    %167 = arith.mulf %166, %166 : vector<8x32xf32>
    %cst_61 = arith.constant dense<0.000000e+00> : vector<8xf32>
    %168 = vector.multi_reduction <add>, %167, %cst_61 [1] : vector<8x32xf32> to vector<8xf32>
    %169 = vector.shape_cast %168 : vector<8xf32> to vector<8x1xf32>
    %cst_62 = arith.constant 3.200000e+01 : f32
    %170 = vector.broadcast %cst_62 : f32 to vector<8x1xf32>
    %171 = arith.divf %169, %170 : vector<8x1xf32>
    %cst_63 = arith.constant 9.99999974E-6 : f32
    %172 = vector.broadcast %cst_63 : f32 to vector<8x1xf32>
    %173 = arith.addf %171, %172 : vector<8x1xf32>
    %174 = math.rsqrt %173 : vector<8x1xf32>
    %175 = vector.broadcast %174 : vector<8x1xf32> to vector<8x32xf32>
    %176 = arith.mulf %166, %175 : vector<8x32xf32>
    %177 = vector.broadcast %159 : vector<1x32xf32> to vector<8x32xf32>
    %178 = arith.mulf %176, %177 : vector<8x32xf32>
    %179 = vector.broadcast %160 : vector<1x32xf32> to vector<8x32xf32>
    %180 = arith.addf %178, %179 : vector<8x32xf32>
    %c0_64 = arith.constant 0 : index
    %c0_65 = arith.constant 0 : index
    %c0_66 = arith.constant 0 : index
    %181 = vector.load %arg23[%c0_64, %c0_65, %c0_66] : memref<1x32x128xbf16, #tpu.memory_space<vmem>>, vector<1x32x128xbf16>
    %182 = vector.shape_cast %181 : vector<1x32x128xbf16> to vector<32x128xbf16>
    %183 = arith.truncf %180 : vector<8x32xf32> to vector<8x32xbf16>
    %cst_67 = arith.constant dense<0.000000e+00> : vector<8x128xf32>
    %184 = tpu.matmul %183, %182, %cst_67 {dimension_numbers = #tpu.dot_dimension_numbers<[1], [0], [0], [1], [0, 0, 1, 1], [], []>} : vector<8x32xbf16>, vector<32x128xbf16>, vector<8x128xf32> -> vector<8x128xf32>
    %c0_68 = arith.constant 0 : index
    %c0_69 = arith.constant 0 : index
    %c0_70 = arith.constant 0 : index
    %185 = vector.load %arg24[%c0_68, %c0_69, %c0_70] : memref<1x1x128xf32, #tpu.memory_space<vmem>>, vector<1x1x128xf32>
    %186 = vector.shape_cast %185 : vector<1x1x128xf32> to vector<1x128xf32>
    %187 = vector.broadcast %186 : vector<1x128xf32> to vector<8x128xf32>
    %188 = arith.addf %184, %187 : vector<8x128xf32>
    %189 = arith.negf %188 : vector<8x128xf32>
    %190 = math.exp %189 : vector<8x128xf32>
    %cst_71 = arith.constant 1.000000e+00 : f32
    %191 = vector.broadcast %cst_71 : f32 to vector<8x128xf32>
    %192 = arith.addf %191, %190 : vector<8x128xf32>
    %193 = arith.divf %191, %192 : vector<8x128xf32>
    %194 = arith.mulf %188, %193 : vector<8x128xf32>
    %c0_72 = arith.constant 0 : index
    %c0_73 = arith.constant 0 : index
    %c0_74 = arith.constant 0 : index
    %195 = vector.load %arg25[%c0_72, %c0_73, %c0_74] : memref<1x128x32xbf16, #tpu.memory_space<vmem>>, vector<1x128x32xbf16>
    %196 = vector.shape_cast %195 : vector<1x128x32xbf16> to vector<128x32xbf16>
    %197 = arith.truncf %194 : vector<8x128xf32> to vector<8x128xbf16>
    %cst_75 = arith.constant dense<0.000000e+00> : vector<8x32xf32>
    %198 = tpu.matmul %197, %196, %cst_75 {dimension_numbers = #tpu.dot_dimension_numbers<[1], [0], [0], [1], [0, 0, 1, 1], [], []>} : vector<8x128xbf16>, vector<128x32xbf16>, vector<8x32xf32> -> vector<8x32xf32>
    %c0_76 = arith.constant 0 : index
    %c0_77 = arith.constant 0 : index
    %c0_78 = arith.constant 0 : index
    %199 = vector.load %arg26[%c0_76, %c0_77, %c0_78] : memref<1x1x32xf32, #tpu.memory_space<vmem>>, vector<1x1x32xf32>
    %200 = vector.shape_cast %199 : vector<1x1x32xf32> to vector<1x32xf32>
    %201 = vector.broadcast %200 : vector<1x32xf32> to vector<8x32xf32>
    %202 = arith.addf %198, %201 : vector<8x32xf32>
    %203 = vector.extract_strided_slice %7 {offsets = [1, 0], sizes = [1, 96], strides = [1, 1]} : vector<2x96xf32> to vector<1x96xf32>
    %204 = vector.extract_strided_slice %203 {offsets = [0, 0], sizes = [1, 32], strides = [1, 1]} : vector<1x96xf32> to vector<1x32xf32>
    %205 = vector.broadcast %204 : vector<1x32xf32> to vector<8x32xf32>
    %206 = arith.mulf %202, %205 : vector<8x32xf32>
    %207 = vector.extract_strided_slice %203 {offsets = [0, 32], sizes = [1, 32], strides = [1, 1]} : vector<1x96xf32> to vector<1x32xf32>
    %208 = vector.broadcast %207 : vector<1x32xf32> to vector<8x32xf32>
    %209 = arith.mulf %158, %208 : vector<8x32xf32>
    %210 = arith.addf %206, %209 : vector<8x32xf32>
    %211 = arith.subf %202, %158 : vector<8x32xf32>
    %212 = vector.extract_strided_slice %203 {offsets = [0, 64], sizes = [1, 32], strides = [1, 1]} : vector<1x96xf32> to vector<1x32xf32>
    %213 = vector.broadcast %212 : vector<1x32xf32> to vector<8x32xf32>
    %214 = arith.mulf %211, %213 : vector<8x32xf32>
    %215 = arith.addf %210, %214 : vector<8x32xf32>
    %cst_79 = arith.constant dense<0.000000e+00> : vector<8xf32>
    %216 = vector.multi_reduction <add>, %215, %cst_79 [1] : vector<8x32xf32> to vector<8xf32>
    %217 = vector.shape_cast %216 : vector<8xf32> to vector<8x1xf32>
    %218 = arith.negf %217 : vector<8x1xf32>
    %219 = math.exp %218 : vector<8x1xf32>
    %cst_80 = arith.constant 1.000000e+00 : f32
    %220 = vector.broadcast %cst_80 : f32 to vector<8x1xf32>
    %221 = arith.addf %220, %219 : vector<8x1xf32>
    %222 = arith.divf %220, %221 : vector<8x1xf32>
    %223 = vector.broadcast %222 : vector<8x1xf32> to vector<8x32xf32>
    %224 = arith.mulf %202, %223 : vector<8x32xf32>
    %cst_81 = arith.constant 1.000000e+00 : f32
    %225 = vector.broadcast %cst_81 : f32 to vector<8x1xf32>
    %226 = arith.subf %225, %222 : vector<8x1xf32>
    %227 = vector.broadcast %226 : vector<8x1xf32> to vector<8x32xf32>
    %228 = arith.mulf %158, %227 : vector<8x32xf32>
    %229 = arith.addf %224, %228 : vector<8x32xf32>
    %c0_82 = arith.constant 0 : index
    %c0_83 = arith.constant 0 : index
    %230 = vector.load %arg30[%c0_82, %c0_83] : memref<8x32xf32, #tpu.memory_space<vmem>>, vector<8x32xf32>
    tpu.vector_store %arg30[%c0_82, %c0_83], %229 {strides = array<i32>} : memref<8x32xf32, #tpu.memory_space<vmem>>, vector<8x32xf32>,
    %c1_i32 = arith.constant 1 : i32
    %231 = arith.cmpi eq, %arg1, %c1_i32 : i32
    %232 = arith.extui %231 : i1 to i32
    %c0_i32_84 = arith.constant 0 : i32
    %233 = arith.cmpi ne, %232, %c0_i32_84 : i32
    scf.if %233 {
      %c0_85 = arith.constant 0 : index
      %c0_86 = arith.constant 0 : index
      %234 = vector.load %arg13[%c0_85, %c0_86] : memref<32x32xbf16, #tpu.memory_space<vmem>>, vector<32x32xbf16>
      %235 = arith.truncf %229 : vector<8x32xf32> to vector<8x32xbf16>
      %cst_87 = arith.constant dense<0.000000e+00> : vector<8x32xf32>
      %236 = tpu.matmul %235, %234, %cst_87 {dimension_numbers = #tpu.dot_dimension_numbers<[1], [0], [0], [1], [0, 0, 1, 1], [], []>} : vector<8x32xbf16>, vector<32x32xbf16>, vector<8x32xf32> -> vector<8x32xf32>
      %c0_88 = arith.constant 0 : index
      %c0_89 = arith.constant 0 : index
      %237 = vector.load %arg14[%c0_88, %c0_89] : memref<1x32xf32, #tpu.memory_space<vmem>>, vector<1x32xf32>
      %238 = vector.broadcast %237 : vector<1x32xf32> to vector<8x32xf32>
      %239 = arith.addf %236, %238 : vector<8x32xf32>
      %cst_90 = arith.constant 0.000000e+00 : f32
      %240 = vector.broadcast %cst_90 : f32 to vector<8x32xf32>
      %241 = arith.maximumf %239, %240 : vector<8x32xf32>
      %c0_91 = arith.constant 0 : index
      %c0_92 = arith.constant 0 : index
      %242 = vector.load %arg15[%c0_91, %c0_92] : memref<32x16xbf16, #tpu.memory_space<vmem>>, vector<32x16xbf16>
      %243 = arith.truncf %241 : vector<8x32xf32> to vector<8x32xbf16>
      %cst_93 = arith.constant dense<0.000000e+00> : vector<8x16xf32>
      %244 = tpu.matmul %243, %242, %cst_93 {dimension_numbers = #tpu.dot_dimension_numbers<[1], [0], [0], [1], [0, 0, 1, 1], [], []>} : vector<8x32xbf16>, vector<32x16xbf16>, vector<8x16xf32> -> vector<8x16xf32>
      %c0_94 = arith.constant 0 : index
      %c0_95 = arith.constant 0 : index
      %245 = vector.load %arg16[%c0_94, %c0_95] : memref<1x16xf32, #tpu.memory_space<vmem>>, vector<1x16xf32>
      %246 = vector.broadcast %245 : vector<1x16xf32> to vector<8x16xf32>
      %247 = arith.addf %244, %246 : vector<8x16xf32>
      %c0_96 = arith.constant 0 : index
      %c0_97 = arith.constant 0 : index
      %c0_98 = arith.constant 0 : index
      %248 = vector.load %arg2[%c0_96, %c0_97, %c0_98] : memref<1x8x16xf32, #tpu.memory_space<vmem>>, vector<1x8x16xf32>
      %249 = vector.shape_cast %248 : vector<1x8x16xf32> to vector<8x16xf32>
      %250 = arith.subf %247, %249 : vector<8x16xf32>
      %251 = arith.mulf %250, %250 : vector<8x16xf32>
      %c0_99 = arith.constant 0 : index
      %c0_100 = arith.constant 0 : index
      %c0_101 = arith.constant 0 : index
      %252 = vector.load %arg3[%c0_99, %c0_100, %c0_101] : memref<1x8x1xf32, #tpu.memory_space<vmem>>, vector<1x8x1xf32>
      %253 = vector.shape_cast %252 : vector<1x8x1xf32> to vector<8x1xf32>
      %254 = vector.broadcast %253 : vector<8x1xf32> to vector<8x16xf32>
      %255 = arith.mulf %251, %254 : vector<8x16xf32>
      %256 = vector.shape_cast %255 : vector<8x16xf32> to vector<1x8x16xf32>
      %cst_102 = arith.constant dense<0.000000e+00> : vector<1xf32>
      %257 = vector.multi_reduction <add>, %256, %cst_102 [1, 2] : vector<1x8x16xf32> to vector<1xf32>
      %258 = vector.shape_cast %257 : vector<1xf32> to vector<1x1x1xf32>
      %259 = vector.extract %258[0, 0, 0] : f32 from vector<1x1x1xf32>
      %260 = vector.broadcast %259 : f32 to vector<1x1xf32>
      %c0_103 = arith.constant 0 : index
      %c0_104 = arith.constant 0 : index
      %c0_105 = arith.constant 0 : index
      %261 = vector.load %arg29[%c0_103, %c0_104, %c0_105] : memref<1x1x1xf32, #tpu.memory_space<vmem>>, vector<1x1x1xf32>
      %262 = vector.shape_cast %261 : vector<1x1x1xf32> to vector<1x1xf32>
      %263 = vector.shape_cast %260 : vector<1x1xf32> to vector<1x1x1xf32>
      tpu.vector_store %arg29[%c0_103, %c0_104, %c0_105], %263 {strides = array<i32>} : memref<1x1x1xf32, #tpu.memory_space<vmem>>, vector<1x1x1xf32>,
    } else {
    }
    return
  }
  func.func @transform_0(%arg0: i32, %arg1: i32) -> (i32, i32, i32) {
    %c0_i32 = arith.constant 0 : i32
    %c0_i32_0 = arith.constant 0 : i32
    %c0_i32_1 = arith.constant 0 : i32
    return %arg0, %c0_i32, %c0_i32_0 : i32, i32, i32
  }
  func.func @transform_1(%arg0: i32, %arg1: i32) -> (i32, i32, i32) {
    %c0_i32 = arith.constant 0 : i32
    %c0_i32_0 = arith.constant 0 : i32
    %c0_i32_1 = arith.constant 0 : i32
    return %arg0, %c0_i32, %c0_i32_0 : i32, i32, i32
  }
  func.func @transform_2(%arg0: i32, %arg1: i32) -> (i32, i32, i32) {
    %c0_i32 = arith.constant 0 : i32
    %c0_i32_0 = arith.constant 0 : i32
    %c0_i32_1 = arith.constant 0 : i32
    return %arg0, %c0_i32, %c0_i32_0 : i32, i32, i32
  }
  func.func @transform_3(%arg0: i32, %arg1: i32) -> (i32, i32, i32) {
    %c0_i32 = arith.constant 0 : i32
    %c0_i32_0 = arith.constant 0 : i32
    %c0_i32_1 = arith.constant 0 : i32
    return %arg0, %c0_i32, %c0_i32_0 : i32, i32, i32
  }
  func.func @transform_4(%arg0: i32, %arg1: i32) -> (i32, i32) {
    %c0_i32 = arith.constant 0 : i32
    %c0_i32_0 = arith.constant 0 : i32
    %c0_i32_1 = arith.constant 0 : i32
    return %c0_i32, %c0_i32_0 : i32, i32
  }
  func.func @transform_5(%arg0: i32, %arg1: i32) -> (i32, i32) {
    %c0_i32 = arith.constant 0 : i32
    %c0_i32_0 = arith.constant 0 : i32
    %c0_i32_1 = arith.constant 0 : i32
    return %c0_i32, %c0_i32_0 : i32, i32
  }
  func.func @transform_6(%arg0: i32, %arg1: i32) -> (i32, i32) {
    %c0_i32 = arith.constant 0 : i32
    %c0_i32_0 = arith.constant 0 : i32
    %c0_i32_1 = arith.constant 0 : i32
    return %c0_i32, %c0_i32_0 : i32, i32
  }
  func.func @transform_7(%arg0: i32, %arg1: i32) -> (i32, i32) {
    %c0_i32 = arith.constant 0 : i32
    %c0_i32_0 = arith.constant 0 : i32
    %c0_i32_1 = arith.constant 0 : i32
    return %c0_i32, %c0_i32_0 : i32, i32
  }
  func.func @transform_8(%arg0: i32, %arg1: i32) -> (i32, i32) {
    %c0_i32 = arith.constant 0 : i32
    %c0_i32_0 = arith.constant 0 : i32
    %c0_i32_1 = arith.constant 0 : i32
    return %c0_i32, %c0_i32_0 : i32, i32
  }
  func.func @transform_9(%arg0: i32, %arg1: i32) -> (i32, i32) {
    %c0_i32 = arith.constant 0 : i32
    %c0_i32_0 = arith.constant 0 : i32
    %c0_i32_1 = arith.constant 0 : i32
    return %c0_i32, %c0_i32_0 : i32, i32
  }
  func.func @transform_10(%arg0: i32, %arg1: i32) -> (i32, i32) {
    %c0_i32 = arith.constant 0 : i32
    %c0_i32_0 = arith.constant 0 : i32
    %c0_i32_1 = arith.constant 0 : i32
    return %c0_i32, %c0_i32_0 : i32, i32
  }
  func.func @transform_11(%arg0: i32, %arg1: i32) -> (i32, i32) {
    %c0_i32 = arith.constant 0 : i32
    %c0_i32_0 = arith.constant 0 : i32
    %c0_i32_1 = arith.constant 0 : i32
    return %c0_i32, %c0_i32_0 : i32, i32
  }
  func.func @transform_12(%arg0: i32, %arg1: i32) -> (i32, i32) {
    %c0_i32 = arith.constant 0 : i32
    %c0_i32_0 = arith.constant 0 : i32
    %c0_i32_1 = arith.constant 0 : i32
    return %c0_i32, %c0_i32_0 : i32, i32
  }
  func.func @transform_13(%arg0: i32, %arg1: i32) -> (i32, i32) {
    %c0_i32 = arith.constant 0 : i32
    %c0_i32_0 = arith.constant 0 : i32
    %c0_i32_1 = arith.constant 0 : i32
    return %c0_i32, %c0_i32_0 : i32, i32
  }
  func.func @transform_14(%arg0: i32, %arg1: i32) -> (i32, i32) {
    %c0_i32 = arith.constant 0 : i32
    %c0_i32_0 = arith.constant 0 : i32
    %c0_i32_1 = arith.constant 0 : i32
    return %c0_i32, %c0_i32_0 : i32, i32
  }
  func.func @transform_15(%arg0: i32, %arg1: i32) -> (i32, i32, i32) {
    %c0_i32 = arith.constant 0 : i32
    %c0_i32_0 = arith.constant 0 : i32
    %c0_i32_1 = arith.constant 0 : i32
    return %arg1, %c0_i32, %c0_i32_0 : i32, i32, i32
  }
  func.func @transform_16(%arg0: i32, %arg1: i32) -> (i32, i32, i32) {
    %c0_i32 = arith.constant 0 : i32
    %c0_i32_0 = arith.constant 0 : i32
    %c0_i32_1 = arith.constant 0 : i32
    return %arg1, %c0_i32, %c0_i32_0 : i32, i32, i32
  }
  func.func @transform_17(%arg0: i32, %arg1: i32) -> (i32, i32, i32) {
    %c0_i32 = arith.constant 0 : i32
    %c0_i32_0 = arith.constant 0 : i32
    %c0_i32_1 = arith.constant 0 : i32
    return %arg1, %c0_i32, %c0_i32_0 : i32, i32, i32
  }
  func.func @transform_18(%arg0: i32, %arg1: i32) -> (i32, i32, i32) {
    %c0_i32 = arith.constant 0 : i32
    %c0_i32_0 = arith.constant 0 : i32
    %c0_i32_1 = arith.constant 0 : i32
    return %arg1, %c0_i32, %c0_i32_0 : i32, i32, i32
  }
  func.func @transform_19(%arg0: i32, %arg1: i32) -> (i32, i32, i32) {
    %c0_i32 = arith.constant 0 : i32
    %c0_i32_0 = arith.constant 0 : i32
    %c0_i32_1 = arith.constant 0 : i32
    return %arg1, %c0_i32, %c0_i32_0 : i32, i32, i32
  }
  func.func @transform_20(%arg0: i32, %arg1: i32) -> (i32, i32, i32) {
    %c0_i32 = arith.constant 0 : i32
    %c0_i32_0 = arith.constant 0 : i32
    %c0_i32_1 = arith.constant 0 : i32
    return %arg1, %c0_i32, %c0_i32_0 : i32, i32, i32
  }
  func.func @transform_21(%arg0: i32, %arg1: i32) -> (i32, i32, i32) {
    %c0_i32 = arith.constant 0 : i32
    %c0_i32_0 = arith.constant 0 : i32
    %c0_i32_1 = arith.constant 0 : i32
    return %arg1, %c0_i32, %c0_i32_0 : i32, i32, i32
  }
  func.func @transform_22(%arg0: i32, %arg1: i32) -> (i32, i32, i32) {
    %c0_i32 = arith.constant 0 : i32
    %c0_i32_0 = arith.constant 0 : i32
    %c0_i32_1 = arith.constant 0 : i32
    return %arg1, %c0_i32, %c0_i32_0 : i32, i32, i32
  }
  func.func @transform_23(%arg0: i32, %arg1: i32) -> (i32, i32, i32) {
    %c0_i32 = arith.constant 0 : i32
    %c0_i32_0 = arith.constant 0 : i32
    %c0_i32_1 = arith.constant 0 : i32
    return %arg1, %c0_i32, %c0_i32_0 : i32, i32, i32
  }
  func.func @transform_24(%arg0: i32, %arg1: i32) -> (i32, i32, i32) {
    %c0_i32 = arith.constant 0 : i32
    %c0_i32_0 = arith.constant 0 : i32
    %c0_i32_1 = arith.constant 0 : i32
    return %arg1, %c0_i32, %c0_i32_0 : i32, i32, i32
  }
  func.func @transform_25(%arg0: i32, %arg1: i32) -> (i32, i32, i32) {
    %c0_i32 = arith.constant 0 : i32
    %c0_i32_0 = arith.constant 0 : i32
    %c0_i32_1 = arith.constant 0 : i32
    return %arg1, %c0_i32, %c0_i32_0 : i32, i32, i32
  }
  func.func @transform_26(%arg0: i32, %arg1: i32) -> (i32, i32, i32) {
    %c0_i32 = arith.constant 0 : i32
    %c0_i32_0 = arith.constant 0 : i32
    %c0_i32_1 = arith.constant 0 : i32
    return %arg1, %c0_i32, %c0_i32_0 : i32, i32, i32
  }
  func.func @transform_27(%arg0: i32, %arg1: i32) -> (i32, i32, i32) {
    %c0_i32 = arith.constant 0 : i32
    %c0_i32_0 = arith.constant 0 : i32
    %c0_i32_1 = arith.constant 0 : i32
    return %arg0, %c0_i32, %c0_i32_0 : i32, i32, i32
  }
}

</mosaic_0001>

<llo_original>
// kernel: forward.1
$region0: #{forward.1}
  #allocation0 [shape = 'u32[]', space=smem, size = 0x4, offset = 0x4, fixed_abs, tag = 'smem constant byte address 0x4 - core index']
  #allocation1 [shape = 'u32[144,128]{1,0:T(1,128)}', space=vmem, size = 0x12000, scoped, tag = 'internal scratch']
  #allocation2 [shape = 'f32[8,32]{1,0:T(8,128)}', space=vmem, size = 0x1000, scoped, tag = 'scratch operand']
  #allocation3 [shape = 'f32[64,32]{1,0:T(8,128)}', space=vmem, size = 0x8000, scoped, tag = 'scratch operand']
  %s0 = inlined_call_operand.vmem [shape: f32[2,8,16], index: 0, kind: input, shape index: {}]
  %s1 = inlined_call_operand.vmem [shape: f32[2,8,1], index: 1, kind: input, shape index: {}]
  %s2 = inlined_call_operand.vmem [shape: f32[2,64,8], index: 2, kind: input, shape index: {}]
  %s3 = inlined_call_operand.vmem [shape: f32[2,64,1], index: 3, kind: input, shape index: {}]
  %s4 = inlined_call_operand.vmem [shape: f32[8,16], index: 4, kind: input, shape index: {}]
  %s5 = inlined_call_operand.vmem [shape: f32[8,16], index: 5, kind: input, shape index: {}]
  %s6 = inlined_call_operand.vmem [shape: f32[16,32], index: 6, kind: input, shape index: {}]
  %s7 = inlined_call_operand.vmem [shape: f32[1,32], index: 7, kind: input, shape index: {}]
  %s8 = inlined_call_operand.vmem [shape: f32[8,32], index: 8, kind: input, shape index: {}]
  %s9 = inlined_call_operand.vmem [shape: f32[1,32], index: 9, kind: input, shape index: {}]
  %s10 = inlined_call_operand.vmem [shape: f32[2,32], index: 10, kind: input, shape index: {}]
  %s11 = inlined_call_operand.vmem [shape: bf16[32,32], index: 11, kind: input, shape index: {}]
  %s12 = inlined_call_operand.vmem [shape: f32[1,32], index: 12, kind: input, shape index: {}]
  %s13 = inlined_call_operand.vmem [shape: bf16[32,16], index: 13, kind: input, shape index: {}]
  %s14 = inlined_call_operand.vmem [shape: f32[1,16], index: 14, kind: input, shape index: {}]
  %s15 = inlined_call_operand.vmem [shape: bf16[2,32,96], index: 15, kind: input, shape index: {}]
  %s16 = inlined_call_operand.vmem [shape: f32[2,1,96], index: 16, kind: input, shape index: {}]
  %s17 = inlined_call_operand.vmem [shape: bf16[2,32,32], index: 17, kind: input, shape index: {}]
  %s18 = inlined_call_operand.vmem [shape: f32[2,1,32], index: 18, kind: input, shape index: {}]
  %s19 = inlined_call_operand.vmem [shape: bf16[2,32,32], index: 19, kind: input, shape index: {}]
  %s20 = inlined_call_operand.vmem [shape: f32[2,1,32], index: 20, kind: input, shape index: {}]
  %s21 = inlined_call_operand.vmem [shape: bf16[2,32,128], index: 21, kind: input, shape index: {}]
  %s22 = inlined_call_operand.vmem [shape: f32[2,1,128], index: 22, kind: input, shape index: {}]
  %s23 = inlined_call_operand.vmem [shape: bf16[2,128,32], index: 23, kind: input, shape index: {}]
  %s24 = inlined_call_operand.vmem [shape: f32[2,1,32], index: 24, kind: input, shape index: {}]
  %s25 = inlined_call_operand.vmem [shape: f32[2,4,32], index: 25, kind: input, shape index: {}]
  %s26 = inlined_call_operand.vmem [shape: f32[2,2,96], index: 26, kind: input, shape index: {}]
  %s27 = inlined_call_operand.vmem [shape: f32[2,1,1], index: 27, kind: output, shape index: {}]
  %s28 = sld [smem:[#allocation0]]
  $region149: #{forward.1} parent=0
    _
  %s30 = ssub.s32 1, %s28
  %s31 = scalar_select 0, %s30, %s28
  loop: start=0, step=1, limit=6
  $region2: #{forward.1} parent=0 // loop_pre_header
    _
  $region3: #{forward.1} parent=0 // loop_header
    %s33 = sphi 0, %s37
    %p34 = scmp.ge.s32.totalorder %s33, 6
    %s40 = sphi 0, %s52
    %s41 = sphi 0, %s48
    %s42 = sphi 0, %s40
    %s43 = sphi 0, %s41
    %s44 = sphi 0, %s42
    %s45 = sphi 0, %s43
    %s55 = sphi 0, %s57
    %s58 = sphi 0, %s55
    %s59 = sphi 0, %s58
    %s75 = sphi 0, %s59
    %s81 = sphi 0, %s83
    %s84 = sphi 0, %s81
    %s85 = sphi 0, %s84
    %s101 = sphi 0, %s85
    %s107 = sphi 0, %s109
    %s110 = sphi 0, %s107
    %s111 = sphi 0, %s110
    %s127 = sphi 0, %s111
    %s133 = sphi 0, %s135
    %s136 = sphi 0, %s133
    %s137 = sphi 0, %s136
    %s153 = sphi 0, %s137
    %s157 = sphi 0, %s157
    %s159 = sphi 0, %s157
    %s160 = sphi 0, %s159
    %s174 = sphi 0, %s160
    %s178 = sphi 0, %s178
    %s180 = sphi 0, %s178
    %s181 = sphi 0, %s180
    %s195 = sphi 0, %s181
    %s199 = sphi 0, %s199
    %s201 = sphi 0, %s199
    %s202 = sphi 0, %s201
    %s216 = sphi 0, %s202
    %s220 = sphi 0, %s220
    %s222 = sphi 0, %s220
    %s223 = sphi 0, %s222
    %s237 = sphi 0, %s223
    %s241 = sphi 0, %s241
    %s243 = sphi 0, %s241
    %s244 = sphi 0, %s243
    %s258 = sphi 0, %s244
    %s262 = sphi 0, %s262
    %s264 = sphi 0, %s262
    %s265 = sphi 0, %s264
    %s279 = sphi 0, %s265
    %s283 = sphi 0, %s283
    %s285 = sphi 0, %s283
    %s286 = sphi 0, %s285
    %s300 = sphi 0, %s286
    %s304 = sphi 0, %s304
    %s306 = sphi 0, %s304
    %s307 = sphi 0, %s306
    %s321 = sphi 0, %s307
    %s325 = sphi 0, %s325
    %s327 = sphi 0, %s325
    %s328 = sphi 0, %s327
    %s342 = sphi 0, %s328
    %s346 = sphi 0, %s346
    %s348 = sphi 0, %s346
    %s349 = sphi 0, %s348
    %s363 = sphi 0, %s349
    %s367 = sphi 0, %s367
    %s369 = sphi 0, %s367
    %s370 = sphi 0, %s369
    %s384 = sphi 0, %s370
    %s390 = sphi 0, %s392
    %s393 = sphi 0, %s390
    %s394 = sphi 0, %s393
    %s410 = sphi 0, %s394
    %s416 = sphi 0, %s418
    %s419 = sphi 0, %s416
    %s420 = sphi 0, %s419
    %s436 = sphi 0, %s420
    %s442 = sphi 0, %s444
    %s445 = sphi 0, %s442
    %s446 = sphi 0, %s445
    %s462 = sphi 0, %s446
    %s468 = sphi 0, %s470
    %s471 = sphi 0, %s468
    %s472 = sphi 0, %s471
    %s488 = sphi 0, %s472
    %s494 = sphi 0, %s496
    %s497 = sphi 0, %s494
    %s498 = sphi 0, %s497
    %s514 = sphi 0, %s498
    %s520 = sphi 0, %s522
    %s523 = sphi 0, %s520
    %s524 = sphi 0, %s523
    %s540 = sphi 0, %s524
    %s546 = sphi 0, %s548
    %s549 = sphi 0, %s546
    %s550 = sphi 0, %s549
    %s566 = sphi 0, %s550
    %s572 = sphi 0, %s574
    %s575 = sphi 0, %s572
    %s576 = sphi 0, %s575
    %s592 = sphi 0, %s576
    %s598 = sphi 0, %s600
    %s601 = sphi 0, %s598
    %s602 = sphi 0, %s601
    %s618 = sphi 0, %s602
    %s624 = sphi 0, %s626
    %s627 = sphi 0, %s624
    %s628 = sphi 0, %s627
    %s644 = sphi 0, %s628
    %s650 = sphi 0, %s652
    %s653 = sphi 0, %s650
    %s654 = sphi 0, %s653
    %s670 = sphi 0, %s654
    %s676 = sphi 0, %s678
    %s679 = sphi 0, %s676
    %s680 = sphi 0, %s679
    %s696 = sphi 0, %s680
    %s702 = sphi 0, %s704
    %s705 = sphi 0, %s702
    %s706 = sphi 0, %s705
    %s722 = sphi 0, %s706
  $region4: #{forward.1} parent=0 // loop_header_branch
    %36 = sbr.rel (%p34) target = $region8
  $region5: #{forward.1} parent=0 // loop_body
    %s38 = ssub.s32 %s33, 1
    %s39 = ssub.s32 %s33, 2
    %s46 = sadd.s32 1, %s41
    %p47 = scmp.ge.s32.totalorder %s46, 2
    %s48 = scalar_select %p47, 0, %s46
    %s49 = sadd.s32 1, %s40
    %s50 = scalar_select %p47, %s49, %s40
    %p51 = scmp.ge.s32.totalorder %s50, 2
    %s52 = scalar_select %p51, 0, %s50
    %s53 = ssub.s32 %s40, %s52
    %p54 = scmp.eq.s32.totalorder %s53, 0
    %s56 = sadd.s32 %s55, 1
    %s57 = scalar_select %p54, %s55, %s56
    %p60 = pneg %p54
    %p61 = scmp.eq.s32.totalorder %s33, 3
    %p62 = por %p60, %p61
    %p63 = scmp.ne.s32.totalorder %s55, %s58
    %p64 = scmp.eq.s32.totalorder %s33, 0
    %p65 = por %p63, %p64
    %p66 = scmp.ne.s32.totalorder %s55, %s58
    %p67 = scmp.eq.s32.totalorder %s38, 3
    %p68 = por %p66, %p67
    %p69 = scmp.ne.s32.totalorder %s58, %s59
    %p70 = scmp.eq.s32.totalorder %s38, 0
    %p71 = por %p69, %p70
    %p72 = scmp.ne.s32.totalorder %s58, %s59
    %p73 = scmp.eq.s32.totalorder %s39, 3
    %p74 = por %p72, %p73
    %p76 = scmp.ne.s32.totalorder %s59, %s75
    %p77 = scmp.eq.s32.totalorder %s39, 0
    %p78 = por %p76, %p77
    %s79 = ssub.s32 %s40, %s52
    %p80 = scmp.eq.s32.totalorder %s79, 0
    %s82 = sadd.s32 %s81, 1
    %s83 = scalar_select %p80, %s81, %s82
    %p86 = pneg %p80
    %p87 = scmp.eq.s32.totalorder %s33, 3
    %p88 = por %p86, %p87
    %p89 = scmp.ne.s32.totalorder %s81, %s84
    %p90 = scmp.eq.s32.totalorder %s33, 0
    %p91 = por %p89, %p90
    %p92 = scmp.ne.s32.totalorder %s81, %s84
    %p93 = scmp.eq.s32.totalorder %s38, 3
    %p94 = por %p92, %p93
    %p95 = scmp.ne.s32.totalorder %s84, %s85
    %p96 = scmp.eq.s32.totalorder %s38, 0
    %p97 = por %p95, %p96
    %p98 = scmp.ne.s32.totalorder %s84, %s85
    %p99 = scmp.eq.s32.totalorder %s39, 3
    %p100 = por %p98, %p99
    %p102 = scmp.ne.s32.totalorder %s85, %s101
    %p103 = scmp.eq.s32.totalorder %s39, 0
    %p104 = por %p102, %p103
    %s105 = ssub.s32 %s40, %s52
    %p106 = scmp.eq.s32.totalorder %s105, 0
    %s108 = sadd.s32 %s107, 1
    %s109 = scalar_select %p106, %s107, %s108
    %p112 = pneg %p106
    %p113 = scmp.eq.s32.totalorder %s33, 3
    %p114 = por %p112, %p113
    %p115 = scmp.ne.s32.totalorder %s107, %s110
    %p116 = scmp.eq.s32.totalorder %s33, 0
    %p117 = por %p115, %p116
    %p118 = scmp.ne.s32.totalorder %s107, %s110
    %p119 = scmp.eq.s32.totalorder %s38, 3
    %p120 = por %p118, %p119
    %p121 = scmp.ne.s32.totalorder %s110, %s111
    %p122 = scmp.eq.s32.totalorder %s38, 0
    %p123 = por %p121, %p122
    %p124 = scmp.ne.s32.totalorder %s110, %s111
    %p125 = scmp.eq.s32.totalorder %s39, 3
    %p126 = por %p124, %p125
    %p128 = scmp.ne.s32.totalorder %s111, %s127
    %p129 = scmp.eq.s32.totalorder %s39, 0
    %p130 = por %p128, %p129
    %s131 = ssub.s32 %s40, %s52
    %p132 = scmp.eq.s32.totalorder %s131, 0
    %s134 = sadd.s32 %s133, 1
    %s135 = scalar_select %p132, %s133, %s134
    %p138 = pneg %p132
    %p139 = scmp.eq.s32.totalorder %s33, 3
    %p140 = por %p138, %p139
    %p141 = scmp.ne.s32.totalorder %s133, %s136
    %p142 = scmp.eq.s32.totalorder %s33, 0
    %p143 = por %p141, %p142
    %p144 = scmp.ne.s32.totalorder %s133, %s136
    %p145 = scmp.eq.s32.totalorder %s38, 3
    %p146 = por %p144, %p145
    %p147 = scmp.ne.s32.totalorder %s136, %s137
    %p148 = scmp.eq.s32.totalorder %s38, 0
    %p149 = por %p147, %p148
    %p150 = scmp.ne.s32.totalorder %s136, %s137
    %p151 = scmp.eq.s32.totalorder %s39, 3
    %p152 = por %p150, %p151
    %p154 = scmp.ne.s32.totalorder %s137, %s153
    %p155 = scmp.eq.s32.totalorder %s39, 0
    %p156 = por %p154, %p155
    %s158 = sadd.s32 %s157, 1
    %p161 = scmp.eq.s32.totalorder %s33, 3
    %p162 = scmp.ne.s32.totalorder %s157, %s159
    %p163 = scmp.eq.s32.totalorder %s33, 0
    %p164 = por %p162, %p163
    %p165 = scmp.ne.s32.totalorder %s157, %s159
    %p166 = scmp.eq.s32.totalorder %s38, 3
    %p167 = por %p165, %p166
    %p168 = scmp.ne.s32.totalorder %s159, %s160
    %p169 = scmp.eq.s32.totalorder %s38, 0
    %p170 = por %p168, %p169
    %p171 = scmp.ne.s32.totalorder %s159, %s160
    %p172 = scmp.eq.s32.totalorder %s39, 3
    %p173 = por %p171, %p172
    %p175 = scmp.ne.s32.totalorder %s160, %s174
    %p176 = scmp.eq.s32.totalorder %s39, 0
    %p177 = por %p175, %p176
    %s179 = sadd.s32 %s178, 1
    %p182 = scmp.eq.s32.totalorder %s33, 3
    %p183 = scmp.ne.s32.totalorder %s178, %s180
    %p184 = scmp.eq.s32.totalorder %s33, 0
    %p185 = por %p183, %p184
    %p186 = scmp.ne.s32.totalorder %s178, %s180
    %p187 = scmp.eq.s32.totalorder %s38, 3
    %p188 = por %p186, %p187
    %p189 = scmp.ne.s32.totalorder %s180, %s181
    %p190 = scmp.eq.s32.totalorder %s38, 0
    %p191 = por %p189, %p190
    %p192 = scmp.ne.s32.totalorder %s180, %s181
    %p193 = scmp.eq.s32.totalorder %s39, 3
    %p194 = por %p192, %p193
    %p196 = scmp.ne.s32.totalorder %s181, %s195
    %p197 = scmp.eq.s32.totalorder %s39, 0
    %p198 = por %p196, %p197
    %s200 = sadd.s32 %s199, 1
    %p203 = scmp.eq.s32.totalorder %s33, 3
    %p204 = scmp.ne.s32.totalorder %s199, %s201
    %p205 = scmp.eq.s32.totalorder %s33, 0
    %p206 = por %p204, %p205
    %p207 = scmp.ne.s32.totalorder %s199, %s201
    %p208 = scmp.eq.s32.totalorder %s38, 3
    %p209 = por %p207, %p208
    %p210 = scmp.ne.s32.totalorder %s201, %s202
    %p211 = scmp.eq.s32.totalorder %s38, 0
    %p212 = por %p210, %p211
    %p213 = scmp.ne.s32.totalorder %s201, %s202
    %p214 = scmp.eq.s32.totalorder %s39, 3
    %p215 = por %p213, %p214
    %p217 = scmp.ne.s32.totalorder %s202, %s216
    %p218 = scmp.eq.s32.totalorder %s39, 0
    %p219 = por %p217, %p218
    %s221 = sadd.s32 %s220, 1
    %p224 = scmp.eq.s32.totalorder %s33, 3
    %p225 = scmp.ne.s32.totalorder %s220, %s222
    %p226 = scmp.eq.s32.totalorder %s33, 0
    %p227 = por %p225, %p226
    %p228 = scmp.ne.s32.totalorder %s220, %s222
    %p229 = scmp.eq.s32.totalorder %s38, 3
    %p230 = por %p228, %p229
    %p231 = scmp.ne.s32.totalorder %s222, %s223
    %p232 = scmp.eq.s32.totalorder %s38, 0
    %p233 = por %p231, %p232
    %p234 = scmp.ne.s32.totalorder %s222, %s223
    %p235 = scmp.eq.s32.totalorder %s39, 3
    %p236 = por %p234, %p235
    %p238 = scmp.ne.s32.totalorder %s223, %s237
    %p239 = scmp.eq.s32.totalorder %s39, 0
    %p240 = por %p238, %p239
    %s242 = sadd.s32 %s241, 1
    %p245 = scmp.eq.s32.totalorder %s33, 3
    %p246 = scmp.ne.s32.totalorder %s241, %s243
    %p247 = scmp.eq.s32.totalorder %s33, 0
    %p248 = por %p246, %p247
    %p249 = scmp.ne.s32.totalorder %s241, %s243
    %p250 = scmp.eq.s32.totalorder %s38, 3
    %p251 = por %p249, %p250
    %p252 = scmp.ne.s32.totalorder %s243, %s244
    %p253 = scmp.eq.s32.totalorder %s38, 0
    %p254 = por %p252, %p253
    %p255 = scmp.ne.s32.totalorder %s243, %s244
    %p256 = scmp.eq.s32.totalorder %s39, 3
    %p257 = por %p255, %p256
    %p259 = scmp.ne.s32.totalorder %s244, %s258
    %p260 = scmp.eq.s32.totalorder %s39, 0
    %p261 = por %p259, %p260
    %s263 = sadd.s32 %s262, 1
    %p266 = scmp.eq.s32.totalorder %s33, 3
    %p267 = scmp.ne.s32.totalorder %s262, %s264
    %p268 = scmp.eq.s32.totalorder %s33, 0
    %p269 = por %p267, %p268
    %p270 = scmp.ne.s32.totalorder %s262, %s264
    %p271 = scmp.eq.s32.totalorder %s38, 3
    %p272 = por %p270, %p271
    %p273 = scmp.ne.s32.totalorder %s264, %s265
    %p274 = scmp.eq.s32.totalorder %s38, 0
    %p275 = por %p273, %p274
    %p276 = scmp.ne.s32.totalorder %s264, %s265
    %p277 = scmp.eq.s32.totalorder %s39, 3
    %p278 = por %p276, %p277
    %p280 = scmp.ne.s32.totalorder %s265, %s279
    %p281 = scmp.eq.s32.totalorder %s39, 0
    %p282 = por %p280, %p281
    %s284 = sadd.s32 %s283, 1
    %p287 = scmp.eq.s32.totalorder %s33, 3
    %p288 = scmp.ne.s32.totalorder %s283, %s285
    %p289 = scmp.eq.s32.totalorder %s33, 0
    %p290 = por %p288, %p289
    %p291 = scmp.ne.s32.totalorder %s283, %s285
    %p292 = scmp.eq.s32.totalorder %s38, 3
    %p293 = por %p291, %p292
    %p294 = scmp.ne.s32.totalorder %s285, %s286
    %p295 = scmp.eq.s32.totalorder %s38, 0
    %p296 = por %p294, %p295
    %p297 = scmp.ne.s32.totalorder %s285, %s286
    %p298 = scmp.eq.s32.totalorder %s39, 3
    %p299 = por %p297, %p298
    %p301 = scmp.ne.s32.totalorder %s286, %s300
    %p302 = scmp.eq.s32.totalorder %s39, 0
    %p303 = por %p301, %p302
    %s305 = sadd.s32 %s304, 1
    %p308 = scmp.eq.s32.totalorder %s33, 3
    %p309 = scmp.ne.s32.totalorder %s304, %s306
    %p310 = scmp.eq.s32.totalorder %s33, 0
    %p311 = por %p309, %p310
    %p312 = scmp.ne.s32.totalorder %s304, %s306
    %p313 = scmp.eq.s32.totalorder %s38, 3
    %p314 = por %p312, %p313
    %p315 = scmp.ne.s32.totalorder %s306, %s307
    %p316 = scmp.eq.s32.totalorder %s38, 0
    %p317 = por %p315, %p316
    %p318 = scmp.ne.s32.totalorder %s306, %s307
    %p319 = scmp.eq.s32.totalorder %s39, 3
    %p320 = por %p318, %p319
    %p322 = scmp.ne.s32.totalorder %s307, %s321
    %p323 = scmp.eq.s32.totalorder %s39, 0
    %p324 = por %p322, %p323
    %s326 = sadd.s32 %s325, 1
    %p329 = scmp.eq.s32.totalorder %s33, 3
    %p330 = scmp.ne.s32.totalorder %s325, %s327
    %p331 = scmp.eq.s32.totalorder %s33, 0
    %p332 = por %p330, %p331
    %p333 = scmp.ne.s32.totalorder %s325, %s327
    %p334 = scmp.eq.s32.totalorder %s38, 3
    %p335 = por %p333, %p334
    %p336 = scmp.ne.s32.totalorder %s327, %s328
    %p337 = scmp.eq.s32.totalorder %s38, 0
    %p338 = por %p336, %p337
    %p339 = scmp.ne.s32.totalorder %s327, %s328
    %p340 = scmp.eq.s32.totalorder %s39, 3
    %p341 = por %p339, %p340
    %p343 = scmp.ne.s32.totalorder %s328, %s342
    %p344 = scmp.eq.s32.totalorder %s39, 0
    %p345 = por %p343, %p344
    %s347 = sadd.s32 %s346, 1
    %p350 = scmp.eq.s32.totalorder %s33, 3
    %p351 = scmp.ne.s32.totalorder %s346, %s348
    %p352 = scmp.eq.s32.totalorder %s33, 0
    %p353 = por %p351, %p352
    %p354 = scmp.ne.s32.totalorder %s346, %s348
    %p355 = scmp.eq.s32.totalorder %s38, 3
    %p356 = por %p354, %p355
    %p357 = scmp.ne.s32.totalorder %s348, %s349
    %p358 = scmp.eq.s32.totalorder %s38, 0
    %p359 = por %p357, %p358
    %p360 = scmp.ne.s32.totalorder %s348, %s349
    %p361 = scmp.eq.s32.totalorder %s39, 3
    %p362 = por %p360, %p361
    %p364 = scmp.ne.s32.totalorder %s349, %s363
    %p365 = scmp.eq.s32.totalorder %s39, 0
    %p366 = por %p364, %p365
    %s368 = sadd.s32 %s367, 1
    %p371 = scmp.eq.s32.totalorder %s33, 3
    %p372 = scmp.ne.s32.totalorder %s367, %s369
    %p373 = scmp.eq.s32.totalorder %s33, 0
    %p374 = por %p372, %p373
    %p375 = scmp.ne.s32.totalorder %s367, %s369
    %p376 = scmp.eq.s32.totalorder %s38, 3
    %p377 = por %p375, %p376
    %p378 = scmp.ne.s32.totalorder %s369, %s370
    %p379 = scmp.eq.s32.totalorder %s38, 0
    %p380 = por %p378, %p379
    %p381 = scmp.ne.s32.totalorder %s369, %s370
    %p382 = scmp.eq.s32.totalorder %s39, 3
    %p383 = por %p381, %p382
    %p385 = scmp.ne.s32.totalorder %s370, %s384
    %p386 = scmp.eq.s32.totalorder %s39, 0
    %p387 = por %p385, %p386
    %s388 = ssub.s32 %s41, %s48
    %p389 = scmp.eq.s32.totalorder %s388, 0
    %s391 = sadd.s32 %s390, 1
    %s392 = scalar_select %p389, %s390, %s391
    %p395 = pneg %p389
    %p396 = scmp.eq.s32.totalorder %s33, 3
    %p397 = por %p395, %p396
    %p398 = scmp.ne.s32.totalorder %s390, %s393
    %p399 = scmp.eq.s32.totalorder %s33, 0
    %p400 = por %p398, %p399
    %p401 = scmp.ne.s32.totalorder %s390, %s393
    %p402 = scmp.eq.s32.totalorder %s38, 3
    %p403 = por %p401, %p402
    %p404 = scmp.ne.s32.totalorder %s393, %s394
    %p405 = scmp.eq.s32.totalorder %s38, 0
    %p406 = por %p404, %p405
    %p407 = scmp.ne.s32.totalorder %s393, %s394
    %p408 = scmp.eq.s32.totalorder %s39, 3
    %p409 = por %p407, %p408
    %p411 = scmp.ne.s32.totalorder %s394, %s410
    %p412 = scmp.eq.s32.totalorder %s39, 0
    %p413 = por %p411, %p412
    %s414 = ssub.s32 %s41, %s48
    %p415 = scmp.eq.s32.totalorder %s414, 0
    %s417 = sadd.s32 %s416, 1
    %s418 = scalar_select %p415, %s416, %s417
    %p421 = pneg %p415
    %p422 = scmp.eq.s32.totalorder %s33, 3
    %p423 = por %p421, %p422
    %p424 = scmp.ne.s32.totalorder %s416, %s419
    %p425 = scmp.eq.s32.totalorder %s33, 0
    %p426 = por %p424, %p425
    %p427 = scmp.ne.s32.totalorder %s416, %s419
    %p428 = scmp.eq.s32.totalorder %s38, 3
    %p429 = por %p427, %p428
    %p430 = scmp.ne.s32.totalorder %s419, %s420
    %p431 = scmp.eq.s32.totalorder %s38, 0
    %p432 = por %p430, %p431
    %p433 = scmp.ne.s32.totalorder %s419, %s420
    %p434 = scmp.eq.s32.totalorder %s39, 3
    %p435 = por %p433, %p434
    %p437 = scmp.ne.s32.totalorder %s420, %s436
    %p438 = scmp.eq.s32.totalorder %s39, 0
    %p439 = por %p437, %p438
    %s440 = ssub.s32 %s41, %s48
    %p441 = scmp.eq.s32.totalorder %s440, 0
    %s443 = sadd.s32 %s442, 1
    %s444 = scalar_select %p441, %s442, %s443
    %p447 = pneg %p441
    %p448 = scmp.eq.s32.totalorder %s33, 3
    %p449 = por %p447, %p448
    %p450 = scmp.ne.s32.totalorder %s442, %s445
    %p451 = scmp.eq.s32.totalorder %s33, 0
    %p452 = por %p450, %p451
    %p453 = scmp.ne.s32.totalorder %s442, %s445
    %p454 = scmp.eq.s32.totalorder %s38, 3
    %p455 = por %p453, %p454
    %p456 = scmp.ne.s32.totalorder %s445, %s446
    %p457 = scmp.eq.s32.totalorder %s38, 0
    %p458 = por %p456, %p457
    %p459 = scmp.ne.s32.totalorder %s445, %s446
    %p460 = scmp.eq.s32.totalorder %s39, 3
    %p461 = por %p459, %p460
    %p463 = scmp.ne.s32.totalorder %s446, %s462
    %p464 = scmp.eq.s32.totalorder %s39, 0
    %p465 = por %p463, %p464
    %s466 = ssub.s32 %s41, %s48
    %p467 = scmp.eq.s32.totalorder %s466, 0
    %s469 = sadd.s32 %s468, 1
    %s470 = scalar_select %p467, %s468, %s469
    %p473 = pneg %p467
    %p474 = scmp.eq.s32.totalorder %s33, 3
    %p475 = por %p473, %p474
    %p476 = scmp.ne.s32.totalorder %s468, %s471
    %p477 = scmp.eq.s32.totalorder %s33, 0
    %p478 = por %p476, %p477
    %p479 = scmp.ne.s32.totalorder %s468, %s471
    %p480 = scmp.eq.s32.totalorder %s38, 3
    %p481 = por %p479, %p480
    %p482 = scmp.ne.s32.totalorder %s471, %s472
    %p483 = scmp.eq.s32.totalorder %s38, 0
    %p484 = por %p482, %p483
    %p485 = scmp.ne.s32.totalorder %s471, %s472
    %p486 = scmp.eq.s32.totalorder %s39, 3
    %p487 = por %p485, %p486
    %p489 = scmp.ne.s32.totalorder %s472, %s488
    %p490 = scmp.eq.s32.totalorder %s39, 0
    %p491 = por %p489, %p490
    %s492 = ssub.s32 %s41, %s48
    %p493 = scmp.eq.s32.totalorder %s492, 0
    %s495 = sadd.s32 %s494, 1
    %s496 = scalar_select %p493, %s494, %s495
    %p499 = pneg %p493
    %p500 = scmp.eq.s32.totalorder %s33, 3
    %p501 = por %p499, %p500
    %p502 = scmp.ne.s32.totalorder %s494, %s497
    %p503 = scmp.eq.s32.totalorder %s33, 0
    %p504 = por %p502, %p503
    %p505 = scmp.ne.s32.totalorder %s494, %s497
    %p506 = scmp.eq.s32.totalorder %s38, 3
    %p507 = por %p505, %p506
    %p508 = scmp.ne.s32.totalorder %s497, %s498
    %p509 = scmp.eq.s32.totalorder %s38, 0
    %p510 = por %p508, %p509
    %p511 = scmp.ne.s32.totalorder %s497, %s498
    %p512 = scmp.eq.s32.totalorder %s39, 3
    %p513 = por %p511, %p512
    %p515 = scmp.ne.s32.totalorder %s498, %s514
    %p516 = scmp.eq.s32.totalorder %s39, 0
    %p517 = por %p515, %p516
    %s518 = ssub.s32 %s41, %s48
    %p519 = scmp.eq.s32.totalorder %s518, 0
    %s521 = sadd.s32 %s520, 1
    %s522 = scalar_select %p519, %s520, %s521
    %p525 = pneg %p519
    %p526 = scmp.eq.s32.totalorder %s33, 3
    %p527 = por %p525, %p526
    %p528 = scmp.ne.s32.totalorder %s520, %s523
    %p529 = scmp.eq.s32.totalorder %s33, 0
    %p530 = por %p528, %p529
    %p531 = scmp.ne.s32.totalorder %s520, %s523
    %p532 = scmp.eq.s32.totalorder %s38, 3
    %p533 = por %p531, %p532
    %p534 = scmp.ne.s32.totalorder %s523, %s524
    %p535 = scmp.eq.s32.totalorder %s38, 0
    %p536 = por %p534, %p535
    %p537 = scmp.ne.s32.totalorder %s523, %s524
    %p538 = scmp.eq.s32.totalorder %s39, 3
    %p539 = por %p537, %p538
    %p541 = scmp.ne.s32.totalorder %s524, %s540
    %p542 = scmp.eq.s32.totalorder %s39, 0
    %p543 = por %p541, %p542
    %s544 = ssub.s32 %s41, %s48
    %p545 = scmp.eq.s32.totalorder %s544, 0
    %s547 = sadd.s32 %s546, 1
    %s548 = scalar_select %p545, %s546, %s547
    %p551 = pneg %p545
    %p552 = scmp.eq.s32.totalorder %s33, 3
    %p553 = por %p551, %p552
    %p554 = scmp.ne.s32.totalorder %s546, %s549
    %p555 = scmp.eq.s32.totalorder %s33, 0
    %p556 = por %p554, %p555
    %p557 = scmp.ne.s32.totalorder %s546, %s549
    %p558 = scmp.eq.s32.totalorder %s38, 3
    %p559 = por %p557, %p558
    %p560 = scmp.ne.s32.totalorder %s549, %s550
    %p561 = scmp.eq.s32.totalorder %s38, 0
    %p562 = por %p560, %p561
    %p563 = scmp.ne.s32.totalorder %s549, %s550
    %p564 = scmp.eq.s32.totalorder %s39, 3
    %p565 = por %p563, %p564
    %p567 = scmp.ne.s32.totalorder %s550, %s566
    %p568 = scmp.eq.s32.totalorder %s39, 0
    %p569 = por %p567, %p568
    %s570 = ssub.s32 %s41, %s48
    %p571 = scmp.eq.s32.totalorder %s570, 0
    %s573 = sadd.s32 %s572, 1
    %s574 = scalar_select %p571, %s572, %s573
    %p577 = pneg %p571
    %p578 = scmp.eq.s32.totalorder %s33, 3
    %p579 = por %p577, %p578
    %p580 = scmp.ne.s32.totalorder %s572, %s575
    %p581 = scmp.eq.s32.totalorder %s33, 0
    %p582 = por %p580, %p581
    %p583 = scmp.ne.s32.totalorder %s572, %s575
    %p584 = scmp.eq.s32.totalorder %s38, 3
    %p585 = por %p583, %p584
    %p586 = scmp.ne.s32.totalorder %s575, %s576
    %p587 = scmp.eq.s32.totalorder %s38, 0
    %p588 = por %p586, %p587
    %p589 = scmp.ne.s32.totalorder %s575, %s576
    %p590 = scmp.eq.s32.totalorder %s39, 3
    %p591 = por %p589, %p590
    %p593 = scmp.ne.s32.totalorder %s576, %s592
    %p594 = scmp.eq.s32.totalorder %s39, 0
    %p595 = por %p593, %p594
    %s596 = ssub.s32 %s41, %s48
    %p597 = scmp.eq.s32.totalorder %s596, 0
    %s599 = sadd.s32 %s598, 1
    %s600 = scalar_select %p597, %s598, %s599
    %p603 = pneg %p597
    %p604 = scmp.eq.s32.totalorder %s33, 3
    %p605 = por %p603, %p604
    %p606 = scmp.ne.s32.totalorder %s598, %s601
    %p607 = scmp.eq.s32.totalorder %s33, 0
    %p608 = por %p606, %p607
    %p609 = scmp.ne.s32.totalorder %s598, %s601
    %p610 = scmp.eq.s32.totalorder %s38, 3
    %p611 = por %p609, %p610
    %p612 = scmp.ne.s32.totalorder %s601, %s602
    %p613 = scmp.eq.s32.totalorder %s38, 0
    %p614 = por %p612, %p613
    %p615 = scmp.ne.s32.totalorder %s601, %s602
    %p616 = scmp.eq.s32.totalorder %s39, 3
    %p617 = por %p615, %p616
    %p619 = scmp.ne.s32.totalorder %s602, %s618
    %p620 = scmp.eq.s32.totalorder %s39, 0
    %p621 = por %p619, %p620
    %s622 = ssub.s32 %s41, %s48
    %p623 = scmp.eq.s32.totalorder %s622, 0
    %s625 = sadd.s32 %s624, 1
    %s626 = scalar_select %p623, %s624, %s625
    %p629 = pneg %p623
    %p630 = scmp.eq.s32.totalorder %s33, 3
    %p631 = por %p629, %p630
    %p632 = scmp.ne.s32.totalorder %s624, %s627
    %p633 = scmp.eq.s32.totalorder %s33, 0
    %p634 = por %p632, %p633
    %p635 = scmp.ne.s32.totalorder %s624, %s627
    %p636 = scmp.eq.s32.totalorder %s38, 3
    %p637 = por %p635, %p636
    %p638 = scmp.ne.s32.totalorder %s627, %s628
    %p639 = scmp.eq.s32.totalorder %s38, 0
    %p640 = por %p638, %p639
    %p641 = scmp.ne.s32.totalorder %s627, %s628
    %p642 = scmp.eq.s32.totalorder %s39, 3
    %p643 = por %p641, %p642
    %p645 = scmp.ne.s32.totalorder %s628, %s644
    %p646 = scmp.eq.s32.totalorder %s39, 0
    %p647 = por %p645, %p646
    %s648 = ssub.s32 %s41, %s48
    %p649 = scmp.eq.s32.totalorder %s648, 0
    %s651 = sadd.s32 %s650, 1
    %s652 = scalar_select %p649, %s650, %s651
    %p655 = pneg %p649
    %p656 = scmp.eq.s32.totalorder %s33, 3
    %p657 = por %p655, %p656
    %p658 = scmp.ne.s32.totalorder %s650, %s653
    %p659 = scmp.eq.s32.totalorder %s33, 0
    %p660 = por %p658, %p659
    %p661 = scmp.ne.s32.totalorder %s650, %s653
    %p662 = scmp.eq.s32.totalorder %s38, 3
    %p663 = por %p661, %p662
    %p664 = scmp.ne.s32.totalorder %s653, %s654
    %p665 = scmp.eq.s32.totalorder %s38, 0
    %p666 = por %p664, %p665
    %p667 = scmp.ne.s32.totalorder %s653, %s654
    %p668 = scmp.eq.s32.totalorder %s39, 3
    %p669 = por %p667, %p668
    %p671 = scmp.ne.s32.totalorder %s654, %s670
    %p672 = scmp.eq.s32.totalorder %s39, 0
    %p673 = por %p671, %p672
    %s674 = ssub.s32 %s41, %s48
    %p675 = scmp.eq.s32.totalorder %s674, 0
    %s677 = sadd.s32 %s676, 1
    %s678 = scalar_select %p675, %s676, %s677
    %p681 = pneg %p675
    %p682 = scmp.eq.s32.totalorder %s33, 3
    %p683 = por %p681, %p682
    %p684 = scmp.ne.s32.totalorder %s676, %s679
    %p685 = scmp.eq.s32.totalorder %s33, 0
    %p686 = por %p684, %p685
    %p687 = scmp.ne.s32.totalorder %s676, %s679
    %p688 = scmp.eq.s32.totalorder %s38, 3
    %p689 = por %p687, %p688
    %p690 = scmp.ne.s32.totalorder %s679, %s680
    %p691 = scmp.eq.s32.totalorder %s38, 0
    %p692 = por %p690, %p691
    %p693 = scmp.ne.s32.totalorder %s679, %s680
    %p694 = scmp.eq.s32.totalorder %s39, 3
    %p695 = por %p693, %p694
    %p697 = scmp.ne.s32.totalorder %s680, %s696
    %p698 = scmp.eq.s32.totalorder %s39, 0
    %p699 = por %p697, %p698
    %s700 = ssub.s32 %s40, %s52
    %p701 = scmp.eq.s32.totalorder %s700, 0
    %s703 = sadd.s32 %s702, 1
    %s704 = scalar_select %p701, %s702, %s703
    %p707 = pneg %p701
    %p708 = scmp.eq.s32.totalorder %s33, 3
    %p709 = por %p707, %p708
    %p710 = scmp.ne.s32.totalorder %s702, %s705
    %p711 = scmp.eq.s32.totalorder %s33, 0
    %p712 = por %p710, %p711
    %p713 = scmp.ne.s32.totalorder %s702, %s705
    %p714 = scmp.eq.s32.totalorder %s38, 3
    %p715 = por %p713, %p714
    %p716 = scmp.ne.s32.totalorder %s705, %s706
    %p717 = scmp.eq.s32.totalorder %s38, 0
    %p718 = por %p716, %p717
    %p719 = scmp.ne.s32.totalorder %s705, %s706
    %p720 = scmp.eq.s32.totalorder %s39, 3
    %p721 = por %p719, %p720
    %p723 = scmp.ne.s32.totalorder %s706, %s722
    %p724 = scmp.eq.s32.totalorder %s39, 0
    %p725 = por %p723, %p724
    %p726 = scmp.le.s32.totalorder 1, %s33
    %p727 = scmp.lt.s32.totalorder %s33, 5
    %p728 = pnand %p726, %p727
    %p729 = pneg %p728
    // Predicated region
    $region9: #{forward.1} parent=5 // pred_check
      _
    $region10: #{forward.1} parent=5 // pred_check_branch
      %731 = sbr.rel (%p728) target = $region12
    $region11: #{forward.1} parent=5 // pred_region
      %s732 = ssub.s32 %s33, 1
      // Predicated region
      $region13: #{forward.1} parent=11 // pred_check
        %p733 = pneg %p170
      $region14: #{forward.1} parent=11 // pred_check_branch
        %735 = sbr.rel (%p733) target = $region16
      $region15: #{forward.1} parent=11 // pred_region
        _
      $region16: #{forward.1} parent=11 // pred_fallthru
        _
      // Predicated region
      $region17: #{forward.1} parent=11 // pred_check
        %p736 = pneg %p191
      $region18: #{forward.1} parent=11 // pred_check_branch
        %738 = sbr.rel (%p736) target = $region20
      $region19: #{forward.1} parent=11 // pred_region
        _
      $region20: #{forward.1} parent=11 // pred_fallthru
        _
      // Predicated region
      $region21: #{forward.1} parent=11 // pred_check
        %p739 = pneg %p212
      $region22: #{forward.1} parent=11 // pred_check_branch
        %741 = sbr.rel (%p739) target = $region24
      $region23: #{forward.1} parent=11 // pred_region
        _
      $region24: #{forward.1} parent=11 // pred_fallthru
        _
      // Predicated region
      $region25: #{forward.1} parent=11 // pred_check
        %p742 = pneg %p233
      $region26: #{forward.1} parent=11 // pred_check_branch
        %744 = sbr.rel (%p742) target = $region28
      $region27: #{forward.1} parent=11 // pred_region
        _
      $region28: #{forward.1} parent=11 // pred_fallthru
        _
      // Predicated region
      $region29: #{forward.1} parent=11 // pred_check
        %p745 = pneg %p254
      $region30: #{forward.1} parent=11 // pred_check_branch
        %747 = sbr.rel (%p745) target = $region32
      $region31: #{forward.1} parent=11 // pred_region
        _
      $region32: #{forward.1} parent=11 // pred_fallthru
        _
      // Predicated region
      $region33: #{forward.1} parent=11 // pred_check
        %p748 = pneg %p275
      $region34: #{forward.1} parent=11 // pred_check_branch
        %750 = sbr.rel (%p748) target = $region36
      $region35: #{forward.1} parent=11 // pred_region
        _
      $region36: #{forward.1} parent=11 // pred_fallthru
        _
      // Predicated region
      $region37: #{forward.1} parent=11 // pred_check
        %p751 = pneg %p296
      $region38: #{forward.1} parent=11 // pred_check_branch
        %753 = sbr.rel (%p751) target = $region40
      $region39: #{forward.1} parent=11 // pred_region
        _
      $region40: #{forward.1} parent=11 // pred_fallthru
        _
      // Predicated region
      $region41: #{forward.1} parent=11 // pred_check
        %p754 = pneg %p317
      $region42: #{forward.1} parent=11 // pred_check_branch
        %756 = sbr.rel (%p754) target = $region44
      $region43: #{forward.1} parent=11 // pred_region
        _
      $region44: #{forward.1} parent=11 // pred_fallthru
        _
      // Predicated region
      $region45: #{forward.1} parent=11 // pred_check
        %p757 = pneg %p338
      $region46: #{forward.1} parent=11 // pred_check_branch
        %759 = sbr.rel (%p757) target = $region48
      $region47: #{forward.1} parent=11 // pred_region
        _
      $region48: #{forward.1} parent=11 // pred_fallthru
        _
      // Predicated region
      $region49: #{forward.1} parent=11 // pred_check
        %p760 = pneg %p359
      $region50: #{forward.1} parent=11 // pred_check_branch
        %762 = sbr.rel (%p760) target = $region52
      $region51: #{forward.1} parent=11 // pred_region
        _
      $region52: #{forward.1} parent=11 // pred_fallthru
        _
      // Predicated region
      $region53: #{forward.1} parent=11 // pred_check
        %p763 = pneg %p380
      $region54: #{forward.1} parent=11 // pred_check_branch
        %765 = sbr.rel (%p763) target = $region56
      $region55: #{forward.1} parent=11 // pred_region
        _
      $region56: #{forward.1} parent=11 // pred_fallthru
        _
    $region12: #{forward.1} parent=5 // pred_fallthru
      _
    %p766 = scmp.lt.s32.totalorder %s33, 4
    // Predicated region
    $region57: #{forward.1} parent=5 // pred_check
      %p767 = pneg %p766
    $region58: #{forward.1} parent=5 // pred_check_branch
      %769 = sbr.rel (%p767) target = $region60
    $region59: #{forward.1} parent=5 // pred_region
      // Predicated region
      $region61: #{forward.1} parent=59 // pred_check
        %p770 = pneg %p65
      $region62: #{forward.1} parent=59 // pred_check_branch
        %772 = sbr.rel (%p770) target = $region64
      $region63: #{forward.1} parent=59 // pred_region
        %p773 = scmp.lt.s32.totalorder %s40, 1
        %s774 = scalar_select %p773, %s40, 1
        %s775 = smul.addr %s774, 8
        %s776 = scalar_lea.vmem %s0, %s775
      $region64: #{forward.1} parent=59 // pred_fallthru
        _
      // Predicated region
      $region65: #{forward.1} parent=59 // pred_check
        %p777 = pneg %p91
      $region66: #{forward.1} parent=59 // pred_check_branch
        %779 = sbr.rel (%p777) target = $region68
      $region67: #{forward.1} parent=59 // pred_region
        %p780 = scmp.lt.s32.totalorder %s40, 1
        %s781 = scalar_select %p780, %s40, 1
        %s782 = smul.addr %s781, 8
        %s783 = scalar_lea.vmem %s1, %s782
      $region68: #{forward.1} parent=59 // pred_fallthru
        _
      // Predicated region
      $region69: #{forward.1} parent=59 // pred_check
        %p784 = pneg %p117
      $region70: #{forward.1} parent=59 // pred_check_branch
        %786 = sbr.rel (%p784) target = $region72
      $region71: #{forward.1} parent=59 // pred_region
        %p787 = scmp.lt.s32.totalorder %s40, 1
        %s788 = scalar_select %p787, %s40, 1
        %s789 = smul.addr %s788, 8
        %s790 = smul.addr %s789, 8
        %s791 = scalar_lea.vmem %s2, %s790
      $region72: #{forward.1} parent=59 // pred_fallthru
        _
      // Predicated region
      $region73: #{forward.1} parent=59 // pred_check
        %p792 = pneg %p143
      $region74: #{forward.1} parent=59 // pred_check_branch
        %794 = sbr.rel (%p792) target = $region76
      $region75: #{forward.1} parent=59 // pred_region
        %p795 = scmp.lt.s32.totalorder %s40, 1
        %s796 = scalar_select %p795, %s40, 1
        %s797 = smul.addr %s796, 8
        %s798 = smul.addr %s797, 8
        %s799 = scalar_lea.vmem %s3, %s798
      $region76: #{forward.1} parent=59 // pred_fallthru
        _
      // Predicated region
      $region77: #{forward.1} parent=59 // pred_check
        %p800 = pneg %p400
      $region78: #{forward.1} parent=59 // pred_check_branch
        %802 = sbr.rel (%p800) target = $region80
      $region79: #{forward.1} parent=59 // pred_region
        %p803 = scmp.lt.s32.totalorder %s41, 1
        %s804 = scalar_select %p803, %s41, 1
        %s805 = smul.addr %s804, 4
        %s806 = smul.addr %s805, 4
        %s807 = scalar_lea.vmem %s15, %s806
      $region80: #{forward.1} parent=59 // pred_fallthru
        _
      // Predicated region
      $region81: #{forward.1} parent=59 // pred_check
        %p808 = pneg %p426
      $region82: #{forward.1} parent=59 // pred_check_branch
        %810 = sbr.rel (%p808) target = $region84
      $region83: #{forward.1} parent=59 // pred_region
        %p811 = scmp.lt.s32.totalorder %s41, 1
        %s812 = scalar_select %p811, %s41, 1
        %s813 = scalar_lea.vmem %s16, %s812
      $region84: #{forward.1} parent=59 // pred_fallthru
        _
      // Predicated region
      $region85: #{forward.1} parent=59 // pred_check
        %p814 = pneg %p452
      $region86: #{forward.1} parent=59 // pred_check_branch
        %816 = sbr.rel (%p814) target = $region88
      $region87: #{forward.1} parent=59 // pred_region
        %p817 = scmp.lt.s32.totalorder %s41, 1
        %s818 = scalar_select %p817, %s41, 1
        %s819 = smul.addr %s818, 4
        %s820 = smul.addr %s819, 4
        %s821 = scalar_lea.vmem %s17, %s820
      $region88: #{forward.1} parent=59 // pred_fallthru
        _
      // Predicated region
      $region89: #{forward.1} parent=59 // pred_check
        %p822 = pneg %p478
      $region90: #{forward.1} parent=59 // pred_check_branch
        %824 = sbr.rel (%p822) target = $region92
      $region91: #{forward.1} parent=59 // pred_region
        %p825 = scmp.lt.s32.totalorder %s41, 1
        %s826 = scalar_select %p825, %s41, 1
        %s827 = scalar_lea.vmem %s18, %s826
      $region92: #{forward.1} parent=59 // pred_fallthru
        _
      // Predicated region
      $region93: #{forward.1} parent=59 // pred_check
        %p828 = pneg %p504
      $region94: #{forward.1} parent=59 // pred_check_branch
        %830 = sbr.rel (%p828) target = $region96
      $region95: #{forward.1} parent=59 // pred_region
        %p831 = scmp.lt.s32.totalorder %s41, 1
        %s832 = scalar_select %p831, %s41, 1
        %s833 = smul.addr %s832, 4
        %s834 = smul.addr %s833, 4
        %s835 = scalar_lea.vmem %s19, %s834
      $region96: #{forward.1} parent=59 // pred_fallthru
        _
      // Predicated region
      $region97: #{forward.1} parent=59 // pred_check
        %p836 = pneg %p530
      $region98: #{forward.1} parent=59 // pred_check_branch
        %838 = sbr.rel (%p836) target = $region100
      $region99: #{forward.1} parent=59 // pred_region
        %p839 = scmp.lt.s32.totalorder %s41, 1
        %s840 = scalar_select %p839, %s41, 1
        %s841 = scalar_lea.vmem %s20, %s840
      $region100: #{forward.1} parent=59 // pred_fallthru
        _
      // Predicated region
      $region101: #{forward.1} parent=59 // pred_check
        %p842 = pneg %p556
      $region102: #{forward.1} parent=59 // pred_check_branch
        %844 = sbr.rel (%p842) target = $region104
      $region103: #{forward.1} parent=59 // pred_region
        %p845 = scmp.lt.s32.totalorder %s41, 1
        %s846 = scalar_select %p845, %s41, 1
        %s847 = smul.addr %s846, 4
        %s848 = smul.addr %s847, 4
        %s849 = scalar_lea.vmem %s21, %s848
      $region104: #{forward.1} parent=59 // pred_fallthru
        _
      // Predicated region
      $region105: #{forward.1} parent=59 // pred_check
        %p850 = pneg %p582
      $region106: #{forward.1} parent=59 // pred_check_branch
        %852 = sbr.rel (%p850) target = $region108
      $region107: #{forward.1} parent=59 // pred_region
        %p853 = scmp.lt.s32.totalorder %s41, 1
        %s854 = scalar_select %p853, %s41, 1
        %s855 = scalar_lea.vmem %s22, %s854
      $region108: #{forward.1} parent=59 // pred_fallthru
        _
      // Predicated region
      $region109: #{forward.1} parent=59 // pred_check
        %p856 = pneg %p608
      $region110: #{forward.1} parent=59 // pred_check_branch
        %858 = sbr.rel (%p856) target = $region112
      $region111: #{forward.1} parent=59 // pred_region
        %p859 = scmp.lt.s32.totalorder %s41, 1
        %s860 = scalar_select %p859, %s41, 1
        %s861 = smul.addr %s860, 16
        %s862 = smul.addr %s861, 4
        %s863 = scalar_lea.vmem %s23, %s862
      $region112: #{forward.1} parent=59 // pred_fallthru
        _
      // Predicated region
      $region113: #{forward.1} parent=59 // pred_check
        %p864 = pneg %p634
      $region114: #{forward.1} parent=59 // pred_check_branch
        %866 = sbr.rel (%p864) target = $region116
      $region115: #{forward.1} parent=59 // pred_region
        %p867 = scmp.lt.s32.totalorder %s41, 1
        %s868 = scalar_select %p867, %s41, 1
        %s869 = scalar_lea.vmem %s24, %s868
      $region116: #{forward.1} parent=59 // pred_fallthru
        _
      // Predicated region
      $region117: #{forward.1} parent=59 // pred_check
        %p870 = pneg %p660
      $region118: #{forward.1} parent=59 // pred_check_branch
        %872 = sbr.rel (%p870) target = $region120
      $region119: #{forward.1} parent=59 // pred_region
        %p873 = scmp.lt.s32.totalorder %s41, 1
        %s874 = scalar_select %p873, %s41, 1
        %s875 = smul.addr %s874, 4
        %s876 = scalar_lea.vmem %s25, %s875
      $region120: #{forward.1} parent=59 // pred_fallthru
        _
      // Predicated region
      $region121: #{forward.1} parent=59 // pred_check
        %p877 = pneg %p686
      $region122: #{forward.1} parent=59 // pred_check_branch
        %879 = sbr.rel (%p877) target = $region124
      $region123: #{forward.1} parent=59 // pred_region
        %p880 = scmp.lt.s32.totalorder %s41, 1
        %s881 = scalar_select %p880, %s41, 1
        %s882 = smul.addr %s881, 2
        %s883 = scalar_lea.vmem %s26, %s882
      $region124: #{forward.1} parent=59 // pred_fallthru
        _
    $region60: #{forward.1} parent=5 // pred_fallthru
      _
    %p884 = scmp.le.s32.totalorder 1, %s33
    %p885 = scmp.lt.s32.totalorder %s33, 5
    %p886 = pnand %p884, %p885
    %p887 = pneg %p886
    // Predicated region
    $region125: #{forward.1} parent=5 // pred_check
      _
    $region126: #{forward.1} parent=5 // pred_check_branch
      %889 = sbr.rel (%p886) target = $region128
    $region127: #{forward.1} parent=5 // pred_region
      %s890 = ssub.s32 %s33, 1
      %p891 = scmp.lt.s32.totalorder %s42, 1
      %s892 = scalar_select %p891, %s42, 1
      %s893 = smul.addr %s892, 8
      %s894 = scalar_lea.vmem %s0, %s893
      %p895 = pneg %p71
      %p896 = pneg %p68
      %p897 = scmp.lt.s32.totalorder %s42, 1
      %s898 = scalar_select %p897, %s42, 1
      %s899 = smul.addr %s898, 8
      %s900 = scalar_lea.vmem %s1, %s899
      %p901 = pneg %p97
      %p902 = pneg %p94
      %p903 = scmp.lt.s32.totalorder %s42, 1
      %s904 = scalar_select %p903, %s42, 1
      %s905 = smul.addr %s904, 8
      %s906 = smul.addr %s905, 8
      %s907 = scalar_lea.vmem %s2, %s906
      %p908 = pneg %p123
      %p909 = pneg %p120
      %p910 = scmp.lt.s32.totalorder %s42, 1
      %s911 = scalar_select %p910, %s42, 1
      %s912 = smul.addr %s911, 8
      %s913 = smul.addr %s912, 8
      %s914 = scalar_lea.vmem %s3, %s913
      %p915 = pneg %p149
      %p916 = pneg %p146
      %p917 = pneg %p170
      %p918 = pneg %p167
      %p919 = pneg %p191
      %p920 = pneg %p188
      %p921 = pneg %p212
      %p922 = pneg %p209
      %p923 = pneg %p233
      %p924 = pneg %p230
      %p925 = pneg %p254
      %p926 = pneg %p251
      %p927 = pneg %p275
      %p928 = pneg %p272
      %p929 = pneg %p296
      %p930 = pneg %p293
      %p931 = pneg %p317
      %p932 = pneg %p314
      %p933 = pneg %p338
      %p934 = pneg %p335
      %p935 = pneg %p359
      %p936 = pneg %p356
      %p937 = pneg %p380
      %p938 = pneg %p377
      %p939 = scmp.lt.s32.totalorder %s43, 1
      %s940 = scalar_select %p939, %s43, 1
      %s941 = smul.addr %s940, 4
      %s942 = smul.addr %s941, 4
      %s943 = scalar_lea.vmem %s15, %s942
      %p944 = pneg %p406
      %p945 = pneg %p403
      %p946 = scmp.lt.s32.totalorder %s43, 1
      %s947 = scalar_select %p946, %s43, 1
      %s948 = scalar_lea.vmem %s16, %s947
      %p949 = pneg %p432
      %p950 = pneg %p429
      %p951 = scmp.lt.s32.totalorder %s43, 1
      %s952 = scalar_select %p951, %s43, 1
      %s953 = smul.addr %s952, 4
      %s954 = smul.addr %s953, 4
      %s955 = scalar_lea.vmem %s17, %s954
      %p956 = pneg %p458
      %p957 = pneg %p455
      %p958 = scmp.lt.s32.totalorder %s43, 1
      %s959 = scalar_select %p958, %s43, 1
      %s960 = scalar_lea.vmem %s18, %s959
      %p961 = pneg %p484
      %p962 = pneg %p481
      %p963 = scmp.lt.s32.totalorder %s43, 1
      %s964 = scalar_select %p963, %s43, 1
      %s965 = smul.addr %s964, 4
      %s966 = smul.addr %s965, 4
      %s967 = scalar_lea.vmem %s19, %s966
      %p968 = pneg %p510
      %p969 = pneg %p507
      %p970 = scmp.lt.s32.totalorder %s43, 1
      %s971 = scalar_select %p970, %s43, 1
      %s972 = scalar_lea.vmem %s20, %s971
      %p973 = pneg %p536
      %p974 = pneg %p533
      %p975 = scmp.lt.s32.totalorder %s43, 1
      %s976 = scalar_select %p975, %s43, 1
      %s977 = smul.addr %s976, 4
      %s978 = smul.addr %s977, 4
      %s979 = scalar_lea.vmem %s21, %s978
      %p980 = pneg %p562
      %p981 = pneg %p559
      %p982 = scmp.lt.s32.totalorder %s43, 1
      %s983 = scalar_select %p982, %s43, 1
      %s984 = scalar_lea.vmem %s22, %s983
      %p985 = pneg %p588
      %p986 = pneg %p585
      %p987 = scmp.lt.s32.totalorder %s43, 1
      %s988 = scalar_select %p987, %s43, 1
      %s989 = smul.addr %s988, 16
      %s990 = smul.addr %s989, 4
      %s991 = scalar_lea.vmem %s23, %s990
      %p992 = pneg %p614
      %p993 = pneg %p611
      %p994 = scmp.lt.s32.totalorder %s43, 1
      %s995 = scalar_select %p994, %s43, 1
      %s996 = scalar_lea.vmem %s24, %s995
      %p997 = pneg %p640
      %p998 = pneg %p637
      %p999 = scmp.lt.s32.totalorder %s43, 1
      %s1000 = scalar_select %p999, %s43, 1
      %s1001 = smul.addr %s1000, 4
      %s1002 = scalar_lea.vmem %s25, %s1001
      %p1003 = pneg %p666
      %p1004 = pneg %p663
      %p1005 = scmp.lt.s32.totalorder %s43, 1
      %s1006 = scalar_select %p1005, %s43, 1
      %s1007 = smul.addr %s1006, 2
      %s1008 = scalar_lea.vmem %s26, %s1007
      %p1009 = pneg %p692
      %p1010 = pneg %p689
      %p1011 = pneg %p718
      %p1012 = pneg %p715
      %p1013 = scmp.lt.s32.totalorder %s42, 1
      %s1014 = scalar_select %p1013, %s42, 1
      %s1015 = scalar_lea.vmem %s27, %s1014
      %p1016 = scmp.lt.s32.totalorder %s42, 1
      %s1017 = scalar_select %p1016, %s42, 1
      %s1018 = smul.addr %s1017, 8
      %s1019 = scalar_lea.vmem %s0, %s1018
      %p1020 = scmp.lt.s32.totalorder %s42, 1
      %s1021 = scalar_select %p1020, %s42, 1
      %s1022 = smul.addr %s1021, 8
      %s1023 = scalar_lea.vmem %s1, %s1022
      %p1024 = scmp.lt.s32.totalorder %s42, 1
      %s1025 = scalar_select %p1024, %s42, 1
      %s1026 = smul.addr %s1025, 8
      %s1027 = smul.addr %s1026, 8
      %s1028 = scalar_lea.vmem %s2, %s1027
      %p1029 = scmp.lt.s32.totalorder %s42, 1
      %s1030 = scalar_select %p1029, %s42, 1
      %s1031 = smul.addr %s1030, 8
      %s1032 = smul.addr %s1031, 8
      %s1033 = scalar_lea.vmem %s3, %s1032
      %p1034 = scmp.lt.s32.totalorder %s43, 1
      %s1035 = scalar_select %p1034, %s43, 1
      %s1036 = smul.addr %s1035, 4
      %s1037 = smul.addr %s1036, 4
      %s1038 = scalar_lea.vmem %s15, %s1037
      %p1039 = scmp.lt.s32.totalorder %s43, 1
      %s1040 = scalar_select %p1039, %s43, 1
      %s1041 = scalar_lea.vmem %s16, %s1040
      %p1042 = scmp.lt.s32.totalorder %s43, 1
      %s1043 = scalar_select %p1042, %s43, 1
      %s1044 = smul.addr %s1043, 4
      %s1045 = smul.addr %s1044, 4
      %s1046 = scalar_lea.vmem %s17, %s1045
      %p1047 = scmp.lt.s32.totalorder %s43, 1
      %s1048 = scalar_select %p1047, %s43, 1
      %s1049 = scalar_lea.vmem %s18, %s1048
      %p1050 = scmp.lt.s32.totalorder %s43, 1
      %s1051 = scalar_select %p1050, %s43, 1
      %s1052 = smul.addr %s1051, 4
      %s1053 = smul.addr %s1052, 4
      %s1054 = scalar_lea.vmem %s19, %s1053
      %p1055 = scmp.lt.s32.totalorder %s43, 1
      %s1056 = scalar_select %p1055, %s43, 1
      %s1057 = scalar_lea.vmem %s20, %s1056
      %p1058 = scmp.lt.s32.totalorder %s43, 1
      %s1059 = scalar_select %p1058, %s43, 1
      %s1060 = smul.addr %s1059, 4
      %s1061 = smul.addr %s1060, 4
      %s1062 = scalar_lea.vmem %s21, %s1061
      %p1063 = scmp.lt.s32.totalorder %s43, 1
      %s1064 = scalar_select %p1063, %s43, 1
      %s1065 = scalar_lea.vmem %s22, %s1064
      %p1066 = scmp.lt.s32.totalorder %s43, 1
      %s1067 = scalar_select %p1066, %s43, 1
      %s1068 = smul.addr %s1067, 16
      %s1069 = smul.addr %s1068, 4
      %s1070 = scalar_lea.vmem %s23, %s1069
      %p1071 = scmp.lt.s32.totalorder %s43, 1
      %s1072 = scalar_select %p1071, %s43, 1
      %s1073 = scalar_lea.vmem %s24, %s1072
      %p1074 = scmp.lt.s32.totalorder %s43, 1
      %s1075 = scalar_select %p1074, %s43, 1
      %s1076 = smul.addr %s1075, 4
      %s1077 = scalar_lea.vmem %s25, %s1076
      %p1078 = scmp.lt.s32.totalorder %s43, 1
      %s1079 = scalar_select %p1078, %s43, 1
      %s1080 = smul.addr %s1079, 2
      %s1081 = scalar_lea.vmem %s26, %s1080
      %p1082 = scmp.lt.s32.totalorder %s42, 1
      %s1083 = scalar_select %p1082, %s42, 1
      %s1084 = scalar_lea.vmem %s27, %s1083
      %p1086 = scmp.eq.s32.totalorder %s43, 0
      // Predicated region
      $region129: #{forward.1} parent=127 // pred_check
        %p1087 = pneg %p1086
      $region130: #{forward.1} parent=127 // pred_check_branch
        %1089 = sbr.rel (%p1087) target = $region132
      $region131: #{forward.1} parent=127 // pred_region
        %v1090 = vld [vmem:[%s1019] sm:$0xff]
        %v1091 = vld [vmem:[%s1023] sm:$0xff]
        %v1092 = vsub.f32 1.0, %v1091
        %1094 = vset.pattern.permute.xlu0 0
        %1095 = vperm.xlu0 %1094, %v1092
        %v1096 = vpop.permute.xlu0 %1095
        %v1098 = vmul.f32 %v1090, %v1096
        %v1099 = vld [vmem:[%s6] sm:$0xff]
        %v1100 = vld [vmem:[%s6 + $0x8] sm:$0xff]
        %v1101 = vld [vmem:[%s7] sm:$0x1]
        %v1103 = vlaneseq
        %v1104 = vshrl.u32 %v1103, 7
        %v1105 = vsub.s32 0, %v1104
        %v1106 = vrot.slane %v1101, %v1105
        %vm1108 = vcmask 130048
        %v1110 = vsel %vm1108, %v1098, 0
        %1112 = vmatprep.subr.mxu0 0.0
        %1113 = vmatpush1.msra.mxu0 %v1099
        %1114 = vmatprep.subr.mxu0 0.0
        %1115 = vmatpush1.msra.mxu0 %v1100
        %1116 = vmatprep.subr.mxu0 0.0
        %1117 = vmatpush1.msra.mxu0 0.0
        %1118 = vmatprep.subr.mxu0 0.0
        %1119 = vmatpush1.msra.mxu0 0.0
        %1120 = vmatprep.subr.mxu0 0.0
        %1121 = vmatpush1.msra.mxu0 0.0
        %1122 = vmatprep.subr.mxu0 0.0
        %1123 = vmatpush1.msra.mxu0 0.0
        %1124 = vmatprep.subr.mxu0 0.0
        %1125 = vmatpush1.msra.mxu0 0.0
        %1126 = vmatprep.subr.mxu0 0.0
        %1127 = vmatpush1.msra.mxu0 0.0
        %1128 = vmatprep.subr.mxu0 0.0
        %1129 = vmatpush1.msra.mxu0 0.0
        %1130 = vmatprep.subr.mxu0 0.0
        %1131 = vmatpush1.msra.mxu0 0.0
        %1132 = vmatprep.subr.mxu0 0.0
        %1133 = vmatpush1.msra.mxu0 0.0
        %1134 = vmatprep.subr.mxu0 0.0
        %1135 = vmatpush1.msra.mxu0 0.0
        %1136 = vmatprep.subr.mxu0 0.0
        %1137 = vmatpush1.msra.mxu0 0.0
        %1138 = vmatprep.subr.mxu0 0.0
        %1139 = vmatpush1.msra.mxu0 0.0
        %1140 = vmatprep.subr.mxu0 0.0
        %1141 = vmatpush1.msra.mxu0 0.0
        %1142 = vmatprep.subr.mxu0 0.0
        %1143 = vmatpush1.msra.mxu0 0.0
        %1144 = vmatprep.subr.mxu0 0.0
        %1145 = vmatpush1.msra.mxu0 0.0
        %1146 = vmatprep.subr.mxu0 0.0
        %1147 = vmatpush1.msra.mxu0 0.0
        %1148 = vmatprep.subr.mxu0 0.0
        %1149 = vmatpush1.msra.mxu0 0.0
        %1150 = vmatprep.subr.mxu0 0.0
        %1151 = vmatpush1.msra.mxu0 0.0
        %1152 = vmatprep.subr.mxu0 0.0
        %1153 = vmatpush1.msra.mxu0 0.0
        %1154 = vmatprep.subr.mxu0 0.0
        %1155 = vmatpush1.msra.mxu0 0.0
        %1156 = vmatprep.subr.mxu0 0.0
        %1157 = vmatpush1.msra.mxu0 0.0
        %1158 = vmatprep.subr.mxu0 0.0
        %1159 = vmatpush1.msra.mxu0 0.0
        %1160 = vmatprep.subr.mxu0 0.0
        %1161 = vmatpush1.msra.mxu0 0.0
        %1162 = vmatprep.subr.mxu0 0.0
        %1163 = vmatpush1.msra.mxu0 0.0
        %1164 = vmatprep.subr.mxu0 0.0
        %1165 = vmatpush1.msra.mxu0 0.0
        %1166 = vmatprep.subr.mxu0 0.0
        %1167 = vmatpush1.msra.mxu0 0.0
        %1168 = vmatprep.subr.mxu0 0.0
        %1169 = vmatpush1.msra.mxu0 0.0
        %1170 = vmatprep.subr.mxu0 0.0
        %1171 = vmatpush1.msra.mxu0 0.0
        %1172 = vmatprep.subr.mxu0 0.0
        %1173 = vmatpush1.msra.mxu0 0.0
        %1174 = vmatprep.subr.mxu0 0.0
        %1175 = vmatpush1.msra.mxu0 0.0
        %1176 = vmatprep.mubr.f32.mxu0 0.0
        %1177 = vmatmul.mubr.f32.gmra.mrb[0].mxu0 %v1110
        %v1178 = vpop.f32.mrb[0].mxu0
        %v1179 = vadd.f32 %v1106, %v1178
        %v1180 = vpop.f32.mrb[0].mxu0
        %1181 = vdwg.mxu0
        %vm1182 = vcmask 261120
        %1183 = vst.msk [vmem:[#allocation2] sm:$0xff] %vm1182, %v1179
        %v1184 = vld [vmem:[%s1028] sm:$0xff]
        %v1185 = vld [vmem:[%s1028 + $0x8] sm:$0xff]
        %v1186 = vld [vmem:[%s1028 + $0x10] sm:$0xff]
        %v1187 = vld [vmem:[%s1028 + $0x18] sm:$0xff]
        %v1188 = vld [vmem:[%s1028 + $0x20] sm:$0xff]
        %v1189 = vld [vmem:[%s1028 + $0x28] sm:$0xff]
        %v1190 = vld [vmem:[%s1028 + $0x30] sm:$0xff]
        %v1191 = vld [vmem:[%s1028 + $0x38] sm:$0xff]
        %v1192 = vld [vmem:[%s8] sm:$0xff]
        %v1193 = vld [vmem:[%s9] sm:$0x1]
        %v1195 = vlaneseq
        %v1196 = vshrl.u32 %v1195, 7
        %v1197 = vsub.s32 0, %v1196
        %v1198 = vrot.slane %v1193, %v1197
        %vm1200 = vcmask 64512
        %v1202 = vsel %vm1200, %v1184, 0
        %v1205 = vsel %vm1200, %v1185, 0
        %v1208 = vsel %vm1200, %v1186, 0
        %v1211 = vsel %vm1200, %v1187, 0
        %v1214 = vsel %vm1200, %v1188, 0
        %v1217 = vsel %vm1200, %v1189, 0
        %v1220 = vsel %vm1200, %v1190, 0
        %v1223 = vsel %vm1200, %v1191, 0
        %1225 = vmatprep.subr.mxu0 0.0
        %1226 = vmatpush1.msra.mxu0 %v1192
        %1227 = vmatprep.subr.mxu0 0.0
        %1228 = vmatpush1.msra.mxu0 0.0
        %1229 = vmatprep.subr.mxu0 0.0
        %1230 = vmatpush1.msra.mxu0 0.0
        %1231 = vmatprep.subr.mxu0 0.0
        %1232 = vmatpush1.msra.mxu0 0.0
        %1233 = vmatprep.subr.mxu0 0.0
        %1234 = vmatpush1.msra.mxu0 0.0
        %1235 = vmatprep.subr.mxu0 0.0
        %1236 = vmatpush1.msra.mxu0 0.0
        %1237 = vmatprep.subr.mxu0 0.0
        %1238 = vmatpush1.msra.mxu0 0.0
        %1239 = vmatprep.subr.mxu0 0.0
        %1240 = vmatpush1.msra.mxu0 0.0
        %1241 = vmatprep.subr.mxu0 0.0
        %1242 = vmatpush1.msra.mxu0 0.0
        %1243 = vmatprep.subr.mxu0 0.0
        %1244 = vmatpush1.msra.mxu0 0.0
        %1245 = vmatprep.subr.mxu0 0.0
        %1246 = vmatpush1.msra.mxu0 0.0
        %1247 = vmatprep.subr.mxu0 0.0
        %1248 = vmatpush1.msra.mxu0 0.0
        %1249 = vmatprep.subr.mxu0 0.0
        %1250 = vmatpush1.msra.mxu0 0.0
        %1251 = vmatprep.subr.mxu0 0.0
        %1252 = vmatpush1.msra.mxu0 0.0
        %1253 = vmatprep.subr.mxu0 0.0
        %1254 = vmatpush1.msra.mxu0 0.0
        %1255 = vmatprep.subr.mxu0 0.0
        %1256 = vmatpush1.msra.mxu0 0.0
        %1257 = vmatprep.subr.mxu0 0.0
        %1258 = vmatpush1.msra.mxu0 0.0
        %1259 = vmatprep.subr.mxu0 0.0
        %1260 = vmatpush1.msra.mxu0 0.0
        %1261 = vmatprep.subr.mxu0 0.0
        %1262 = vmatpush1.msra.mxu0 0.0
        %1263 = vmatprep.subr.mxu0 0.0
        %1264 = vmatpush1.msra.mxu0 0.0
        %1265 = vmatprep.subr.mxu0 0.0
        %1266 = vmatpush1.msra.mxu0 0.0
        %1267 = vmatprep.subr.mxu0 0.0
        %1268 = vmatpush1.msra.mxu0 0.0
        %1269 = vmatprep.subr.mxu0 0.0
        %1270 = vmatpush1.msra.mxu0 0.0
        %1271 = vmatprep.subr.mxu0 0.0
        %1272 = vmatpush1.msra.mxu0 0.0
        %1273 = vmatprep.subr.mxu0 0.0
        %1274 = vmatpush1.msra.mxu0 0.0
        %1275 = vmatprep.subr.mxu0 0.0
        %1276 = vmatpush1.msra.mxu0 0.0
        %1277 = vmatprep.subr.mxu0 0.0
        %1278 = vmatpush1.msra.mxu0 0.0
        %1279 = vmatprep.subr.mxu0 0.0
        %1280 = vmatpush1.msra.mxu0 0.0
        %1281 = vmatprep.subr.mxu0 0.0
        %1282 = vmatpush1.msra.mxu0 0.0
        %1283 = vmatprep.subr.mxu0 0.0
        %1284 = vmatpush1.msra.mxu0 0.0
        %1285 = vmatprep.subr.mxu0 0.0
        %1286 = vmatpush1.msra.mxu0 0.0
        %1287 = vmatprep.subr.mxu0 0.0
        %1288 = vmatpush1.msra.mxu0 0.0
        %1289 = vmatprep.mubr.f32.mxu0 0.0
        %1290 = vmatmul.mubr.f32.gmra.mrb[0].mxu0 %v1202
        %v1291 = vpop.f32.mrb[0].mxu0
        %v1292 = vadd.f32 %v1198, %v1291
        %v1293 = vpop.f32.mrb[0].mxu0
        %1294 = vmatprep.mubr.f32.mxu0 0.0
        %1295 = vmatmul.mubr.f32.gmra.mrb[0].mxu0 %v1205
        %v1296 = vpop.f32.mrb[0].mxu0
        %v1297 = vadd.f32 %v1198, %v1296
        %v1298 = vpop.f32.mrb[0].mxu0
        %1299 = vmatprep.mubr.f32.mxu0 0.0
        %1300 = vmatmul.mubr.f32.gmra.mrb[0].mxu0 %v1208
        %v1301 = vpop.f32.mrb[0].mxu0
        %v1302 = vadd.f32 %v1198, %v1301
        %v1303 = vpop.f32.mrb[0].mxu0
        %1304 = vmatprep.mubr.f32.mxu0 0.0
        %1305 = vmatmul.mubr.f32.gmra.mrb[0].mxu0 %v1211
        %v1306 = vpop.f32.mrb[0].mxu0
        %v1307 = vadd.f32 %v1198, %v1306
        %v1308 = vpop.f32.mrb[0].mxu0
        %1309 = vmatprep.mubr.f32.mxu0 0.0
        %1310 = vmatmul.mubr.f32.gmra.mrb[0].mxu0 %v1214
        %v1311 = vpop.f32.mrb[0].mxu0
        %v1312 = vadd.f32 %v1198, %v1311
        %v1313 = vpop.f32.mrb[0].mxu0
        %1314 = vmatprep.mubr.f32.mxu0 0.0
        %1315 = vmatmul.mubr.f32.gmra.mrb[0].mxu0 %v1217
        %v1316 = vpop.f32.mrb[0].mxu0
        %v1317 = vadd.f32 %v1198, %v1316
        %v1318 = vpop.f32.mrb[0].mxu0
        %1319 = vmatprep.mubr.f32.mxu0 0.0
        %1320 = vmatmul.mubr.f32.gmra.mrb[0].mxu0 %v1220
        %v1321 = vpop.f32.mrb[0].mxu0
        %v1322 = vadd.f32 %v1198, %v1321
        %v1323 = vpop.f32.mrb[0].mxu0
        %1324 = vmatprep.mubr.f32.mxu0 0.0
        %1325 = vmatmul.mubr.f32.gmra.mrb[0].mxu0 %v1223
        %v1326 = vpop.f32.mrb[0].mxu0
        %v1327 = vadd.f32 %v1198, %v1326
        %v1328 = vpop.f32.mrb[0].mxu0
        %1329 = vdwg.mxu0
        %v1330 = vld [vmem:[%s1033] sm:$0xff]
        %v1331 = vld [vmem:[%s1033 + $0x8] sm:$0xff]
        %v1332 = vld [vmem:[%s1033 + $0x10] sm:$0xff]
        %v1333 = vld [vmem:[%s1033 + $0x18] sm:$0xff]
        %v1334 = vld [vmem:[%s1033 + $0x20] sm:$0xff]
        %v1335 = vld [vmem:[%s1033 + $0x28] sm:$0xff]
        %v1336 = vld [vmem:[%s1033 + $0x30] sm:$0xff]
        %v1337 = vld [vmem:[%s1033 + $0x38] sm:$0xff]
        %v1338 = vld [vmem:[%s10] sm:$0x3]
        %1340 = vset.pattern.permute.xlu0 0
        %1341 = vperm.xlu0 %1340, %v1330
        %v1342 = vpop.permute.xlu0 %1341
        %1345 = vset.pattern.permute.xlu0 0
        %1346 = vperm.xlu0 %1345, %v1331
        %v1347 = vpop.permute.xlu0 %1346
        %1350 = vset.pattern.permute.xlu0 0
        %1351 = vperm.xlu0 %1350, %v1332
        %v1352 = vpop.permute.xlu0 %1351
        %1355 = vset.pattern.permute.xlu0 0
        %1356 = vperm.xlu0 %1355, %v1333
        %v1357 = vpop.permute.xlu0 %1356
        %1360 = vset.pattern.permute.xlu0 0
        %1361 = vperm.xlu0 %1360, %v1334
        %v1362 = vpop.permute.xlu0 %1361
        %1365 = vset.pattern.permute.xlu0 0
        %1366 = vperm.xlu0 %1365, %v1335
        %v1367 = vpop.permute.xlu0 %1366
        %1370 = vset.pattern.permute.xlu0 0
        %1371 = vperm.xlu0 %1370, %v1336
        %v1372 = vpop.permute.xlu0 %1371
        %1375 = vset.pattern.permute.xlu0 0
        %1376 = vperm.xlu0 %1375, %v1337
        %v1377 = vpop.permute.xlu0 %1376
        %v1379 = vmul.f32 %v1292, %v1342
        %v1380 = vmul.f32 %v1297, %v1347
        %v1381 = vmul.f32 %v1302, %v1352
        %v1382 = vmul.f32 %v1307, %v1357
        %v1383 = vmul.f32 %v1312, %v1362
        %v1384 = vmul.f32 %v1317, %v1367
        %v1385 = vmul.f32 %v1322, %v1372
        %v1386 = vmul.f32 %v1327, %v1377
        %v1387 = vlaneseq
        %v1388 = vshrl.u32 %v1387, 7
        %v1389 = vsub.s32 1, %v1388
        %v1390 = vrot.slane %v1338, %v1389
        %v1391 = vmul.f32 %v1342, %v1390
        %v1392 = vmul.f32 %v1347, %v1390
        %v1393 = vmul.f32 %v1352, %v1390
        %v1394 = vmul.f32 %v1357, %v1390
        %v1395 = vmul.f32 %v1362, %v1390
        %v1396 = vmul.f32 %v1367, %v1390
        %v1397 = vmul.f32 %v1372, %v1390
        %v1398 = vmul.f32 %v1377, %v1390
        %v1399 = vadd.f32 %v1379, %v1391
        %v1400 = vadd.f32 %v1380, %v1392
        %v1401 = vadd.f32 %v1381, %v1393
        %v1402 = vadd.f32 %v1382, %v1394
        %v1403 = vadd.f32 %v1383, %v1395
        %v1404 = vadd.f32 %v1384, %v1396
        %v1405 = vadd.f32 %v1385, %v1397
        %v1406 = vadd.f32 %v1386, %v1398
        %v1407 = vsub.f32 1.0, %v1330
        %v1408 = vsub.f32 1.0, %v1331
        %v1409 = vsub.f32 1.0, %v1332
        %v1410 = vsub.f32 1.0, %v1333
        %v1411 = vsub.f32 1.0, %v1334
        %v1412 = vsub.f32 1.0, %v1335
        %v1413 = vsub.f32 1.0, %v1336
        %v1414 = vsub.f32 1.0, %v1337
        %1416 = vset.pattern.permute.xlu0 0
        %1417 = vperm.xlu0 %1416, %v1407
        %v1418 = vpop.permute.xlu0 %1417
        %1421 = vset.pattern.permute.xlu0 0
        %1422 = vperm.xlu0 %1421, %v1408
        %v1423 = vpop.permute.xlu0 %1422
        %1426 = vset.pattern.permute.xlu0 0
        %1427 = vperm.xlu0 %1426, %v1409
        %v1428 = vpop.permute.xlu0 %1427
        %1431 = vset.pattern.permute.xlu0 0
        %1432 = vperm.xlu0 %1431, %v1410
        %v1433 = vpop.permute.xlu0 %1432
        %1436 = vset.pattern.permute.xlu0 0
        %1437 = vperm.xlu0 %1436, %v1411
        %v1438 = vpop.permute.xlu0 %1437
        %1441 = vset.pattern.permute.xlu0 0
        %1442 = vperm.xlu0 %1441, %v1412
        %v1443 = vpop.permute.xlu0 %1442
        %1446 = vset.pattern.permute.xlu0 0
        %1447 = vperm.xlu0 %1446, %v1413
        %v1448 = vpop.permute.xlu0 %1447
        %1451 = vset.pattern.permute.xlu0 0
        %1452 = vperm.xlu0 %1451, %v1414
        %v1453 = vpop.permute.xlu0 %1452
        %v1455 = vlaneseq
        %v1456 = vshrl.u32 %v1455, 7
        %v1457 = vsub.s32 0, %v1456
        %v1458 = vrot.slane %v1338, %v1457
        %v1459 = vmul.f32 %v1418, %v1458
        %v1460 = vmul.f32 %v1423, %v1458
        %v1461 = vmul.f32 %v1428, %v1458
        %v1462 = vmul.f32 %v1433, %v1458
        %v1463 = vmul.f32 %v1438, %v1458
        %v1464 = vmul.f32 %v1443, %v1458
        %v1465 = vmul.f32 %v1448, %v1458
        %v1466 = vmul.f32 %v1453, %v1458
        %v1467 = vadd.f32 %v1399, %v1459
        %v1468 = vadd.f32 %v1400, %v1460
        %v1469 = vadd.f32 %v1401, %v1461
        %v1470 = vadd.f32 %v1402, %v1462
        %v1471 = vadd.f32 %v1403, %v1463
        %v1472 = vadd.f32 %v1404, %v1464
        %v1473 = vadd.f32 %v1405, %v1465
        %v1474 = vadd.f32 %v1406, %v1466
        %1475 = vst.msk [vmem:[#allocation3] sm:$0xff] %vm1182, %v1467
        %1476 = vst.msk [vmem:[#allocation3 + $0x8] sm:$0xff] %vm1182, %v1468
        %1477 = vst.msk [vmem:[#allocation3 + $0x10] sm:$0xff] %vm1182, %v1469
        %1478 = vst.msk [vmem:[#allocation3 + $0x18] sm:$0xff] %vm1182, %v1470
        %1479 = vst.msk [vmem:[#allocation3 + $0x20] sm:$0xff] %vm1182, %v1471
        %1480 = vst.msk [vmem:[#allocation3 + $0x28] sm:$0xff] %vm1182, %v1472
        %1481 = vst.msk [vmem:[#allocation3 + $0x30] sm:$0xff] %vm1182, %v1473
        %1482 = vst.msk [vmem:[#allocation3 + $0x38] sm:$0xff] %vm1182, %v1474
      $region132: #{forward.1} parent=127 // pred_fallthru
        _
      %v1483 = vld [vmem:[#allocation2] sm:$0xff]
      %v1484 = vld [vmem:[%s1077] sm:$0xf]
      %v1485 = vld [vmem:[%s1081] sm:$0x3]
      %v1486 = vld [vmem:[%s4] sm:$0xff]
      %v1487 = vld [vmem:[%s5] sm:$0xff]
      %vm1488 = vcmask 261120
      %v1489 = vsel %vm1488, %v1483, 0.0
      %1490 = vadd.xlane.f32.xlu0 %v1489
      %v1491 = vpop.xlane.xlu0 %1490
      %v1492 = vrcp.pop 32.0
      %v1493 = vmul.f32 %v1491, %v1492
      %v1494 = vsub.f32 %v1483, %v1493
      %v1495 = vmul.f32 %v1494, %v1494
      %v1496 = vsel %vm1488, %v1495, 0.0
      %1497 = vadd.xlane.f32.xlu0 %v1496
      %v1498 = vpop.xlane.xlu0 %1497
      %v1499 = vmul.f32 %v1498, %v1492
      %v1500 = vadd.f32 %v1499, 1e-05
      %v1501 = vrsqrt.pop %v1500
      %v1502 = vmul.f32 %v1494, %v1501
      %v1503 = vlaneseq
      %v1504 = vshrl.u32 %v1503, 7
      %v1505 = vsub.s32 0, %v1504
      %v1506 = vrot.slane %v1484, %v1505
      %v1507 = vmul.f32 %v1502, %v1506
      %v1508 = vlaneseq
      %v1509 = vshrl.u32 %v1508, 7
      %v1510 = vsub.s32 1, %v1509
      %v1511 = vrot.slane %v1484, %v1510
      %v1512 = vadd.f32 %v1507, %v1511
      %v1513 = vld [vmem:[%s1038] sm:$0xf]
      %v1514 = vld [vmem:[%s1038 + $0x4] sm:$0xf]
      %v1515 = vld [vmem:[%s1038 + $0x8] sm:$0xf]
      %v1516 = vld [vmem:[%s1038 + $0xc] sm:$0xf]
      %v1517 = vpack.c.bf16 %v1512, %v1512
      %v1518 = vld [vmem:[%s1041] sm:$0x1]
      %v1520 = vlaneseq
      %v1521 = vshrl.u32 %v1520, 7
      %v1522 = vsub.s32 0, %v1521
      %v1523 = vrot.slane %v1518, %v1522
      %v1529 = vunpack.c.l.b16 %v1513
      %v1530 = vunpack.c.l.b16 %v1514
      %v1531 = vunpack.c.l.b16 %v1515
      %v1532 = vunpack.c.l.b16 %v1516
      %v1533 = vpack.c.b16 %v1530, %v1529
      %v1534 = vpack.c.b16 %v1532, %v1531
      %v1538 = vsel %vm1488, %v1517, 0
      %1540 = vmatprep.subr.bf16.mxu0 0
      %1541 = vmatpush1.bf16.msra.mxu0 %v1533
      %1542 = vmatprep.subr.bf16.mxu0 0
      %1543 = vmatpush1.bf16.msra.mxu0 %v1534
      %1544 = vmatprep.subr.bf16.mxu0 0
      %1545 = vmatpush1.bf16.msra.mxu0 0
      %1546 = vmatprep.subr.bf16.mxu0 0
      %1547 = vmatpush1.bf16.msra.mxu0 0
      %1548 = vmatprep.subr.bf16.mxu0 0
      %1549 = vmatpush1.bf16.msra.mxu0 0
      %1550 = vmatprep.subr.bf16.mxu0 0
      %1551 = vmatpush1.bf16.msra.mxu0 0
      %1552 = vmatprep.subr.bf16.mxu0 0
      %1553 = vmatpush1.bf16.msra.mxu0 0
      %1554 = vmatprep.subr.bf16.mxu0 0
      %1555 = vmatpush1.bf16.msra.mxu0 0
      %1556 = vmatprep.subr.bf16.mxu0 0
      %1557 = vmatpush1.bf16.msra.mxu0 0
      %1558 = vmatprep.subr.bf16.mxu0 0
      %1559 = vmatpush1.bf16.msra.mxu0 0
      %1560 = vmatprep.subr.bf16.mxu0 0
      %1561 = vmatpush1.bf16.msra.mxu0 0
      %1562 = vmatprep.subr.bf16.mxu0 0
      %1563 = vmatpush1.bf16.msra.mxu0 0
      %1564 = vmatprep.subr.bf16.mxu0 0
      %1565 = vmatpush1.bf16.msra.mxu0 0
      %1566 = vmatprep.subr.bf16.mxu0 0
      %1567 = vmatpush1.bf16.msra.mxu0 0
      %1568 = vmatprep.subr.bf16.mxu0 0
      %1569 = vmatpush1.bf16.msra.mxu0 0
      %1570 = vmatprep.subr.bf16.mxu0 0
      %1571 = vmatpush1.bf16.msra.mxu0 0
      %1572 = vmatprep.mubr.bf16.mxu0 0
      %1573 = vmatmul.mubr.bf16.gmra.mrb[0].mxu0 %v1538
      %v1574 = vpop.f32.mrb[0].mxu0
      %v1575 = vadd.f32 %v1523, %v1574
      %v1576 = vpop.f32.mrb[0].mxu0
      %v1577 = vpop.f32.mrb[0].mxu0
      %v1578 = vpop.f32.mrb[0].mxu0
      %1579 = vdwg.mxu0
      %v1580 = vld [vmem:[#allocation3] sm:$0xff]
      %v1581 = vld [vmem:[#allocation3 + $0x8] sm:$0xff]
      %v1582 = vld [vmem:[#allocation3 + $0x10] sm:$0xff]
      %v1583 = vld [vmem:[#allocation3 + $0x18] sm:$0xff]
      %v1584 = vld [vmem:[#allocation3 + $0x20] sm:$0xff]
      %v1585 = vld [vmem:[#allocation3 + $0x28] sm:$0xff]
      %v1586 = vld [vmem:[#allocation3 + $0x30] sm:$0xff]
      %v1587 = vld [vmem:[#allocation3 + $0x38] sm:$0xff]
      %v1588 = vld [vmem:[%s1046] sm:$0xf]
      %v1589 = vld [vmem:[%s1046 + $0x4] sm:$0xf]
      %v1590 = vld [vmem:[%s1046 + $0x8] sm:$0xf]
      %v1591 = vld [vmem:[%s1046 + $0xc] sm:$0xf]
      %v1592 = vpack.c.bf16 %v1581, %v1580
      %v1593 = vpack.c.bf16 %v1583, %v1582
      %v1594 = vpack.c.bf16 %v1585, %v1584
      %v1595 = vpack.c.bf16 %v1587, %v1586
      %v1596 = vld [vmem:[%s1049] sm:$0x1]
      %v1598 = vlaneseq
      %v1599 = vshrl.u32 %v1598, 7
      %v1600 = vsub.s32 0, %v1599
      %v1601 = vrot.slane %v1596, %v1600
      %v1607 = vunpack.c.l.b16 %v1588
      %v1608 = vunpack.c.l.b16 %v1589
      %v1609 = vunpack.c.l.b16 %v1590
      %v1610 = vunpack.c.l.b16 %v1591
      %v1611 = vpack.c.b16 %v1608, %v1607
      %v1612 = vpack.c.b16 %v1610, %v1609
      %v1616 = vsel %vm1488, %v1592, 0
      %v1619 = vsel %vm1488, %v1593, 0
      %v1622 = vsel %vm1488, %v1594, 0
      %v1625 = vsel %vm1488, %v1595, 0
      %1627 = vmatprep.subr.bf16.mxu0 0
      %1628 = vmatpush1.bf16.msra.mxu0 %v1611
      %1629 = vmatprep.subr.bf16.mxu0 0
      %1630 = vmatpush1.bf16.msra.mxu0 %v1612
      %1631 = vmatprep.subr.bf16.mxu0 0
      %1632 = vmatpush1.bf16.msra.mxu0 0
      %1633 = vmatprep.subr.bf16.mxu0 0
      %1634 = vmatpush1.bf16.msra.mxu0 0
      %1635 = vmatprep.subr.bf16.mxu0 0
      %1636 = vmatpush1.bf16.msra.mxu0 0
      %1637 = vmatprep.subr.bf16.mxu0 0
      %1638 = vmatpush1.bf16.msra.mxu0 0
      %1639 = vmatprep.subr.bf16.mxu0 0
      %1640 = vmatpush1.bf16.msra.mxu0 0
      %1641 = vmatprep.subr.bf16.mxu0 0
      %1642 = vmatpush1.bf16.msra.mxu0 0
      %1643 = vmatprep.subr.bf16.mxu0 0
      %1644 = vmatpush1.bf16.msra.mxu0 0
      %1645 = vmatprep.subr.bf16.mxu0 0
      %1646 = vmatpush1.bf16.msra.mxu0 0
      %1647 = vmatprep.subr.bf16.mxu0 0
      %1648 = vmatpush1.bf16.msra.mxu0 0
      %1649 = vmatprep.subr.bf16.mxu0 0
      %1650 = vmatpush1.bf16.msra.mxu0 0
      %1651 = vmatprep.subr.bf16.mxu0 0
      %1652 = vmatpush1.bf16.msra.mxu0 0
      %1653 = vmatprep.subr.bf16.mxu0 0
      %1654 = vmatpush1.bf16.msra.mxu0 0
      %1655 = vmatprep.subr.bf16.mxu0 0
      %1656 = vmatpush1.bf16.msra.mxu0 0
      %1657 = vmatprep.subr.bf16.mxu0 0
      %1658 = vmatpush1.bf16.msra.mxu0 0
      %1659 = vmatprep.mubr.bf16.mxu0 0
      %1660 = vmatmul.mubr.bf16.gmra.mrb[0].mxu0 %v1616
      %v1661 = vpop.f32.mrb[0].mxu0
      %v1662 = vadd.f32 %v1601, %v1661
      %v1663 = vpop.f32.mrb[0].mxu0
      %v1664 = vpop.f32.mrb[0].mxu0
      %v1665 = vadd.f32 %v1601, %v1664
      %v1666 = vpop.f32.mrb[0].mxu0
      %1667 = vmatprep.mubr.bf16.mxu0 0
      %1668 = vmatmul.mubr.bf16.gmra.mrb[0].mxu0 %v1619
      %v1669 = vpop.f32.mrb[0].mxu0
      %v1670 = vadd.f32 %v1601, %v1669
      %v1671 = vpop.f32.mrb[0].mxu0
      %v1672 = vpop.f32.mrb[0].mxu0
      %v1673 = vadd.f32 %v1601, %v1672
      %v1674 = vpop.f32.mrb[0].mxu0
      %1675 = vmatprep.mubr.bf16.mxu0 0
      %1676 = vmatmul.mubr.bf16.gmra.mrb[0].mxu0 %v1622
      %v1677 = vpop.f32.mrb[0].mxu0
      %v1678 = vadd.f32 %v1601, %v1677
      %v1679 = vpop.f32.mrb[0].mxu0
      %v1680 = vpop.f32.mrb[0].mxu0
      %v1681 = vadd.f32 %v1601, %v1680
      %v1682 = vpop.f32.mrb[0].mxu0
      %1683 = vmatprep.mubr.bf16.mxu0 0
      %1684 = vmatmul.mubr.bf16.gmra.mrb[0].mxu0 %v1625
      %v1685 = vpop.f32.mrb[0].mxu0
      %v1686 = vadd.f32 %v1601, %v1685
      %v1687 = vpop.f32.mrb[0].mxu0
      %v1688 = vpop.f32.mrb[0].mxu0
      %v1689 = vadd.f32 %v1601, %v1688
      %v1690 = vpop.f32.mrb[0].mxu0
      %1691 = vdwg.mxu0
      %v1692 = vmul.f32 %v1575, %v1486
      %vm1693 = vcmask 1047680
      %1694 = vrot.lane.b32.xlu0 %v1575, 16
      %v1695 = vpop.permute.xlu0 %1694
      %v1696 = vsel %vm1693, %v1695, %v1575
      %1697 = vrot.lane.b32.xlu0 %v1696, 16
      %v1698 = vpop.permute.xlu0 %1697
      %v1699 = vsel %vm1693, %v1698, %v1575
      %1701 = vrot.lane.b32.xlu0 %v1487, 8
      %v1702 = vpop.permute.xlu0 %1701
      %v1704 = vmul.f32 %v1699, %v1702
      %1706 = vrot.lane.b32.xlu0 %v1704, 120
      %v1707 = vpop.permute.xlu0 %1706
      %v1709 = vadd.f32 %v1692, %v1707
      %1711 = vrot.lane.b32.xlu0 %v1486, 32
      %v1712 = vpop.permute.xlu0 %1711
      %v1714 = vmul.f32 %v1575, %v1712
      %1716 = vrot.lane.b32.xlu0 %v1575, 96
      %v1717 = vpop.permute.xlu0 %1716
      %1719 = vrot.lane.b32.xlu0 %v1717, 16
      %v1720 = vpop.permute.xlu0 %1719
      %v1721 = vsel %vm1693, %v1720, %v1717
      %1722 = vrot.lane.b32.xlu0 %v1721, 16
      %v1723 = vpop.permute.xlu0 %1722
      %v1724 = vsel %vm1693, %v1723, %v1717
      %v1725 = vmul.f32 %v1724, %v1702
      %1727 = vrot.lane.b32.xlu0 %v1725, 24
      %v1728 = vpop.permute.xlu0 %1727
      %v1730 = vadd.f32 %v1714, %v1728
      %v1732 = vcombine.high %v1709, %v1709
      %v1734 = vunpack.c.l.s4 1966171168
      %v1735 = vunpack.c.0.s8 %v1734
      %v1736 = vlaneseq
      %v1737 = vshrl.u32 %v1736, 7
      %v1738 = vsub.s32 %v1735, %v1737
      %v1739 = vrot.slane %v1709, %v1738
      %v1741 = vunpack.c.l.s4 1966171168
      %v1742 = vunpack.c.0.s8 %v1741
      %v1743 = vlaneseq
      %v1744 = vshrl.u32 %v1743, 7
      %v1745 = vsub.s32 %v1742, %v1744
      %v1746 = vrot.slane %v1732, %v1745
      %v1747 = vcombine.high %v1739, %v1739
      %v1748 = vcombine.high %v1746, %v1746
      %v1750 = vunpack.c.l.s4 1966171168
      %v1751 = vunpack.c.0.s8 %v1750
      %v1752 = vlaneseq
      %v1753 = vshrl.u32 %v1752, 7
      %v1754 = vsub.s32 %v1751, %v1753
      %v1755 = vrot.slane %v1739, %v1754
      %v1757 = vunpack.c.l.s4 1966171168
      %v1758 = vunpack.c.0.s8 %v1757
      %v1759 = vlaneseq
      %v1760 = vshrl.u32 %v1759, 7
      %v1761 = vsub.s32 %v1758, %v1760
      %v1762 = vrot.slane %v1746, %v1761
      %v1764 = vunpack.c.l.s4 1966171168
      %v1765 = vunpack.c.0.s8 %v1764
      %v1766 = vlaneseq
      %v1767 = vshrl.u32 %v1766, 7
      %v1768 = vsub.s32 %v1765, %v1767
      %v1769 = vrot.slane %v1747, %v1768
      %v1771 = vunpack.c.l.s4 1966171168
      %v1772 = vunpack.c.0.s8 %v1771
      %v1773 = vlaneseq
      %v1774 = vshrl.u32 %v1773, 7
      %v1775 = vsub.s32 %v1772, %v1774
      %v1776 = vrot.slane %v1748, %v1775
      %v1777 = vcombine.high %v1755, %v1755
      %v1778 = vcombine.high %v1762, %v1762
      %v1779 = vcombine.high %v1769, %v1769
      %v1780 = vcombine.high %v1776, %v1776
      %v1781 = vlaneseq
      %v1782 = vshrl.u32 %v1781, 7
      %v1783 = vsub.s32 0, %v1782
      %v1784 = vrot.slane %v1755, %v1783
      %v1785 = vlaneseq
      %v1786 = vshrl.u32 %v1785, 7
      %v1787 = vsub.s32 0, %v1786
      %v1788 = vrot.slane %v1769, %v1787
      %v1789 = vlaneseq
      %v1790 = vshrl.u32 %v1789, 7
      %v1791 = vsub.s32 0, %v1790
      %v1792 = vrot.slane %v1777, %v1791
      %v1793 = vlaneseq
      %v1794 = vshrl.u32 %v1793, 7
      %v1795 = vsub.s32 0, %v1794
      %v1796 = vrot.slane %v1779, %v1795
      %v1797 = vlaneseq
      %v1798 = vshrl.u32 %v1797, 7
      %v1799 = vsub.s32 0, %v1798
      %v1800 = vrot.slane %v1762, %v1799
      %v1801 = vlaneseq
      %v1802 = vshrl.u32 %v1801, 7
      %v1803 = vsub.s32 0, %v1802
      %v1804 = vrot.slane %v1776, %v1803
      %v1805 = vlaneseq
      %v1806 = vshrl.u32 %v1805, 7
      %v1807 = vsub.s32 0, %v1806
      %v1808 = vrot.slane %v1778, %v1807
      %v1809 = vlaneseq
      %v1810 = vshrl.u32 %v1809, 7
      %v1811 = vsub.s32 0, %v1810
      %v1812 = vrot.slane %v1780, %v1811
      %v1821 = vmul.f32 %v1784, %v1662
      %v1822 = vmul.f32 %v1788, %v1665
      %v1823 = vmul.f32 %v1792, %v1670
      %v1824 = vmul.f32 %v1796, %v1673
      %v1825 = vmul.f32 %v1800, %v1678
      %v1826 = vmul.f32 %v1804, %v1681
      %v1827 = vmul.f32 %v1808, %v1686
      %v1828 = vmul.f32 %v1812, %v1689
      %vm1829 = vcmask 130048
      %v1830 = vsel %vm1829, %v1821, 0.0
      %1831 = vadd.xlane.f32.xlu0 %v1830
      %v1832 = vpop.xlane.xlu0 %1831
      %v1833 = vsel %vm1829, %v1822, 0.0
      %1834 = vadd.xlane.f32.xlu0 %v1833
      %v1835 = vpop.xlane.xlu0 %1834
      %v1836 = vsel %vm1829, %v1823, 0.0
      %1837 = vadd.xlane.f32.xlu0 %v1836
      %v1838 = vpop.xlane.xlu0 %1837
      %v1839 = vsel %vm1829, %v1824, 0.0
      %1840 = vadd.xlane.f32.xlu0 %v1839
      %v1841 = vpop.xlane.xlu0 %1840
      %v1842 = vsel %vm1829, %v1825, 0.0
      %1843 = vadd.xlane.f32.xlu0 %v1842
      %v1844 = vpop.xlane.xlu0 %1843
      %v1845 = vsel %vm1829, %v1826, 0.0
      %1846 = vadd.xlane.f32.xlu0 %v1845
      %v1847 = vpop.xlane.xlu0 %1846
      %v1848 = vsel %vm1829, %v1827, 0.0
      %1849 = vadd.xlane.f32.xlu0 %v1848
      %v1850 = vpop.xlane.xlu0 %1849
      %v1851 = vsel %vm1829, %v1828, 0.0
      %1852 = vadd.xlane.f32.xlu0 %v1851
      %v1853 = vpop.xlane.xlu0 %1852
      %1855 = vrot.lane.b32.xlu0 %v1730, 96
      %v1856 = vpop.permute.xlu0 %1855
      %v1865 = vlaneseq
      %v1866 = vand.u32 %v1865, 127
      %v1867 = vlaneseq
      %v1868 = vshrl.u32 %v1867, 7
      %v1869 = vsub.s32 %v1866, %v1868
      %v1870 = vrot.slane %v1832, %v1869
      %v1871 = vlaneseq
      %v1872 = vshrl.u32 %v1871, 7
      %v1873 = vsub.s32 %v1866, %v1872
      %v1874 = vrot.slane %v1835, %v1873
      %v1875 = vlaneseq
      %v1876 = vshrl.u32 %v1875, 7
      %v1877 = vsub.s32 %v1866, %v1876
      %v1878 = vrot.slane %v1838, %v1877
      %v1879 = vlaneseq
      %v1880 = vshrl.u32 %v1879, 7
      %v1881 = vsub.s32 %v1866, %v1880
      %v1882 = vrot.slane %v1841, %v1881
      %v1883 = vlaneseq
      %v1884 = vshrl.u32 %v1883, 7
      %v1885 = vsub.s32 %v1866, %v1884
      %v1886 = vrot.slane %v1844, %v1885
      %v1887 = vlaneseq
      %v1888 = vshrl.u32 %v1887, 7
      %v1889 = vsub.s32 %v1866, %v1888
      %v1890 = vrot.slane %v1847, %v1889
      %v1891 = vlaneseq
      %v1892 = vshrl.u32 %v1891, 7
      %v1893 = vsub.s32 %v1866, %v1892
      %v1894 = vrot.slane %v1850, %v1893
      %v1895 = vlaneseq
      %v1896 = vshrl.u32 %v1895, 7
      %v1897 = vsub.s32 %v1866, %v1896
      %v1898 = vrot.slane %v1853, %v1897
      %vm1899 = vcmask 1041409
      %v1900 = vsel %vm1899, %v1874, %v1870
      %vm1901 = vcmask 1042434
      %v1902 = vsel %vm1901, %v1878, %v1900
      %vm1903 = vcmask 1043459
      %v1904 = vsel %vm1903, %v1882, %v1902
      %vm1905 = vcmask 1044484
      %v1906 = vsel %vm1905, %v1886, %v1904
      %vm1907 = vcmask 1045509
      %v1908 = vsel %vm1907, %v1890, %v1906
      %vm1909 = vcmask 1046534
      %v1910 = vsel %vm1909, %v1894, %v1908
      %vm1911 = vcmask 1047559
      %v1912 = vsel %vm1911, %v1898, %v1910
      %v1914 = vsel %vm1829, %v1709, 0
      %v1916 = vsel %vm1829, %v1856, 0
      %1918 = vmatprep.subr.mxu0 0.0
      %1919 = vmatpush1.xpose.msra.mxu0 %v1916
      %1920 = vmatprep.subr.mxu0 0.0
      %1921 = vmatpush1.xpose.msra.mxu0 0.0
      %1922 = vmatprep.subr.mxu0 0.0
      %1923 = vmatpush1.xpose.msra.mxu0 0.0
      %1924 = vmatprep.subr.mxu0 0.0
      %1925 = vmatpush1.xpose.msra.mxu0 0.0
      %1926 = vmatprep.subr.mxu0 0.0
      %1927 = vmatpush1.xpose.msra.mxu0 0.0
      %1928 = vmatprep.subr.mxu0 0.0
      %1929 = vmatpush1.xpose.msra.mxu0 0.0
      %1930 = vmatprep.subr.mxu0 0.0
      %1931 = vmatpush1.xpose.msra.mxu0 0.0
      %1932 = vmatprep.subr.mxu0 0.0
      %1933 = vmatpush1.xpose.msra.mxu0 0.0
      %1934 = vmatprep.subr.mxu0 0.0
      %1935 = vmatpush1.xpose.msra.mxu0 0.0
      %1936 = vmatprep.subr.mxu0 0.0
      %1937 = vmatpush1.xpose.msra.mxu0 0.0
      %1938 = vmatprep.subr.mxu0 0.0
      %1939 = vmatpush1.xpose.msra.mxu0 0.0
      %1940 = vmatprep.subr.mxu0 0.0
      %1941 = vmatpush1.xpose.msra.mxu0 0.0
      %1942 = vmatprep.subr.mxu0 0.0
      %1943 = vmatpush1.xpose.msra.mxu0 0.0
      %1944 = vmatprep.subr.mxu0 0.0
      %1945 = vmatpush1.xpose.msra.mxu0 0.0
      %1946 = vmatprep.subr.mxu0 0.0
      %1947 = vmatpush1.xpose.msra.mxu0 0.0
      %1948 = vmatprep.subr.mxu0 0.0
      %1949 = vmatpush1.xpose.msra.mxu0 0.0
      %1950 = vmatprep.subr.mxu0 0.0
      %1951 = vmatpush1.xpose.msra.mxu0 0.0
      %1952 = vmatprep.subr.mxu0 0.0
      %1953 = vmatpush1.xpose.msra.mxu0 0.0
      %1954 = vmatprep.subr.mxu0 0.0
      %1955 = vmatpush1.xpose.msra.mxu0 0.0
      %1956 = vmatprep.subr.mxu0 0.0
      %1957 = vmatpush1.xpose.msra.mxu0 0.0
      %1958 = vmatprep.subr.mxu0 0.0
      %1959 = vmatpush1.xpose.msra.mxu0 0.0
      %1960 = vmatprep.subr.mxu0 0.0
      %1961 = vmatpush1.xpose.msra.mxu0 0.0
      %1962 = vmatprep.subr.mxu0 0.0
      %1963 = vmatpush1.xpose.msra.mxu0 0.0
      %1964 = vmatprep.subr.mxu0 0.0
      %1965 = vmatpush1.xpose.msra.mxu0 0.0
      %1966 = vmatprep.subr.mxu0 0.0
      %1967 = vmatpush1.xpose.msra.mxu0 0.0
      %1968 = vmatprep.subr.mxu0 0.0
      %1969 = vmatpush1.xpose.msra.mxu0 0.0
      %1970 = vmatprep.subr.mxu0 0.0
      %1971 = vmatpush1.xpose.msra.mxu0 0.0
      %1972 = vmatprep.subr.mxu0 0.0
      %1973 = vmatpush1.xpose.msra.mxu0 0.0
      %1974 = vmatprep.subr.mxu0 0.0
      %1975 = vmatpush1.xpose.msra.mxu0 0.0
      %1976 = vmatprep.subr.mxu0 0.0
      %1977 = vmatpush1.xpose.msra.mxu0 0.0
      %1978 = vmatprep.subr.mxu0 0.0
      %1979 = vmatpush1.xpose.msra.mxu0 0.0
      %1980 = vmatprep.subr.mxu0 0.0
      %1981 = vmatpush1.xpose.msra.mxu0 0.0
      %1982 = vmatprep.mubr.f32.mxu0 0.0
      %1983 = vmatmul.mubr.f32.gmra.mrb[0].mxu0 %v1914
      %v1984 = vpop.f32.mrb[0].mxu0
      %v1985 = vadd.f32 %v1912, %v1984
      %v1986 = vpop.f32.mrb[0].mxu0
      %1987 = vdwg.mxu0
      %v1988 = vmul.f32 %v1985, 0.25
      %vm1989 = vcmask 64512
      %v1990 = vsel %vm1989, %v1988, -inf
      %1991 = vmax.xlane.f32.xlu0 %v1990
      %v1992 = vpop.xlane.xlu0 %1991
      %v1993 = vsub.f32 %v1988, %v1992
      %v1994 = vmul.f32 %v1993, 1.442695
      %v1995 = vpow.pop %v1994
      %v1996 = vsel %vm1989, %v1995, 0.0
      %1997 = vadd.xlane.f32.xlu0 %v1996
      %v1998 = vpop.xlane.xlu0 %1997
      %v1999 = vrcp.pop %v1998
      %v2000 = vmul.f32 %v1995, %v1999
      %v2001 = vlaneseq
      %v2002 = vshrl.u32 %v2001, 7
      %v2003 = vsub.s32 0, %v2002
      %v2004 = vrot.slane %v2000, %v2003
      %2006 = vbcast.lane.b32.xlu0 %v2004, 256
      %v2007 = vpop.permute.xlu0 %2006
      %v2008 = vlaneseq
      %v2009 = vshrl.u32 %v2008, 7
      %v2010 = vsub.s32 1, %v2009
      %v2011 = vrot.slane %v2000, %v2010
      %2013 = vbcast.lane.b32.xlu0 %v2011, 256
      %v2014 = vpop.permute.xlu0 %2013
      %v2015 = vlaneseq
      %v2016 = vshrl.u32 %v2015, 7
      %v2017 = vsub.s32 2, %v2016
      %v2018 = vrot.slane %v2000, %v2017
      %2020 = vbcast.lane.b32.xlu0 %v2018, 256
      %v2021 = vpop.permute.xlu0 %2020
      %v2022 = vlaneseq
      %v2023 = vshrl.u32 %v2022, 7
      %v2024 = vsub.s32 3, %v2023
      %v2025 = vrot.slane %v2000, %v2024
      %2027 = vbcast.lane.b32.xlu0 %v2025, 256
      %v2028 = vpop.permute.xlu0 %2027
      %v2029 = vlaneseq
      %v2030 = vshrl.u32 %v2029, 7
      %v2031 = vsub.s32 4, %v2030
      %v2032 = vrot.slane %v2000, %v2031
      %2034 = vbcast.lane.b32.xlu0 %v2032, 256
      %v2035 = vpop.permute.xlu0 %2034
      %v2036 = vlaneseq
      %v2037 = vshrl.u32 %v2036, 7
      %v2038 = vsub.s32 5, %v2037
      %v2039 = vrot.slane %v2000, %v2038
      %2041 = vbcast.lane.b32.xlu0 %v2039, 256
      %v2042 = vpop.permute.xlu0 %2041
      %v2043 = vlaneseq
      %v2044 = vshrl.u32 %v2043, 7
      %v2045 = vsub.s32 6, %v2044
      %v2046 = vrot.slane %v2000, %v2045
      %2048 = vbcast.lane.b32.xlu0 %v2046, 256
      %v2049 = vpop.permute.xlu0 %2048
      %v2050 = vlaneseq
      %v2051 = vshrl.u32 %v2050, 7
      %v2052 = vsub.s32 7, %v2051
      %v2053 = vrot.slane %v2000, %v2052
      %2055 = vbcast.lane.b32.xlu0 %v2053, 256
      %v2056 = vpop.permute.xlu0 %2055
      %v2057 = vmul.f32 %v2007, %v1662
      %v2058 = vmul.f32 %v2014, %v1665
      %v2059 = vmul.f32 %v2021, %v1670
      %v2060 = vmul.f32 %v2028, %v1673
      %v2061 = vmul.f32 %v2035, %v1678
      %v2062 = vmul.f32 %v2042, %v1681
      %v2063 = vmul.f32 %v2049, %v1686
      %v2064 = vmul.f32 %v2056, %v1689
      %v2065 = vsel %vm1829, %v2057, 0.0
      %v2066 = vrot.slane %v2065, 4
      %v2067 = vadd.f32 %v2065, %v2066
      %v2068 = vrot.slane %v2067, 2
      %v2069 = vadd.f32 %v2067, %v2068
      %v2070 = vrot.slane %v2069, 1
      %v2071 = vadd.f32 %v2069, %v2070
      %v2072 = vsel %vm1829, %v2058, 0.0
      %v2073 = vrot.slane %v2072, 4
      %v2074 = vadd.f32 %v2072, %v2073
      %v2075 = vrot.slane %v2074, 2
      %v2076 = vadd.f32 %v2074, %v2075
      %v2077 = vrot.slane %v2076, 1
      %v2078 = vadd.f32 %v2076, %v2077
      %v2079 = vsel %vm1829, %v2059, 0.0
      %v2080 = vrot.slane %v2079, 4
      %v2081 = vadd.f32 %v2079, %v2080
      %v2082 = vrot.slane %v2081, 2
      %v2083 = vadd.f32 %v2081, %v2082
      %v2084 = vrot.slane %v2083, 1
      %v2085 = vadd.f32 %v2083, %v2084
      %v2086 = vsel %vm1829, %v2060, 0.0
      %v2087 = vrot.slane %v2086, 4
      %v2088 = vadd.f32 %v2086, %v2087
      %v2089 = vrot.slane %v2088, 2
      %v2090 = vadd.f32 %v2088, %v2089
      %v2091 = vrot.slane %v2090, 1
      %v2092 = vadd.f32 %v2090, %v2091
      %v2093 = vsel %vm1829, %v2061, 0.0
      %v2094 = vrot.slane %v2093, 4
      %v2095 = vadd.f32 %v2093, %v2094
      %v2096 = vrot.slane %v2095, 2
      %v2097 = vadd.f32 %v2095, %v2096
      %v2098 = vrot.slane %v2097, 1
      %v2099 = vadd.f32 %v2097, %v2098
      %v2100 = vsel %vm1829, %v2062, 0.0
      %v2101 = vrot.slane %v2100, 4
      %v2102 = vadd.f32 %v2100, %v2101
      %v2103 = vrot.slane %v2102, 2
      %v2104 = vadd.f32 %v2102, %v2103
      %v2105 = vrot.slane %v2104, 1
      %v2106 = vadd.f32 %v2104, %v2105
      %v2107 = vsel %vm1829, %v2063, 0.0
      %v2108 = vrot.slane %v2107, 4
      %v2109 = vadd.f32 %v2107, %v2108
      %v2110 = vrot.slane %v2109, 2
      %v2111 = vadd.f32 %v2109, %v2110
      %v2112 = vrot.slane %v2111, 1
      %v2113 = vadd.f32 %v2111, %v2112
      %v2114 = vsel %vm1829, %v2064, 0.0
      %v2115 = vrot.slane %v2114, 4
      %v2116 = vadd.f32 %v2114, %v2115
      %v2117 = vrot.slane %v2116, 2
      %v2118 = vadd.f32 %v2116, %v2117
      %v2119 = vrot.slane %v2118, 1
      %v2120 = vadd.f32 %v2118, %v2119
      %2121 = vrot.lane.b32.xlu0 %v1575, 64
      %v2122 = vpop.permute.xlu0 %2121
      %v2132 = vsel %vm1899, %v2078, %v2071
      %v2133 = vsel %vm1901, %v2085, %v2132
      %v2134 = vsel %vm1903, %v2092, %v2133
      %v2135 = vsel %vm1905, %v2099, %v2134
      %v2136 = vsel %vm1907, %v2106, %v2135
      %v2137 = vsel %vm1909, %v2113, %v2136
      %v2138 = vsel %vm1911, %v2120, %v2137
      %v2141 = vsel %vm1989, %v2000, 0
      %2143 = vmatprep.subr.mxu0 0.0
      %2144 = vmatpush1.msra.mxu0 %v2122
      %2145 = vmatprep.subr.mxu0 0.0
      %2146 = vmatpush1.msra.mxu0 0.0
      %2147 = vmatprep.subr.mxu0 0.0
      %2148 = vmatpush1.msra.mxu0 0.0
      %2149 = vmatprep.subr.mxu0 0.0
      %2150 = vmatpush1.msra.mxu0 0.0
      %2151 = vmatprep.subr.mxu0 0.0
      %2152 = vmatpush1.msra.mxu0 0.0
      %2153 = vmatprep.subr.mxu0 0.0
      %2154 = vmatpush1.msra.mxu0 0.0
      %2155 = vmatprep.subr.mxu0 0.0
      %2156 = vmatpush1.msra.mxu0 0.0
      %2157 = vmatprep.subr.mxu0 0.0
      %2158 = vmatpush1.msra.mxu0 0.0
      %2159 = vmatprep.subr.mxu0 0.0
      %2160 = vmatpush1.msra.mxu0 0.0
      %2161 = vmatprep.subr.mxu0 0.0
      %2162 = vmatpush1.msra.mxu0 0.0
      %2163 = vmatprep.subr.mxu0 0.0
      %2164 = vmatpush1.msra.mxu0 0.0
      %2165 = vmatprep.subr.mxu0 0.0
      %2166 = vmatpush1.msra.mxu0 0.0
      %2167 = vmatprep.subr.mxu0 0.0
      %2168 = vmatpush1.msra.mxu0 0.0
      %2169 = vmatprep.subr.mxu0 0.0
      %2170 = vmatpush1.msra.mxu0 0.0
      %2171 = vmatprep.subr.mxu0 0.0
      %2172 = vmatpush1.msra.mxu0 0.0
      %2173 = vmatprep.subr.mxu0 0.0
      %2174 = vmatpush1.msra.mxu0 0.0
      %2175 = vmatprep.subr.mxu0 0.0
      %2176 = vmatpush1.msra.mxu0 0.0
      %2177 = vmatprep.subr.mxu0 0.0
      %2178 = vmatpush1.msra.mxu0 0.0
      %2179 = vmatprep.subr.mxu0 0.0
      %2180 = vmatpush1.msra.mxu0 0.0
      %2181 = vmatprep.subr.mxu0 0.0
      %2182 = vmatpush1.msra.mxu0 0.0
      %2183 = vmatprep.subr.mxu0 0.0
      %2184 = vmatpush1.msra.mxu0 0.0
      %2185 = vmatprep.subr.mxu0 0.0
      %2186 = vmatpush1.msra.mxu0 0.0
      %2187 = vmatprep.subr.mxu0 0.0
      %2188 = vmatpush1.msra.mxu0 0.0
      %2189 = vmatprep.subr.mxu0 0.0
      %2190 = vmatpush1.msra.mxu0 0.0
      %2191 = vmatprep.subr.mxu0 0.0
      %2192 = vmatpush1.msra.mxu0 0.0
      %2193 = vmatprep.subr.mxu0 0.0
      %2194 = vmatpush1.msra.mxu0 0.0
      %2195 = vmatprep.subr.mxu0 0.0
      %2196 = vmatpush1.msra.mxu0 0.0
      %2197 = vmatprep.subr.mxu0 0.0
      %2198 = vmatpush1.msra.mxu0 0.0
      %2199 = vmatprep.subr.mxu0 0.0
      %2200 = vmatpush1.msra.mxu0 0.0
      %2201 = vmatprep.subr.mxu0 0.0
      %2202 = vmatpush1.msra.mxu0 0.0
      %2203 = vmatprep.subr.mxu0 0.0
      %2204 = vmatpush1.msra.mxu0 0.0
      %2205 = vmatprep.subr.mxu0 0.0
      %2206 = vmatpush1.msra.mxu0 0.0
      %2207 = vmatprep.mubr.f32.mxu0 0.0
      %2208 = vmatmul.mubr.f32.gmra.mrb[0].mxu0 %v2141
      %v2209 = vpop.f32.mrb[0].mxu0
      %v2210 = vadd.f32 %v2138, %v2209
      %v2211 = vpop.f32.mrb[0].mxu0
      %2212 = vdwg.mxu0
      %2213 = vrot.lane.b32.xlu0 %v1486, 16
      %v2214 = vpop.permute.xlu0 %2213
      %v2216 = vmul.f32 %v1575, %v2214
      %2217 = vrot.lane.b32.xlu0 %v1575, 112
      %v2218 = vpop.permute.xlu0 %2217
      %2220 = vrot.lane.b32.xlu0 %v2218, 16
      %v2221 = vpop.permute.xlu0 %2220
      %v2222 = vsel %vm1693, %v2221, %v2218
      %2223 = vrot.lane.b32.xlu0 %v2222, 16
      %v2224 = vpop.permute.xlu0 %2223
      %v2225 = vsel %vm1693, %v2224, %v2218
      %v2226 = vmul.f32 %v2225, %v1702
      %2228 = vrot.lane.b32.xlu0 %v2226, 8
      %v2229 = vpop.permute.xlu0 %2228
      %v2231 = vadd.f32 %v2216, %v2229
      %2232 = vrot.lane.b32.xlu0 %v1486, 48
      %v2233 = vpop.permute.xlu0 %2232
      %v2235 = vmul.f32 %v1575, %v2233
      %2236 = vrot.lane.b32.xlu0 %v1575, 80
      %v2237 = vpop.permute.xlu0 %2236
      %2239 = vrot.lane.b32.xlu0 %v2237, 16
      %v2240 = vpop.permute.xlu0 %2239
      %v2241 = vsel %vm1693, %v2240, %v2237
      %2242 = vrot.lane.b32.xlu0 %v2241, 16
      %v2243 = vpop.permute.xlu0 %2242
      %v2244 = vsel %vm1693, %v2243, %v2237
      %v2245 = vmul.f32 %v2244, %v1702
      %2247 = vrot.lane.b32.xlu0 %v2245, 40
      %v2248 = vpop.permute.xlu0 %2247
      %v2250 = vadd.f32 %v2235, %v2248
      %v2252 = vcombine.high %v2231, %v2231
      %v2254 = vunpack.c.l.s4 1966171168
      %v2255 = vunpack.c.0.s8 %v2254
      %v2256 = vlaneseq
      %v2257 = vshrl.u32 %v2256, 7
      %v2258 = vsub.s32 %v2255, %v2257
      %v2259 = vrot.slane %v2231, %v2258
      %v2261 = vunpack.c.l.s4 1966171168
      %v2262 = vunpack.c.0.s8 %v2261
      %v2263 = vlaneseq
      %v2264 = vshrl.u32 %v2263, 7
      %v2265 = vsub.s32 %v2262, %v2264
      %v2266 = vrot.slane %v2252, %v2265
      %v2267 = vcombine.high %v2259, %v2259
      %v2268 = vcombine.high %v2266, %v2266
      %v2270 = vunpack.c.l.s4 1966171168
      %v2271 = vunpack.c.0.s8 %v2270
      %v2272 = vlaneseq
      %v2273 = vshrl.u32 %v2272, 7
      %v2274 = vsub.s32 %v2271, %v2273
      %v2275 = vrot.slane %v2259, %v2274
      %v2277 = vunpack.c.l.s4 1966171168
      %v2278 = vunpack.c.0.s8 %v2277
      %v2279 = vlaneseq
      %v2280 = vshrl.u32 %v2279, 7
      %v2281 = vsub.s32 %v2278, %v2280
      %v2282 = vrot.slane %v2266, %v2281
      %v2284 = vunpack.c.l.s4 1966171168
      %v2285 = vunpack.c.0.s8 %v2284
      %v2286 = vlaneseq
      %v2287 = vshrl.u32 %v2286, 7
      %v2288 = vsub.s32 %v2285, %v2287
      %v2289 = vrot.slane %v2267, %v2288
      %v2291 = vunpack.c.l.s4 1966171168
      %v2292 = vunpack.c.0.s8 %v2291
      %v2293 = vlaneseq
      %v2294 = vshrl.u32 %v2293, 7
      %v2295 = vsub.s32 %v2292, %v2294
      %v2296 = vrot.slane %v2268, %v2295
      %v2297 = vcombine.high %v2275, %v2275
      %v2298 = vcombine.high %v2282, %v2282
      %v2299 = vcombine.high %v2289, %v2289
      %v2300 = vcombine.high %v2296, %v2296
      %v2301 = vlaneseq
      %v2302 = vshrl.u32 %v2301, 7
      %v2303 = vsub.s32 0, %v2302
      %v2304 = vrot.slane %v2275, %v2303
      %v2305 = vlaneseq
      %v2306 = vshrl.u32 %v2305, 7
      %v2307 = vsub.s32 0, %v2306
      %v2308 = vrot.slane %v2289, %v2307
      %v2309 = vlaneseq
      %v2310 = vshrl.u32 %v2309, 7
      %v2311 = vsub.s32 0, %v2310
      %v2312 = vrot.slane %v2297, %v2311
      %v2313 = vlaneseq
      %v2314 = vshrl.u32 %v2313, 7
      %v2315 = vsub.s32 0, %v2314
      %v2316 = vrot.slane %v2299, %v2315
      %v2317 = vlaneseq
      %v2318 = vshrl.u32 %v2317, 7
      %v2319 = vsub.s32 0, %v2318
      %v2320 = vrot.slane %v2282, %v2319
      %v2321 = vlaneseq
      %v2322 = vshrl.u32 %v2321, 7
      %v2323 = vsub.s32 0, %v2322
      %v2324 = vrot.slane %v2296, %v2323
      %v2325 = vlaneseq
      %v2326 = vshrl.u32 %v2325, 7
      %v2327 = vsub.s32 0, %v2326
      %v2328 = vrot.slane %v2298, %v2327
      %v2329 = vlaneseq
      %v2330 = vshrl.u32 %v2329, 7
      %v2331 = vsub.s32 0, %v2330
      %v2332 = vrot.slane %v2300, %v2331
      %v2341 = vmul.f32 %v2304, %v1662
      %v2342 = vmul.f32 %v2308, %v1665
      %v2343 = vmul.f32 %v2312, %v1670
      %v2344 = vmul.f32 %v2316, %v1673
      %v2345 = vmul.f32 %v2320, %v1678
      %v2346 = vmul.f32 %v2324, %v1681
      %v2347 = vmul.f32 %v2328, %v1686
      %v2348 = vmul.f32 %v2332, %v1689
      %2357 = vrot.lane.b32.xlu0 %v2341, 112
      %v2358 = vpop.permute.xlu0 %2357
      %2359 = vrot.lane.b32.xlu0 %v2342, 112
      %v2360 = vpop.permute.xlu0 %2359
      %2361 = vrot.lane.b32.xlu0 %v2343, 112
      %v2362 = vpop.permute.xlu0 %2361
      %2363 = vrot.lane.b32.xlu0 %v2344, 112
      %v2364 = vpop.permute.xlu0 %2363
      %2365 = vrot.lane.b32.xlu0 %v2345, 112
      %v2366 = vpop.permute.xlu0 %2365
      %2367 = vrot.lane.b32.xlu0 %v2346, 112
      %v2368 = vpop.permute.xlu0 %2367
      %2369 = vrot.lane.b32.xlu0 %v2347, 112
      %v2370 = vpop.permute.xlu0 %2369
      %2371 = vrot.lane.b32.xlu0 %v2348, 112
      %v2372 = vpop.permute.xlu0 %2371
      %v2381 = vsel %vm1829, %v2358, 0.0
      %2382 = vadd.xlane.f32.xlu0 %v2381
      %v2383 = vpop.xlane.xlu0 %2382
      %v2384 = vsel %vm1829, %v2360, 0.0
      %2385 = vadd.xlane.f32.xlu0 %v2384
      %v2386 = vpop.xlane.xlu0 %2385
      %v2387 = vsel %vm1829, %v2362, 0.0
      %2388 = vadd.xlane.f32.xlu0 %v2387
      %v2389 = vpop.xlane.xlu0 %2388
      %v2390 = vsel %vm1829, %v2364, 0.0
      %2391 = vadd.xlane.f32.xlu0 %v2390
      %v2392 = vpop.xlane.xlu0 %2391
      %v2393 = vsel %vm1829, %v2366, 0.0
      %2394 = vadd.xlane.f32.xlu0 %v2393
      %v2395 = vpop.xlane.xlu0 %2394
      %v2396 = vsel %vm1829, %v2368, 0.0
      %2397 = vadd.xlane.f32.xlu0 %v2396
      %v2398 = vpop.xlane.xlu0 %2397
      %v2399 = vsel %vm1829, %v2370, 0.0
      %2400 = vadd.xlane.f32.xlu0 %v2399
      %v2401 = vpop.xlane.xlu0 %2400
      %v2402 = vsel %vm1829, %v2372, 0.0
      %2403 = vadd.xlane.f32.xlu0 %v2402
      %v2404 = vpop.xlane.xlu0 %2403
      %2405 = vrot.lane.b32.xlu0 %v2231, 112
      %v2406 = vpop.permute.xlu0 %2405
      %2408 = vrot.lane.b32.xlu0 %v2250, 80
      %v2409 = vpop.permute.xlu0 %2408
      %v2418 = vlaneseq
      %v2419 = vshrl.u32 %v2418, 7
      %v2420 = vsub.s32 %v1866, %v2419
      %v2421 = vrot.slane %v2383, %v2420
      %v2422 = vlaneseq
      %v2423 = vshrl.u32 %v2422, 7
      %v2424 = vsub.s32 %v1866, %v2423
      %v2425 = vrot.slane %v2386, %v2424
      %v2426 = vlaneseq
      %v2427 = vshrl.u32 %v2426, 7
      %v2428 = vsub.s32 %v1866, %v2427
      %v2429 = vrot.slane %v2389, %v2428
      %v2430 = vlaneseq
      %v2431 = vshrl.u32 %v2430, 7
      %v2432 = vsub.s32 %v1866, %v2431
      %v2433 = vrot.slane %v2392, %v2432
      %v2434 = vlaneseq
      %v2435 = vshrl.u32 %v2434, 7
      %v2436 = vsub.s32 %v1866, %v2435
      %v2437 = vrot.slane %v2395, %v2436
      %v2438 = vlaneseq
      %v2439 = vshrl.u32 %v2438, 7
      %v2440 = vsub.s32 %v1866, %v2439
      %v2441 = vrot.slane %v2398, %v2440
      %v2442 = vlaneseq
      %v2443 = vshrl.u32 %v2442, 7
      %v2444 = vsub.s32 %v1866, %v2443
      %v2445 = vrot.slane %v2401, %v2444
      %v2446 = vlaneseq
      %v2447 = vshrl.u32 %v2446, 7
      %v2448 = vsub.s32 %v1866, %v2447
      %v2449 = vrot.slane %v2404, %v2448
      %v2450 = vsel %vm1899, %v2425, %v2421
      %v2451 = vsel %vm1901, %v2429, %v2450
      %v2452 = vsel %vm1903, %v2433, %v2451
      %v2453 = vsel %vm1905, %v2437, %v2452
      %v2454 = vsel %vm1907, %v2441, %v2453
      %v2455 = vsel %vm1909, %v2445, %v2454
      %v2456 = vsel %vm1911, %v2449, %v2455
      %v2458 = vsel %vm1829, %v2406, 0
      %v2460 = vsel %vm1829, %v2409, 0
      %2462 = vmatprep.subr.mxu0 0.0
      %2463 = vmatpush1.xpose.msra.mxu0 %v2460
      %2464 = vmatprep.subr.mxu0 0.0
      %2465 = vmatpush1.xpose.msra.mxu0 0.0
      %2466 = vmatprep.subr.mxu0 0.0
      %2467 = vmatpush1.xpose.msra.mxu0 0.0
      %2468 = vmatprep.subr.mxu0 0.0
      %2469 = vmatpush1.xpose.msra.mxu0 0.0
      %2470 = vmatprep.subr.mxu0 0.0
      %2471 = vmatpush1.xpose.msra.mxu0 0.0
      %2472 = vmatprep.subr.mxu0 0.0
      %2473 = vmatpush1.xpose.msra.mxu0 0.0
      %2474 = vmatprep.subr.mxu0 0.0
      %2475 = vmatpush1.xpose.msra.mxu0 0.0
      %2476 = vmatprep.subr.mxu0 0.0
      %2477 = vmatpush1.xpose.msra.mxu0 0.0
      %2478 = vmatprep.subr.mxu0 0.0
      %2479 = vmatpush1.xpose.msra.mxu0 0.0
      %2480 = vmatprep.subr.mxu0 0.0
      %2481 = vmatpush1.xpose.msra.mxu0 0.0
      %2482 = vmatprep.subr.mxu0 0.0
      %2483 = vmatpush1.xpose.msra.mxu0 0.0
      %2484 = vmatprep.subr.mxu0 0.0
      %2485 = vmatpush1.xpose.msra.mxu0 0.0
      %2486 = vmatprep.subr.mxu0 0.0
      %2487 = vmatpush1.xpose.msra.mxu0 0.0
      %2488 = vmatprep.subr.mxu0 0.0
      %2489 = vmatpush1.xpose.msra.mxu0 0.0
      %2490 = vmatprep.subr.mxu0 0.0
      %2491 = vmatpush1.xpose.msra.mxu0 0.0
      %2492 = vmatprep.subr.mxu0 0.0
      %2493 = vmatpush1.xpose.msra.mxu0 0.0
      %2494 = vmatprep.subr.mxu0 0.0
      %2495 = vmatpush1.xpose.msra.mxu0 0.0
      %2496 = vmatprep.subr.mxu0 0.0
      %2497 = vmatpush1.xpose.msra.mxu0 0.0
      %2498 = vmatprep.subr.mxu0 0.0
      %2499 = vmatpush1.xpose.msra.mxu0 0.0
      %2500 = vmatprep.subr.mxu0 0.0
      %2501 = vmatpush1.xpose.msra.mxu0 0.0
      %2502 = vmatprep.subr.mxu0 0.0
      %2503 = vmatpush1.xpose.msra.mxu0 0.0
      %2504 = vmatprep.subr.mxu0 0.0
      %2505 = vmatpush1.xpose.msra.mxu0 0.0
      %2506 = vmatprep.subr.mxu0 0.0
      %2507 = vmatpush1.xpose.msra.mxu0 0.0
      %2508 = vmatprep.subr.mxu0 0.0
      %2509 = vmatpush1.xpose.msra.mxu0 0.0
      %2510 = vmatprep.subr.mxu0 0.0
      %2511 = vmatpush1.xpose.msra.mxu0 0.0
      %2512 = vmatprep.subr.mxu0 0.0
      %2513 = vmatpush1.xpose.msra.mxu0 0.0
      %2514 = vmatprep.subr.mxu0 0.0
      %2515 = vmatpush1.xpose.msra.mxu0 0.0
      %2516 = vmatprep.subr.mxu0 0.0
      %2517 = vmatpush1.xpose.msra.mxu0 0.0
      %2518 = vmatprep.subr.mxu0 0.0
      %2519 = vmatpush1.xpose.msra.mxu0 0.0
      %2520 = vmatprep.subr.mxu0 0.0
      %2521 = vmatpush1.xpose.msra.mxu0 0.0
      %2522 = vmatprep.subr.mxu0 0.0
      %2523 = vmatpush1.xpose.msra.mxu0 0.0
      %2524 = vmatprep.subr.mxu0 0.0
      %2525 = vmatpush1.xpose.msra.mxu0 0.0
      %2526 = vmatprep.mubr.f32.mxu0 0.0
      %2527 = vmatmul.mubr.f32.gmra.mrb[0].mxu0 %v2458
      %v2528 = vpop.f32.mrb[0].mxu0
      %v2529 = vadd.f32 %v2456, %v2528
      %v2530 = vpop.f32.mrb[0].mxu0
      %2531 = vdwg.mxu0
      %v2532 = vmul.f32 %v2529, 0.25
      %v2533 = vsel %vm1989, %v2532, -inf
      %2534 = vmax.xlane.f32.xlu0 %v2533
      %v2535 = vpop.xlane.xlu0 %2534
      %v2536 = vsub.f32 %v2532, %v2535
      %v2537 = vmul.f32 %v2536, 1.442695
      %v2538 = vpow.pop %v2537
      %v2539 = vsel %vm1989, %v2538, 0.0
      %2540 = vadd.xlane.f32.xlu0 %v2539
      %v2541 = vpop.xlane.xlu0 %2540
      %v2542 = vrcp.pop %v2541
      %v2543 = vmul.f32 %v2538, %v2542
      %v2544 = vlaneseq
      %v2545 = vshrl.u32 %v2544, 7
      %v2546 = vsub.s32 0, %v2545
      %v2547 = vrot.slane %v2543, %v2546
      %2549 = vbcast.lane.b32.xlu0 %v2547, 256
      %v2550 = vpop.permute.xlu0 %2549
      %v2551 = vlaneseq
      %v2552 = vshrl.u32 %v2551, 7
      %v2553 = vsub.s32 1, %v2552
      %v2554 = vrot.slane %v2543, %v2553
      %2556 = vbcast.lane.b32.xlu0 %v2554, 256
      %v2557 = vpop.permute.xlu0 %2556
      %v2558 = vlaneseq
      %v2559 = vshrl.u32 %v2558, 7
      %v2560 = vsub.s32 2, %v2559
      %v2561 = vrot.slane %v2543, %v2560
      %2563 = vbcast.lane.b32.xlu0 %v2561, 256
      %v2564 = vpop.permute.xlu0 %2563
      %v2565 = vlaneseq
      %v2566 = vshrl.u32 %v2565, 7
      %v2567 = vsub.s32 3, %v2566
      %v2568 = vrot.slane %v2543, %v2567
      %2570 = vbcast.lane.b32.xlu0 %v2568, 256
      %v2571 = vpop.permute.xlu0 %2570
      %v2572 = vlaneseq
      %v2573 = vshrl.u32 %v2572, 7
      %v2574 = vsub.s32 4, %v2573
      %v2575 = vrot.slane %v2543, %v2574
      %2577 = vbcast.lane.b32.xlu0 %v2575, 256
      %v2578 = vpop.permute.xlu0 %2577
      %v2579 = vlaneseq
      %v2580 = vshrl.u32 %v2579, 7
      %v2581 = vsub.s32 5, %v2580
      %v2582 = vrot.slane %v2543, %v2581
      %2584 = vbcast.lane.b32.xlu0 %v2582, 256
      %v2585 = vpop.permute.xlu0 %2584
      %v2586 = vlaneseq
      %v2587 = vshrl.u32 %v2586, 7
      %v2588 = vsub.s32 6, %v2587
      %v2589 = vrot.slane %v2543, %v2588
      %2591 = vbcast.lane.b32.xlu0 %v2589, 256
      %v2592 = vpop.permute.xlu0 %2591
      %v2593 = vlaneseq
      %v2594 = vshrl.u32 %v2593, 7
      %v2595 = vsub.s32 7, %v2594
      %v2596 = vrot.slane %v2543, %v2595
      %2598 = vbcast.lane.b32.xlu0 %v2596, 256
      %v2599 = vpop.permute.xlu0 %2598
      %v2600 = vmul.f32 %v2550, %v1662
      %v2601 = vmul.f32 %v2557, %v1665
      %v2602 = vmul.f32 %v2564, %v1670
      %v2603 = vmul.f32 %v2571, %v1673
      %v2604 = vmul.f32 %v2578, %v1678
      %v2605 = vmul.f32 %v2585, %v1681
      %v2606 = vmul.f32 %v2592, %v1686
      %v2607 = vmul.f32 %v2599, %v1689
      %vm2608 = vcmask 261248
      %v2609 = vsel %vm2608, %v2600, 0.0
      %v2610 = vrot.slane %v2609, 4
      %v2611 = vadd.f32 %v2609, %v2610
      %v2612 = vrot.slane %v2611, 2
      %v2613 = vadd.f32 %v2611, %v2612
      %v2614 = vrot.slane %v2613, 1
      %v2615 = vadd.f32 %v2613, %v2614
      %v2616 = vsel %vm2608, %v2601, 0.0
      %v2617 = vrot.slane %v2616, 4
      %v2618 = vadd.f32 %v2616, %v2617
      %v2619 = vrot.slane %v2618, 2
      %v2620 = vadd.f32 %v2618, %v2619
      %v2621 = vrot.slane %v2620, 1
      %v2622 = vadd.f32 %v2620, %v2621
      %v2623 = vsel %vm2608, %v2602, 0.0
      %v2624 = vrot.slane %v2623, 4
      %v2625 = vadd.f32 %v2623, %v2624
      %v2626 = vrot.slane %v2625, 2
      %v2627 = vadd.f32 %v2625, %v2626
      %v2628 = vrot.slane %v2627, 1
      %v2629 = vadd.f32 %v2627, %v2628
      %v2630 = vsel %vm2608, %v2603, 0.0
      %v2631 = vrot.slane %v2630, 4
      %v2632 = vadd.f32 %v2630, %v2631
      %v2633 = vrot.slane %v2632, 2
      %v2634 = vadd.f32 %v2632, %v2633
      %v2635 = vrot.slane %v2634, 1
      %v2636 = vadd.f32 %v2634, %v2635
      %v2637 = vsel %vm2608, %v2604, 0.0
      %v2638 = vrot.slane %v2637, 4
      %v2639 = vadd.f32 %v2637, %v2638
      %v2640 = vrot.slane %v2639, 2
      %v2641 = vadd.f32 %v2639, %v2640
      %v2642 = vrot.slane %v2641, 1
      %v2643 = vadd.f32 %v2641, %v2642
      %v2644 = vsel %vm2608, %v2605, 0.0
      %v2645 = vrot.slane %v2644, 4
      %v2646 = vadd.f32 %v2644, %v2645
      %v2647 = vrot.slane %v2646, 2
      %v2648 = vadd.f32 %v2646, %v2647
      %v2649 = vrot.slane %v2648, 1
      %v2650 = vadd.f32 %v2648, %v2649
      %v2651 = vsel %vm2608, %v2606, 0.0
      %v2652 = vrot.slane %v2651, 4
      %v2653 = vadd.f32 %v2651, %v2652
      %v2654 = vrot.slane %v2653, 2
      %v2655 = vadd.f32 %v2653, %v2654
      %v2656 = vrot.slane %v2655, 1
      %v2657 = vadd.f32 %v2655, %v2656
      %v2658 = vsel %vm2608, %v2607, 0.0
      %v2659 = vrot.slane %v2658, 4
      %v2660 = vadd.f32 %v2658, %v2659
      %v2661 = vrot.slane %v2660, 2
      %v2662 = vadd.f32 %v2660, %v2661
      %v2663 = vrot.slane %v2662, 1
      %v2664 = vadd.f32 %v2662, %v2663
      %2665 = vrot.lane.b32.xlu0 %v1575, 48
      %v2666 = vpop.permute.xlu0 %2665
      %v2676 = vsel %vm1899, %v2622, %v2615
      %v2677 = vsel %vm1901, %v2629, %v2676
      %v2678 = vsel %vm1903, %v2636, %v2677
      %v2679 = vsel %vm1905, %v2643, %v2678
      %v2680 = vsel %vm1907, %v2650, %v2679
      %v2681 = vsel %vm1909, %v2657, %v2680
      %v2682 = vsel %vm1911, %v2664, %v2681
      %2683 = vrot.lane.b32.xlu0 %v2682, 112
      %v2684 = vpop.permute.xlu0 %2683
      %v2687 = vsel %vm1989, %v2543, 0
      %2689 = vmatprep.subr.mxu0 0.0
      %2690 = vmatpush1.msra.mxu0 %v2666
      %2691 = vmatprep.subr.mxu0 0.0
      %2692 = vmatpush1.msra.mxu0 0.0
      %2693 = vmatprep.subr.mxu0 0.0
      %2694 = vmatpush1.msra.mxu0 0.0
      %2695 = vmatprep.subr.mxu0 0.0
      %2696 = vmatpush1.msra.mxu0 0.0
      %2697 = vmatprep.subr.mxu0 0.0
      %2698 = vmatpush1.msra.mxu0 0.0
      %2699 = vmatprep.subr.mxu0 0.0
      %2700 = vmatpush1.msra.mxu0 0.0
      %2701 = vmatprep.subr.mxu0 0.0
      %2702 = vmatpush1.msra.mxu0 0.0
      %2703 = vmatprep.subr.mxu0 0.0
      %2704 = vmatpush1.msra.mxu0 0.0
      %2705 = vmatprep.subr.mxu0 0.0
      %2706 = vmatpush1.msra.mxu0 0.0
      %2707 = vmatprep.subr.mxu0 0.0
      %2708 = vmatpush1.msra.mxu0 0.0
      %2709 = vmatprep.subr.mxu0 0.0
      %2710 = vmatpush1.msra.mxu0 0.0
      %2711 = vmatprep.subr.mxu0 0.0
      %2712 = vmatpush1.msra.mxu0 0.0
      %2713 = vmatprep.subr.mxu0 0.0
      %2714 = vmatpush1.msra.mxu0 0.0
      %2715 = vmatprep.subr.mxu0 0.0
      %2716 = vmatpush1.msra.mxu0 0.0
      %2717 = vmatprep.subr.mxu0 0.0
      %2718 = vmatpush1.msra.mxu0 0.0
      %2719 = vmatprep.subr.mxu0 0.0
      %2720 = vmatpush1.msra.mxu0 0.0
      %2721 = vmatprep.subr.mxu0 0.0
      %2722 = vmatpush1.msra.mxu0 0.0
      %2723 = vmatprep.subr.mxu0 0.0
      %2724 = vmatpush1.msra.mxu0 0.0
      %2725 = vmatprep.subr.mxu0 0.0
      %2726 = vmatpush1.msra.mxu0 0.0
      %2727 = vmatprep.subr.mxu0 0.0
      %2728 = vmatpush1.msra.mxu0 0.0
      %2729 = vmatprep.subr.mxu0 0.0
      %2730 = vmatpush1.msra.mxu0 0.0
      %2731 = vmatprep.subr.mxu0 0.0
      %2732 = vmatpush1.msra.mxu0 0.0
      %2733 = vmatprep.subr.mxu0 0.0
      %2734 = vmatpush1.msra.mxu0 0.0
      %2735 = vmatprep.subr.mxu0 0.0
      %2736 = vmatpush1.msra.mxu0 0.0
      %2737 = vmatprep.subr.mxu0 0.0
      %2738 = vmatpush1.msra.mxu0 0.0
      %2739 = vmatprep.subr.mxu0 0.0
      %2740 = vmatpush1.msra.mxu0 0.0
      %2741 = vmatprep.subr.mxu0 0.0
      %2742 = vmatpush1.msra.mxu0 0.0
      %2743 = vmatprep.subr.mxu0 0.0
      %2744 = vmatpush1.msra.mxu0 0.0
      %2745 = vmatprep.subr.mxu0 0.0
      %2746 = vmatpush1.msra.mxu0 0.0
      %2747 = vmatprep.subr.mxu0 0.0
      %2748 = vmatpush1.msra.mxu0 0.0
      %2749 = vmatprep.subr.mxu0 0.0
      %2750 = vmatpush1.msra.mxu0 0.0
      %2751 = vmatprep.subr.mxu0 0.0
      %2752 = vmatpush1.msra.mxu0 0.0
      %2753 = vmatprep.mubr.f32.mxu0 0.0
      %2754 = vmatmul.mubr.f32.gmra.mrb[0].mxu0 %v2687
      %v2755 = vpop.f32.mrb[0].mxu0
      %v2756 = vadd.f32 %v2684, %v2755
      %v2757 = vpop.f32.mrb[0].mxu0
      %2758 = vdwg.mxu0
      %2760 = vrot.lane.b32.xlu0 %v2756, 16
      %v2761 = vpop.permute.xlu0 %2760
      %v2763 = vsel %vm1829, %v2210, %v2761
      %v2764 = vld [vmem:[%s1054] sm:$0xf]
      %v2765 = vld [vmem:[%s1054 + $0x4] sm:$0xf]
      %v2766 = vld [vmem:[%s1054 + $0x8] sm:$0xf]
      %v2767 = vld [vmem:[%s1054 + $0xc] sm:$0xf]
      %v2768 = vpack.c.bf16 %v2763, %v2763
      %v2769 = vld [vmem:[%s1057] sm:$0x1]
      %v2771 = vlaneseq
      %v2772 = vshrl.u32 %v2771, 7
      %v2773 = vsub.s32 0, %v2772
      %v2774 = vrot.slane %v2769, %v2773
      %v2780 = vunpack.c.l.b16 %v2764
      %v2781 = vunpack.c.l.b16 %v2765
      %v2782 = vunpack.c.l.b16 %v2766
      %v2783 = vunpack.c.l.b16 %v2767
      %v2784 = vpack.c.b16 %v2781, %v2780
      %v2785 = vpack.c.b16 %v2783, %v2782
      %v2789 = vsel %vm1488, %v2768, 0
      %2791 = vmatprep.subr.bf16.mxu0 0
      %2792 = vmatpush1.bf16.msra.mxu0 %v2784
      %2793 = vmatprep.subr.bf16.mxu0 0
      %2794 = vmatpush1.bf16.msra.mxu0 %v2785
      %2795 = vmatprep.subr.bf16.mxu0 0
      %2796 = vmatpush1.bf16.msra.mxu0 0
      %2797 = vmatprep.subr.bf16.mxu0 0
      %2798 = vmatpush1.bf16.msra.mxu0 0
      %2799 = vmatprep.subr.bf16.mxu0 0
      %2800 = vmatpush1.bf16.msra.mxu0 0
      %2801 = vmatprep.subr.bf16.mxu0 0
      %2802 = vmatpush1.bf16.msra.mxu0 0
      %2803 = vmatprep.subr.bf16.mxu0 0
      %2804 = vmatpush1.bf16.msra.mxu0 0
      %2805 = vmatprep.subr.bf16.mxu0 0
      %2806 = vmatpush1.bf16.msra.mxu0 0
      %2807 = vmatprep.subr.bf16.mxu0 0
      %2808 = vmatpush1.bf16.msra.mxu0 0
      %2809 = vmatprep.subr.bf16.mxu0 0
      %2810 = vmatpush1.bf16.msra.mxu0 0
      %2811 = vmatprep.subr.bf16.mxu0 0
      %2812 = vmatpush1.bf16.msra.mxu0 0
      %2813 = vmatprep.subr.bf16.mxu0 0
      %2814 = vmatpush1.bf16.msra.mxu0 0
      %2815 = vmatprep.subr.bf16.mxu0 0
      %2816 = vmatpush1.bf16.msra.mxu0 0
      %2817 = vmatprep.subr.bf16.mxu0 0
      %2818 = vmatpush1.bf16.msra.mxu0 0
      %2819 = vmatprep.subr.bf16.mxu0 0
      %2820 = vmatpush1.bf16.msra.mxu0 0
      %2821 = vmatprep.subr.bf16.mxu0 0
      %2822 = vmatpush1.bf16.msra.mxu0 0
      %2823 = vmatprep.mubr.bf16.mxu0 0
      %2824 = vmatmul.mubr.bf16.gmra.mrb[0].mxu0 %v2789
      %v2825 = vpop.f32.mrb[0].mxu0
      %v2826 = vadd.f32 %v2774, %v2825
      %v2827 = vpop.f32.mrb[0].mxu0
      %v2828 = vpop.f32.mrb[0].mxu0
      %v2829 = vpop.f32.mrb[0].mxu0
      %2830 = vdwg.mxu0
      %v2831 = vlaneseq
      %v2832 = vshrl.u32 %v2831, 7
      %v2833 = vsub.s32 0, %v2832
      %v2834 = vrot.slane %v1485, %v2833
      %v2835 = vmul.f32 %v2826, %v2834
      %2837 = vrot.lane.b32.xlu0 %v2834, 96
      %v2838 = vpop.permute.xlu0 %2837
      %v2840 = vmul.f32 %v1483, %v2838
      %v2841 = vadd.f32 %v2835, %v2840
      %v2842 = vsub.f32 %v2826, %v1483
      %2843 = vrot.lane.b32.xlu0 %v2834, 64
      %v2844 = vpop.permute.xlu0 %2843
      %v2846 = vmul.f32 %v2842, %v2844
      %v2847 = vadd.f32 %v2841, %v2846
      %v2848 = vsel %vm1488, %v2847, 0.0
      %2849 = vadd.xlane.f32.xlu0 %v2848
      %v2850 = vpop.xlane.xlu0 %2849
      %v2851 = vxor.u32 %v2850, 2147483648
      %v2852 = vmul.f32 %v2851, 1.442695
      %v2853 = vpow.pop %v2852
      %v2854 = vadd.f32 %v2853, 1.0
      %v2855 = vrcp.pop %v2854
      %v2856 = vmul.f32 1.0, %v2855
      %v2857 = vmul.f32 %v2826, %v2856
      %v2858 = vsub.f32 1.0, %v2856
      %v2859 = vmul.f32 %v1483, %v2858
      %v2860 = vadd.f32 %v2857, %v2859
      %v2861 = vsel %vm1488, %v2860, 0.0
      %2862 = vadd.xlane.f32.xlu0 %v2861
      %v2863 = vpop.xlane.xlu0 %2862
      %v2864 = vmul.f32 %v2863, %v1492
      %v2865 = vsub.f32 %v2860, %v2864
      %v2866 = vmul.f32 %v2865, %v2865
      %v2867 = vsel %vm1488, %v2866, 0.0
      %2868 = vadd.xlane.f32.xlu0 %v2867
      %v2869 = vpop.xlane.xlu0 %2868
      %v2870 = vmul.f32 %v2869, %v1492
      %v2871 = vadd.f32 %v2870, 1e-05
      %v2872 = vrsqrt.pop %v2871
      %v2873 = vmul.f32 %v2865, %v2872
      %v2874 = vlaneseq
      %v2875 = vshrl.u32 %v2874, 7
      %v2876 = vsub.s32 2, %v2875
      %v2877 = vrot.slane %v1484, %v2876
      %v2878 = vmul.f32 %v2873, %v2877
      %v2879 = vlaneseq
      %v2880 = vshrl.u32 %v2879, 7
      %v2881 = vsub.s32 3, %v2880
      %v2882 = vrot.slane %v1484, %v2881
      %v2883 = vadd.f32 %v2878, %v2882
      %v2884 = vld [vmem:[%s1062] sm:$0xf]
      %v2885 = vld [vmem:[%s1062 + $0x4] sm:$0xf]
      %v2886 = vld [vmem:[%s1062 + $0x8] sm:$0xf]
      %v2887 = vld [vmem:[%s1062 + $0xc] sm:$0xf]
      %v2888 = vpack.c.bf16 %v2883, %v2883
      %v2889 = vld [vmem:[%s1065] sm:$0x1]
      %v2891 = vlaneseq
      %v2892 = vshrl.u32 %v2891, 7
      %v2893 = vsub.s32 0, %v2892
      %v2894 = vrot.slane %v2889, %v2893
      %v2900 = vunpack.c.l.b16 %v2884
      %v2901 = vunpack.c.l.b16 %v2885
      %v2902 = vunpack.c.l.b16 %v2886
      %v2903 = vunpack.c.l.b16 %v2887
      %v2904 = vpack.c.b16 %v2901, %v2900
      %v2905 = vpack.c.b16 %v2903, %v2902
      %v2909 = vsel %vm1488, %v2888, 0
      %2911 = vmatprep.subr.bf16.mxu0 0
      %2912 = vmatpush1.bf16.msra.mxu0 %v2904
      %2913 = vmatprep.subr.bf16.mxu0 0
      %2914 = vmatpush1.bf16.msra.mxu0 %v2905
      %2915 = vmatprep.subr.bf16.mxu0 0
      %2916 = vmatpush1.bf16.msra.mxu0 0
      %2917 = vmatprep.subr.bf16.mxu0 0
      %2918 = vmatpush1.bf16.msra.mxu0 0
      %2919 = vmatprep.subr.bf16.mxu0 0
      %2920 = vmatpush1.bf16.msra.mxu0 0
      %2921 = vmatprep.subr.bf16.mxu0 0
      %2922 = vmatpush1.bf16.msra.mxu0 0
      %2923 = vmatprep.subr.bf16.mxu0 0
      %2924 = vmatpush1.bf16.msra.mxu0 0
      %2925 = vmatprep.subr.bf16.mxu0 0
      %2926 = vmatpush1.bf16.msra.mxu0 0
      %2927 = vmatprep.subr.bf16.mxu0 0
      %2928 = vmatpush1.bf16.msra.mxu0 0
      %2929 = vmatprep.subr.bf16.mxu0 0
      %2930 = vmatpush1.bf16.msra.mxu0 0
      %2931 = vmatprep.subr.bf16.mxu0 0
      %2932 = vmatpush1.bf16.msra.mxu0 0
      %2933 = vmatprep.subr.bf16.mxu0 0
      %2934 = vmatpush1.bf16.msra.mxu0 0
      %2935 = vmatprep.subr.bf16.mxu0 0
      %2936 = vmatpush1.bf16.msra.mxu0 0
      %2937 = vmatprep.subr.bf16.mxu0 0
      %2938 = vmatpush1.bf16.msra.mxu0 0
      %2939 = vmatprep.subr.bf16.mxu0 0
      %2940 = vmatpush1.bf16.msra.mxu0 0
      %2941 = vmatprep.subr.bf16.mxu0 0
      %2942 = vmatpush1.bf16.msra.mxu0 0
      %2943 = vmatprep.mubr.bf16.mxu0 0
      %2944 = vmatmul.mubr.bf16.gmra.mrb[0].mxu0 %v2909
      %v2945 = vpop.f32.mrb[0].mxu0
      %v2946 = vadd.f32 %v2894, %v2945
      %v2947 = vpop.f32.mrb[0].mxu0
      %v2948 = vpop.f32.mrb[0].mxu0
      %v2949 = vpop.f32.mrb[0].mxu0
      %2950 = vdwg.mxu0
      %v2951 = vxor.u32 %v2946, 2147483648
      %v2952 = vmul.f32 %v2951, 1.442695
      %v2953 = vpow.pop %v2952
      %v2954 = vadd.f32 %v2953, 1.0
      %v2955 = vrcp.pop %v2954
      %v2956 = vmul.f32 1.0, %v2955
      %v2957 = vmul.f32 %v2946, %v2956
      %v2958 = vld [vmem:[%s1070] sm:$0xf]
      %v2959 = vld [vmem:[%s1070 + $0x4] sm:$0xf]
      %v2960 = vld [vmem:[%s1070 + $0x8] sm:$0xf]
      %v2961 = vld [vmem:[%s1070 + $0xc] sm:$0xf]
      %v2962 = vld [vmem:[%s1070 + $0x10] sm:$0xf]
      %v2963 = vld [vmem:[%s1070 + $0x14] sm:$0xf]
      %v2964 = vld [vmem:[%s1070 + $0x18] sm:$0xf]
      %v2965 = vld [vmem:[%s1070 + $0x1c] sm:$0xf]
      %v2966 = vld [vmem:[%s1070 + $0x20] sm:$0xf]
      %v2967 = vld [vmem:[%s1070 + $0x24] sm:$0xf]
      %v2968 = vld [vmem:[%s1070 + $0x28] sm:$0xf]
      %v2969 = vld [vmem:[%s1070 + $0x2c] sm:$0xf]
      %v2970 = vld [vmem:[%s1070 + $0x30] sm:$0xf]
      %v2971 = vld [vmem:[%s1070 + $0x34] sm:$0xf]
      %v2972 = vld [vmem:[%s1070 + $0x38] sm:$0xf]
      %v2973 = vld [vmem:[%s1070 + $0x3c] sm:$0xf]
      %v2974 = vpack.c.bf16 %v2957, %v2957
      %v2975 = vld [vmem:[%s1073] sm:$0x1]
      %v2977 = vlaneseq
      %v2978 = vshrl.u32 %v2977, 7
      %v2979 = vsub.s32 0, %v2978
      %v2980 = vrot.slane %v2975, %v2979
      %v2998 = vunpack.c.l.b16 %v2958
      %v2999 = vunpack.c.l.b16 %v2959
      %v3000 = vunpack.c.l.b16 %v2960
      %v3001 = vunpack.c.l.b16 %v2961
      %v3002 = vunpack.c.l.b16 %v2962
      %v3003 = vunpack.c.l.b16 %v2963
      %v3004 = vunpack.c.l.b16 %v2964
      %v3005 = vunpack.c.l.b16 %v2965
      %v3006 = vunpack.c.l.b16 %v2966
      %v3007 = vunpack.c.l.b16 %v2967
      %v3008 = vunpack.c.l.b16 %v2968
      %v3009 = vunpack.c.l.b16 %v2969
      %v3010 = vunpack.c.l.b16 %v2970
      %v3011 = vunpack.c.l.b16 %v2971
      %v3012 = vunpack.c.l.b16 %v2972
      %v3013 = vunpack.c.l.b16 %v2973
      %v3014 = vpack.c.b16 %v2999, %v2998
      %v3015 = vpack.c.b16 %v3001, %v3000
      %v3016 = vpack.c.b16 %v3003, %v3002
      %v3017 = vpack.c.b16 %v3005, %v3004
      %v3018 = vpack.c.b16 %v3007, %v3006
      %v3019 = vpack.c.b16 %v3009, %v3008
      %v3020 = vpack.c.b16 %v3011, %v3010
      %v3021 = vpack.c.b16 %v3013, %v3012
      %3030 = vmatprep.subr.bf16.mxu0 0
      %3031 = vmatpush1.bf16.msra.mxu0 %v3014
      %3032 = vmatprep.subr.bf16.mxu0 0
      %3033 = vmatpush1.bf16.msra.mxu0 %v3015
      %3034 = vmatprep.subr.bf16.mxu0 0
      %3035 = vmatpush1.bf16.msra.mxu0 %v3016
      %3036 = vmatprep.subr.bf16.mxu0 0
      %3037 = vmatpush1.bf16.msra.mxu0 %v3017
      %3038 = vmatprep.subr.bf16.mxu0 0
      %3039 = vmatpush1.bf16.msra.mxu0 %v3018
      %3040 = vmatprep.subr.bf16.mxu0 0
      %3041 = vmatpush1.bf16.msra.mxu0 %v3019
      %3042 = vmatprep.subr.bf16.mxu0 0
      %3043 = vmatpush1.bf16.msra.mxu0 %v3020
      %3044 = vmatprep.subr.bf16.mxu0 0
      %3045 = vmatpush1.bf16.msra.mxu0 %v3021
      %3046 = vmatprep.subr.bf16.mxu0 0
      %3047 = vmatpush1.bf16.msra.mxu0 0
      %3048 = vmatprep.subr.bf16.mxu0 0
      %3049 = vmatpush1.bf16.msra.mxu0 0
      %3050 = vmatprep.subr.bf16.mxu0 0
      %3051 = vmatpush1.bf16.msra.mxu0 0
      %3052 = vmatprep.subr.bf16.mxu0 0
      %3053 = vmatpush1.bf16.msra.mxu0 0
      %3054 = vmatprep.subr.bf16.mxu0 0
      %3055 = vmatpush1.bf16.msra.mxu0 0
      %3056 = vmatprep.subr.bf16.mxu0 0
      %3057 = vmatpush1.bf16.msra.mxu0 0
      %3058 = vmatprep.subr.bf16.mxu0 0
      %3059 = vmatpush1.bf16.msra.mxu0 0
      %3060 = vmatprep.subr.bf16.mxu0 0
      %3061 = vmatpush1.bf16.msra.mxu0 0
      %3062 = vmatprep.mubr.bf16.mxu0 0
      %3063 = vmatmul.mubr.bf16.gmra.mrb[0].mxu0 %v2974
      %v3064 = vpop.f32.mrb[0].mxu0
      %v3065 = vadd.f32 %v2980, %v3064
      %v3066 = vpop.f32.mrb[0].mxu0
      %v3067 = vpop.f32.mrb[0].mxu0
      %v3068 = vpop.f32.mrb[0].mxu0
      %3069 = vdwg.mxu0
      %v3070 = vlaneseq
      %v3071 = vshrl.u32 %v3070, 7
      %v3072 = vsub.s32 1, %v3071
      %v3073 = vrot.slane %v1485, %v3072
      %v3074 = vmul.f32 %v3065, %v3073
      %3076 = vrot.lane.b32.xlu0 %v3073, 96
      %v3077 = vpop.permute.xlu0 %3076
      %v3079 = vmul.f32 %v2860, %v3077
      %v3080 = vadd.f32 %v3074, %v3079
      %v3081 = vsub.f32 %v3065, %v2860
      %3082 = vrot.lane.b32.xlu0 %v3073, 64
      %v3083 = vpop.permute.xlu0 %3082
      %v3085 = vmul.f32 %v3081, %v3083
      %v3086 = vadd.f32 %v3080, %v3085
      %v3087 = vsel %vm1488, %v3086, 0.0
      %3088 = vadd.xlane.f32.xlu0 %v3087
      %v3089 = vpop.xlane.xlu0 %3088
      %v3090 = vxor.u32 %v3089, 2147483648
      %v3091 = vmul.f32 %v3090, 1.442695
      %v3092 = vpow.pop %v3091
      %v3093 = vadd.f32 %v3092, 1.0
      %v3094 = vrcp.pop %v3093
      %v3095 = vmul.f32 1.0, %v3094
      %v3096 = vmul.f32 %v3065, %v3095
      %v3097 = vsub.f32 1.0, %v3095
      %v3098 = vmul.f32 %v2860, %v3097
      %v3099 = vadd.f32 %v3096, %v3098
      %3100 = vst.msk [vmem:[#allocation2] sm:$0xff] %vm1488, %v3099
      %p3101 = scmp.eq.s32.totalorder %s43, 1
      // Predicated region
      $region133: #{forward.1} parent=127 // pred_check
        %p3102 = pneg %p3101
      $region134: #{forward.1} parent=127 // pred_check_branch
        %3104 = sbr.rel (%p3102) target = $region136
      $region135: #{forward.1} parent=127 // pred_region
        %v3105 = vld [vmem:[%s11] sm:$0xf]
        %v3106 = vld [vmem:[%s11 + $0x4] sm:$0xf]
        %v3107 = vld [vmem:[%s11 + $0x8] sm:$0xf]
        %v3108 = vld [vmem:[%s11 + $0xc] sm:$0xf]
        %v3109 = vpack.c.bf16 %v3099, %v3099
        %v3110 = vld [vmem:[%s12] sm:$0x1]
        %v3112 = vlaneseq
        %v3113 = vshrl.u32 %v3112, 7
        %v3114 = vsub.s32 0, %v3113
        %v3115 = vrot.slane %v3110, %v3114
        %v3121 = vunpack.c.l.b16 %v3105
        %v3122 = vunpack.c.l.b16 %v3106
        %v3123 = vunpack.c.l.b16 %v3107
        %v3124 = vunpack.c.l.b16 %v3108
        %v3125 = vpack.c.b16 %v3122, %v3121
        %v3126 = vpack.c.b16 %v3124, %v3123
        %v3130 = vsel %vm1488, %v3109, 0
        %3132 = vmatprep.subr.bf16.mxu0 0
        %3133 = vmatpush1.bf16.msra.mxu0 %v3125
        %3134 = vmatprep.subr.bf16.mxu0 0
        %3135 = vmatpush1.bf16.msra.mxu0 %v3126
        %3136 = vmatprep.subr.bf16.mxu0 0
        %3137 = vmatpush1.bf16.msra.mxu0 0
        %3138 = vmatprep.subr.bf16.mxu0 0
        %3139 = vmatpush1.bf16.msra.mxu0 0
        %3140 = vmatprep.subr.bf16.mxu0 0
        %3141 = vmatpush1.bf16.msra.mxu0 0
        %3142 = vmatprep.subr.bf16.mxu0 0
        %3143 = vmatpush1.bf16.msra.mxu0 0
        %3144 = vmatprep.subr.bf16.mxu0 0
        %3145 = vmatpush1.bf16.msra.mxu0 0
        %3146 = vmatprep.subr.bf16.mxu0 0
        %3147 = vmatpush1.bf16.msra.mxu0 0
        %3148 = vmatprep.subr.bf16.mxu0 0
        %3149 = vmatpush1.bf16.msra.mxu0 0
        %3150 = vmatprep.subr.bf16.mxu0 0
        %3151 = vmatpush1.bf16.msra.mxu0 0
        %3152 = vmatprep.subr.bf16.mxu0 0
        %3153 = vmatpush1.bf16.msra.mxu0 0
        %3154 = vmatprep.subr.bf16.mxu0 0
        %3155 = vmatpush1.bf16.msra.mxu0 0
        %3156 = vmatprep.subr.bf16.mxu0 0
        %3157 = vmatpush1.bf16.msra.mxu0 0
        %3158 = vmatprep.subr.bf16.mxu0 0
        %3159 = vmatpush1.bf16.msra.mxu0 0
        %3160 = vmatprep.subr.bf16.mxu0 0
        %3161 = vmatpush1.bf16.msra.mxu0 0
        %3162 = vmatprep.subr.bf16.mxu0 0
        %3163 = vmatpush1.bf16.msra.mxu0 0
        %3164 = vmatprep.mubr.bf16.mxu0 0
        %3165 = vmatmul.mubr.bf16.gmra.mrb[0].mxu0 %v3130
        %v3166 = vpop.f32.mrb[0].mxu0
        %v3167 = vadd.f32 %v3115, %v3166
        %v3168 = vpop.f32.mrb[0].mxu0
        %v3169 = vpop.f32.mrb[0].mxu0
        %v3170 = vpop.f32.mrb[0].mxu0
        %3171 = vdwg.mxu0
        %v3172 = vmax.f32 %v3167, 0.0
        %v3173 = vld [vmem:[%s13] sm:$0xf]
        %v3174 = vld [vmem:[%s13 + $0x4] sm:$0xf]
        %v3175 = vld [vmem:[%s13 + $0x8] sm:$0xf]
        %v3176 = vld [vmem:[%s13 + $0xc] sm:$0xf]
        %v3177 = vpack.c.bf16 %v3172, %v3172
        %v3178 = vld [vmem:[%s14] sm:$0x1]
        %v3180 = vlaneseq
        %v3181 = vshrl.u32 %v3180, 7
        %v3182 = vsub.s32 0, %v3181
        %v3183 = vrot.slane %v3178, %v3182
        %v3189 = vunpack.c.l.b16 %v3173
        %v3190 = vunpack.c.l.b16 %v3174
        %v3191 = vunpack.c.l.b16 %v3175
        %v3192 = vunpack.c.l.b16 %v3176
        %v3193 = vpack.c.b16 %v3190, %v3189
        %v3194 = vpack.c.b16 %v3192, %v3191
        %v3198 = vsel %vm1488, %v3177, 0
        %3200 = vmatprep.subr.bf16.mxu0 0
        %3201 = vmatpush1.bf16.msra.mxu0 %v3193
        %3202 = vmatprep.subr.bf16.mxu0 0
        %3203 = vmatpush1.bf16.msra.mxu0 %v3194
        %3204 = vmatprep.subr.bf16.mxu0 0
        %3205 = vmatpush1.bf16.msra.mxu0 0
        %3206 = vmatprep.subr.bf16.mxu0 0
        %3207 = vmatpush1.bf16.msra.mxu0 0
        %3208 = vmatprep.subr.bf16.mxu0 0
        %3209 = vmatpush1.bf16.msra.mxu0 0
        %3210 = vmatprep.subr.bf16.mxu0 0
        %3211 = vmatpush1.bf16.msra.mxu0 0
        %3212 = vmatprep.subr.bf16.mxu0 0
        %3213 = vmatpush1.bf16.msra.mxu0 0
        %3214 = vmatprep.subr.bf16.mxu0 0
        %3215 = vmatpush1.bf16.msra.mxu0 0
        %3216 = vmatprep.subr.bf16.mxu0 0
        %3217 = vmatpush1.bf16.msra.mxu0 0
        %3218 = vmatprep.subr.bf16.mxu0 0
        %3219 = vmatpush1.bf16.msra.mxu0 0
        %3220 = vmatprep.subr.bf16.mxu0 0
        %3221 = vmatpush1.bf16.msra.mxu0 0
        %3222 = vmatprep.subr.bf16.mxu0 0
        %3223 = vmatpush1.bf16.msra.mxu0 0
        %3224 = vmatprep.subr.bf16.mxu0 0
        %3225 = vmatpush1.bf16.msra.mxu0 0
        %3226 = vmatprep.subr.bf16.mxu0 0
        %3227 = vmatpush1.bf16.msra.mxu0 0
        %3228 = vmatprep.subr.bf16.mxu0 0
        %3229 = vmatpush1.bf16.msra.mxu0 0
        %3230 = vmatprep.subr.bf16.mxu0 0
        %3231 = vmatpush1.bf16.msra.mxu0 0
        %3232 = vmatprep.mubr.bf16.mxu0 0
        %3233 = vmatmul.mubr.bf16.gmra.mrb[0].mxu0 %v3198
        %v3234 = vpop.f32.mrb[0].mxu0
        %v3235 = vadd.f32 %v3183, %v3234
        %v3236 = vpop.f32.mrb[0].mxu0
        %v3237 = vpop.f32.mrb[0].mxu0
        %v3238 = vpop.f32.mrb[0].mxu0
        %3239 = vdwg.mxu0
        %v3240 = vld [vmem:[%s1019] sm:$0xff]
        %v3241 = vsub.f32 %v3235, %v3240
        %v3242 = vmul.f32 %v3241, %v3241
        %v3243 = vld [vmem:[%s1023] sm:$0xff]
        %3245 = vset.pattern.permute.xlu0 0
        %3246 = vperm.xlu0 %3245, %v3243
        %v3247 = vpop.permute.xlu0 %3246
        %v3249 = vmul.f32 %v3242, %v3247
        %v3250 = vsel %vm1829, %v3249, 0.0
        %3251 = vadd.xlane.f32.xlu0 %v3250
        %v3252 = vpop.xlane.xlu0 %3251
        %v3253 = vrot.slane %v3252, 4
        %v3254 = vadd.f32 %v3252, %v3253
        %v3255 = vrot.slane %v3254, 2
        %v3256 = vadd.f32 %v3254, %v3255
        %v3257 = vrot.slane %v3256, 1
        %v3258 = vadd.f32 %v3256, %v3257
        %s3259 = vtos %v3258
        %v3260 = vstv %s3259
        %vm3261 = vcmask 0
        %3262 = vst.msk [vmem:[%s1084] sm:$0x1] %vm3261, %v3260
      $region136: #{forward.1} parent=127 // pred_fallthru
        _
      %p3263 = scmp.lt.s32.totalorder %s42, 1
      %s3264 = scalar_select %p3263, %s42, 1
      %s3265 = scalar_lea.vmem %s27, %s3264
      // Predicated region
      $region137: #{forward.1} parent=127 // pred_check
        %p3266 = pneg %p715
      $region138: #{forward.1} parent=127 // pred_check_branch
        %3268 = sbr.rel (%p3266) target = $region140
      $region139: #{forward.1} parent=127 // pred_region
        _
      $region140: #{forward.1} parent=127 // pred_fallthru
        _
    $region128: #{forward.1} parent=5 // pred_fallthru
      _
    %p3269 = scmp.le.s32.totalorder 2, %s33
    // Predicated region
    $region141: #{forward.1} parent=5 // pred_check
      %p3270 = pneg %p3269
    $region142: #{forward.1} parent=5 // pred_check_branch
      %3272 = sbr.rel (%p3270) target = $region144
    $region143: #{forward.1} parent=5 // pred_region
      %s3273 = ssub.s32 %s33, 2
      // Predicated region
      $region145: #{forward.1} parent=143 // pred_check
        %p3274 = pneg %p721
      $region146: #{forward.1} parent=143 // pred_check_branch
        %3276 = sbr.rel (%p3274) target = $region148
      $region147: #{forward.1} parent=143 // pred_region
        %p3277 = scmp.lt.s32.totalorder %s44, 1
        %s3278 = scalar_select %p3277, %s44, 1
        %s3279 = scalar_lea.vmem %s27, %s3278
      $region148: #{forward.1} parent=143 // pred_fallthru
        _
    $region144: #{forward.1} parent=5 // pred_fallthru
      _
  $region6: #{forward.1} parent=0 // loop_footer
    %s37 = sadd.s32 1, %s33
  $region7: #{forward.1} parent=0 // loop_footer_branch
    %32 = sbr.rel target = $region3
  $region8: #{forward.1} parent=0 // loop_exit
    _

</llo_original>
